<compile_context>
chip_gen: v7x
topology: tpu7x:2x2x1
jax: 0.10.0
libtpu: 0.0.40
codegen_flags: <defaults>
</compile_context>

<pallas_src>
import functools
import math

import jax
import jax.numpy as jnp
from jax.experimental import pallas as pl
from jax.experimental.pallas import tpu as pltpu


# ----------------------------------------------------------------------------
# tiling helpers
# ----------------------------------------------------------------------------
def _pick_row_tile(m, target=512):
    """Largest row tile <= target that divides m and is a multiple of 8 (else m).
    Sized conservatively so double-buffered tiles stay far below v7x's 64 MiB VMEM."""
    if m <= target:
        return m
    start = target - (target % 8)
    for tm in range(start, 7, -8):
        if m % tm == 0:
            return tm
    return m


def _pick_time_chunk(t, target=16):
    """Largest divisor of t that is <= target (the LSTM unrolls this many steps)."""
    for tc in range(min(t, target), 0, -1):
        if t % tc == 0:
            return tc
    return 1


# ----------------------------------------------------------------------------
# Kernel 1: fused  conv-matmul + LN  ->  Linear+LN+ReLU  ->  Linear+LN+ReLU
#           ->  layer-0 LSTM input projection (both directions)
# Row-tiled over (t, b) rows; all weights stay resident (constant block index).
# ----------------------------------------------------------------------------
def _dense_stack_gates_kernel(cols_ref, wc_ref, bc_ref, gc_ref, bec_ref,
                              w1_ref, b1_ref, g1_ref, be1_ref,
                              w2_ref, b2_ref, g2_ref, be2_ref,
                              wg_ref, bg_ref, o_ref):
    def ln(y, g, b):
        mu = jnp.mean(y, axis=-1, keepdims=True)
        var = jnp.mean((y - mu) ** 2, axis=-1, keepdims=True)
        return (y - mu) * jax.lax.rsqrt(var + 1e-5) * g + b

    y = jnp.dot(cols_ref[...], wc_ref[...], preferred_element_type=jnp.float32) + bc_ref[...]
    y = ln(y, gc_ref[...], bec_ref[...])                        # ConvMiddleLayer LayerNorm
    y = jnp.dot(y, w1_ref[...], preferred_element_type=jnp.float32) + b1_ref[...]
    y = jnp.maximum(ln(y, g1_ref[...], be1_ref[...]), 0.0)      # Linear + LN + ReLU
    y = jnp.dot(y, w2_ref[...], preferred_element_type=jnp.float32) + b2_ref[...]
    y = jnp.maximum(ln(y, g2_ref[...], be2_ref[...]), 0.0)      # Linear + LN + ReLU
    # layer-0 LSTM input projection, hoisted out of the recurrence
    o_ref[...] = jnp.dot(y, wg_ref[...], preferred_element_type=jnp.float32) + bg_ref[...]


def dense_stack_gates(cols, wc, bc, gc, bec, w1, b1, g1, be1, w2, b2, g2, be2, wg, bg):
    m, k = cols.shape
    n = wc.shape[1]
    g = wg.shape[1]
    tm = _pick_row_tile(m)
    row = lambda i: (i, 0)
    const = lambda i: (0, 0)
    return pl.pallas_call(
        _dense_stack_gates_kernel,
        out_shape=jax.ShapeDtypeStruct((m, g), jnp.float32),
        grid=(m // tm,),
        in_specs=[
            pl.BlockSpec((tm, k), row),
            pl.BlockSpec((k, n), const),
            pl.BlockSpec((1, n), const), pl.BlockSpec((1, n), const), pl.BlockSpec((1, n), const),
            pl.BlockSpec((n, n), const),
            pl.BlockSpec((1, n), const), pl.BlockSpec((1, n), const), pl.BlockSpec((1, n), const),
            pl.BlockSpec((n, n), const),
            pl.BlockSpec((1, n), const), pl.BlockSpec((1, n), const), pl.BlockSpec((1, n), const),
            pl.BlockSpec((n, g), const),
            pl.BlockSpec((1, g), const),
        ],
        out_specs=pl.BlockSpec((tm, g), row),
        compiler_params=pltpu.CompilerParams(dimension_semantics=("parallel",)),
    )(cols, wc, bc.reshape(1, n), gc.reshape(1, n), bec.reshape(1, n),
      w1, b1.reshape(1, n), g1.reshape(1, n), be1.reshape(1, n),
      w2, b2.reshape(1, n), g2.reshape(1, n), be2.reshape(1, n),
      wg, bg.reshape(1, g))


# ----------------------------------------------------------------------------
# Kernel 2: next-layer LSTM gate projection from the two direction planes
#           gates = yf @ Wf + yb @ Wb + b   (both directions' gates fused: 8H wide)
# ----------------------------------------------------------------------------
def _dir_gates_kernel(yf_ref, yb_ref, wf_ref, wb_ref, b_ref, o_ref):
    o_ref[...] = (jnp.dot(yf_ref[...], wf_ref[...], preferred_element_type=jnp.float32)
                  + jnp.dot(yb_ref[...], wb_ref[...], preferred_element_type=jnp.float32)
                  + b_ref[...])


def dir_gates(yf, yb, wf, wb, bias):
    m, hidden = yf.shape
    g = wf.shape[1]
    tm = _pick_row_tile(m)
    row = lambda i: (i, 0)
    const = lambda i: (0, 0)
    return pl.pallas_call(
        _dir_gates_kernel,
        out_shape=jax.ShapeDtypeStruct((m, g), jnp.float32),
        grid=(m // tm,),
        in_specs=[
            pl.BlockSpec((tm, hidden), row),
            pl.BlockSpec((tm, hidden), row),
            pl.BlockSpec((hidden, g), const),
            pl.BlockSpec((hidden, g), const),
            pl.BlockSpec((1, g), const),
        ],
        out_specs=pl.BlockSpec((tm, g), row),
        compiler_params=pltpu.CompilerParams(dimension_semantics=("parallel",)),
    )(yf, yb, wf, wb, bias.reshape(1, g))


# ----------------------------------------------------------------------------
# Kernel 3: bidirectional LSTM recurrence.
# grid = (direction, time_chunk); gates were precomputed (X@W_ih + biases), so the
# per-step work is only h @ W_hh plus elementwise gate math.  Backward direction
# reads chunks in reverse via the index_map and writes its outputs un-reversed.
# PyTorch gate order (i, f, g, o).  H=32 -> the 4H gate row is exactly 128 lanes.
# ----------------------------------------------------------------------------
def _bilstm_kernel(gx_ref, whh_ref, h0_ref, c0_ref, y_ref, hn_ref, cn_ref,
                   h_scr, c_scr, *, chunk, hidden):
    d = pl.program_id(0)            # 0 = forward, 1 = backward
    s = pl.program_id(1)
    ns = pl.num_programs(1)
    H = hidden

    @pl.when(s == 0)
    def _():
        h_scr[...] = h0_ref[...]
        c_scr[...] = c0_ref[...]

    whh = whh_ref[...]              # (H, 4H), this direction's recurrent weights
    bsz = h_scr.shape[0]
    # full-width activation: tanh on the g block, sigmoid elsewhere (one 128-lane vreg)
    lane = jax.lax.broadcasted_iota(jnp.int32, (bsz, 4 * H), 1)
    g_mask = (lane >= 2 * H) & (lane < 3 * H)

    def step(i, carry):
        h, c = carry
        # forward walks the chunk 0..chunk-1, backward walks chunk-1..0
        t = d * (chunk - 1 - 2 * i) + i
        gates = gx_ref[t] + jnp.dot(h, whh, preferred_element_type=jnp.float32)
        act = jnp.where(g_mask, jnp.tanh(gates), jax.nn.sigmoid(gates))
        i_g = act[:, 0 * H:1 * H]
        f_g = act[:, 1 * H:2 * H]
        g_g = act[:, 2 * H:3 * H]
        o_g = act[:, 3 * H:4 * H]
        c_new = f_g * c + i_g * g_g
        h_new = o_g * jnp.tanh(c_new)
        y_ref[t] = h_new
        return h_new, c_new

    h, c = jax.lax.fori_loop(0, chunk, step, (h_scr[...], c_scr[...]), unroll=True)
    h_scr[...] = h
    c_scr[...] = c

    @pl.when(s == ns - 1)           # final states stored once, not every chunk
    def _():
        hn_ref[...] = h
        cn_ref[...] = c


def bilstm_layer(gates, whh2, h0, c0, *, chunk):
    """gates: (T, B, 8H) precomputed [fwd 4H | bwd 4H]; whh2: (2, H, 4H); h0/c0: (2, B, H)."""
    t_len, bsz, g8 = gates.shape
    hidden = g8 // 8
    nchunks = t_len // chunk

    def gate_idx(d, s):
        return ((1 - d) * s + d * (nchunks - 1 - s), 0, d)

    def y_idx(d, s):
        return (d, (1 - d) * s + d * (nchunks - 1 - s), 0, 0)

    def dir_idx(d, s):
        return (d, 0, 0)

    kern = functools.partial(_bilstm_kernel, chunk=chunk, hidden=hidden)
    y, h_n, c_n = pl.pallas_call(
        kern,
        out_shape=(
            jax.ShapeDtypeStruct((2, t_len, bsz, hidden), jnp.float32),
            jax.ShapeDtypeStruct((2, bsz, hidden), jnp.float32),
            jax.ShapeDtypeStruct((2, bsz, hidden), jnp.float32),
        ),
        grid=(2, nchunks),
        in_specs=[
            pl.BlockSpec((chunk, bsz, 4 * hidden), gate_idx),
            pl.BlockSpec((None, hidden, 4 * hidden), dir_idx),
            pl.BlockSpec((None, bsz, hidden), dir_idx),
            pl.BlockSpec((None, bsz, hidden), dir_idx),
        ],
        out_specs=(
            pl.BlockSpec((None, chunk, bsz, hidden), y_idx),
            pl.BlockSpec((None, bsz, hidden), dir_idx),
            pl.BlockSpec((None, bsz, hidden), dir_idx),
        ),
        scratch_shapes=[
            pltpu.VMEM((bsz, hidden), jnp.float32),
            pltpu.VMEM((bsz, hidden), jnp.float32),
        ],
        compiler_params=pltpu.CompilerParams(
            dimension_semantics=("parallel", "arbitrary")),
    )(gates, whh2, h0, c0)
    return y, h_n, c_n


# ----------------------------------------------------------------------------
# Kernel 4: output head.  GELU(exact) -> LayerNorm(2H) -> Linear, computed from the
# two direction planes (split-half LN, no in-kernel concat), output padded to 128
# lanes for dense stores.
# ----------------------------------------------------------------------------
def _head_kernel(yf_ref, yb_ref, gf_ref, gb_ref, bf_ref, bb_ref,
                 wf_ref, wb_ref, bo_ref, o_ref):
    inv_sqrt2 = 1.0 / math.sqrt(2.0)
    zf = yf_ref[...]
    zb = yb_ref[...]
    zf = 0.5 * zf * (1.0 + jax.lax.erf(zf * inv_sqrt2))    # exact GELU (torch default)
    zb = 0.5 * zb * (1.0 + jax.lax.erf(zb * inv_sqrt2))
    width = zf.shape[-1] + zb.shape[-1]
    mu = (jnp.sum(zf, axis=-1, keepdims=True) + jnp.sum(zb, axis=-1, keepdims=True)) / width
    var = (jnp.sum((zf - mu) ** 2, axis=-1, keepdims=True)
           + jnp.sum((zb - mu) ** 2, axis=-1, keepdims=True)) / width
    inv = jax.lax.rsqrt(var + 1e-5)
    zf = (zf - mu) * inv * gf_ref[...] + bf_ref[...]
    zb = (zb - mu) * inv * gb_ref[...] + bb_ref[...]
    o_ref[...] = (jnp.dot(zf, wf_ref[...], preferred_element_type=jnp.float32)
                  + jnp.dot(zb, wb_ref[...], preferred_element_type=jnp.float32)
                  + bo_ref[...])


def head(yf, yb, gamma, beta, w, bias, n_pad):
    m, hidden = yf.shape
    n_out = w.shape[1]
    tm = _pick_row_tile(m)
    w_pad = jnp.zeros((2 * hidden, n_pad), jnp.float32).at[:, :n_out].set(w)
    b_pad = jnp.zeros((1, n_pad), jnp.float32).at[0, :n_out].set(bias)
    row = lambda i: (i, 0)
    const = lambda i: (0, 0)
    return pl.pallas_call(
        _head_kernel,
        out_shape=jax.ShapeDtypeStruct((m, n_pad), jnp.float32),
        grid=(m // tm,),
        in_specs=[
            pl.BlockSpec((tm, hidden), row),
            pl.BlockSpec((tm, hidden), row),
            pl.BlockSpec((1, hidden), const), pl.BlockSpec((1, hidden), const),
            pl.BlockSpec((1, hidden), const), pl.BlockSpec((1, hidden), const),
            pl.BlockSpec((hidden, n_pad), const),
            pl.BlockSpec((hidden, n_pad), const),
            pl.BlockSpec((1, n_pad), const),
        ],
        out_specs=pl.BlockSpec((tm, n_pad), row),
        compiler_params=pltpu.CompilerParams(dimension_semantics=("parallel",)),
    )(yf, yb,
      gamma[:hidden].reshape(1, hidden), gamma[hidden:].reshape(1, hidden),
      beta[:hidden].reshape(1, hidden), beta[hidden:].reshape(1, hidden),
      w_pad[:hidden], w_pad[hidden:], b_pad)


# ----------------------------------------------------------------------------
# Parameter construction (deterministic, synthetic) and forward-pass glue.
# ----------------------------------------------------------------------------
def make_params(key, *, input_channels, hidden_size, n_chars, num_layers):
    keys = iter(jax.random.split(key, 64))

    def rnd(shape, fan_in):
        return jax.random.normal(next(keys), shape, jnp.float32) / math.sqrt(fan_in)

    hs = hidden_size
    p = {
        "conv_w": rnd((64, input_channels, 7), input_channels * 7),   # torch (out, in, k)
        "conv_b": rnd((64,), input_channels * 7),
        "conv_ln_g": jnp.ones((64,), jnp.float32),
        "conv_ln_b": jnp.zeros((64,), jnp.float32),
        "d1_w": rnd((64, 64), 64), "d1_b": rnd((64,), 64),
        "ln1_g": jnp.ones((64,), jnp.float32), "ln1_b": jnp.zeros((64,), jnp.float32),
        "d2_w": rnd((64, 64), 64), "d2_b": rnd((64,), 64),
        "ln2_g": jnp.ones((64,), jnp.float32), "ln2_b": jnp.zeros((64,), jnp.float32),
        "out_ln_g": jnp.ones((2 * hs,), jnp.float32),
        "out_ln_b": jnp.zeros((2 * hs,), jnp.float32),
        "out_w": rnd((2 * hs, n_chars), 2 * hs),
        "out_b": rnd((n_chars,), 2 * hs),
        "lstm": [],
    }
    for layer in range(num_layers):
        d_in = 64 if layer == 0 else 2 * hs
        layer_p = {}
        for direction in ("fwd", "bwd"):
            layer_p[direction] = (
                rnd((4 * hs, d_in), d_in),   # w_ih
                rnd((4 * hs, hs), hs),       # w_hh
                rnd((4 * hs,), hs),          # b_ih
                rnd((4 * hs,), hs),          # b_hh
            )
        p["lstm"].append(layer_p)
    return p


def swevoice_forward(x, hidden, params, *, hidden_size, num_layers):
    """x: (B, 1, C_in, L) float32; hidden: (h0, c0) each (2*num_layers, B, H)."""
    h0_all, c0_all = hidden
    hs = hidden_size
    batch = x.shape[0]
    x = jnp.squeeze(x, axis=1)                              # (B, C_in, L)
    c_in, length = x.shape[1], x.shape[2]
    t_len = (length - 1) // 2 + 1                           # Conv1d k=7, stride=2, pad=3
    m = t_len * batch
    n_chars = params["out_w"].shape[1]

    # time-major im2col via 7 strided slices (no 4-D gather / transpose blow-up)
    x_pad = jnp.pad(x, ((0, 0), (0, 0), (3, 3)))            # (B, C_in, L+6)
    x_t = x_pad.transpose(2, 0, 1)                          # (L+6, B, C_in)
    taps = [x_t[k:k + 2 * t_len:2] for k in range(7)]       # each (T, B, C_in)
    cols = jnp.concatenate(taps, axis=-1).reshape(m, 7 * c_in)   # rows are (t, b) time-major
    w_conv = params["conv_w"].transpose(2, 1, 0).reshape(7 * c_in, 64)  # matches tap order

    # layer-0 LSTM input projection (both directions) fused into the dense stack
    wih_f0, _, bih_f0, bhh_f0 = params["lstm"][0]["fwd"]
    wih_b0, _, bih_b0, bhh_b0 = params["lstm"][0]["bwd"]
    wg0 = jnp.concatenate([wih_f0.T, wih_b0.T], axis=1)             # (64, 8H)
    bg0 = jnp.concatenate([bih_f0 + bhh_f0, bih_b0 + bhh_b0])       # (8H,)

    gates = dense_stack_gates(
        cols, w_conv, params["conv_b"], params["conv_ln_g"], params["conv_ln_b"],
        params["d1_w"], params["d1_b"], params["ln1_g"], params["ln1_b"],
        params["d2_w"], params["d2_b"], params["ln2_g"], params["ln2_b"],
        wg0, bg0)                                                    # (M, 8H)

    chunk = _pick_time_chunk(t_len)

    yf = yb = None
    h_list, c_list = [], []
    for layer in range(num_layers):
        whh2 = jnp.stack([params["lstm"][layer]["fwd"][1].T,
                          params["lstm"][layer]["bwd"][1].T])        # (2, H, 4H)
        h0 = h0_all[2 * layer:2 * layer + 2]                         # (2, B, H)
        c0 = c0_all[2 * layer:2 * layer + 2]
        y, h_n_l, c_n_l = bilstm_layer(gates.reshape(t_len, batch, 8 * hs),
                                       whh2, h0, c0, chunk=chunk)
        h_list.append(h_n_l)
        c_list.append(c_n_l)
        yf = y[0].reshape(m, hs)                                     # contiguous views
        yb = y[1].reshape(m, hs)
        if layer + 1 < num_layers:
            wih_f, _, bih_f, bhh_f = params["lstm"][layer + 1]["fwd"]
            wih_b, _, bih_b, bhh_b = params["lstm"][layer + 1]["bwd"]
            wtf, wtb = wih_f.T, wih_b.T                              # (2H, 4H)
            wf = jnp.concatenate([wtf[:hs], wtb[:hs]], axis=1)       # (H, 8H) acts on yf
            wb = jnp.concatenate([wtf[hs:], wtb[hs:]], axis=1)       # (H, 8H) acts on yb
            bg = jnp.concatenate([bih_f + bhh_f, bih_b + bhh_b])     # (8H,)
            gates = dir_gates(yf, yb, wf, wb, bg)                    # (M, 8H)

    h_n = jnp.concatenate(h_list, axis=0)                            # (2*num_layers, B, H)
    c_n = jnp.concatenate(c_list, axis=0)

    n_pad = max(128, ((n_chars + 127) // 128) * 128)                 # lane-dense head output
    logits_pad = head(yf, yb, params["out_ln_g"], params["out_ln_b"],
                      params["out_w"], params["out_b"], n_pad)       # (M, n_pad)
    logits = logits_pad[:, :n_chars].reshape(t_len, batch, n_chars).transpose(1, 0, 2)
    return logits, (h_n, c_n)


if __name__ == "__main__":
    B, C_in, L = 2, 8, 32
    hidden_size, n_chars, num_layers = 32, 16, 2

    key = jax.random.PRNGKey(0)
    k_params, k_x = jax.random.split(key)
    params = make_params(k_params, input_channels=C_in, hidden_size=hidden_size,
                         n_chars=n_chars, num_layers=num_layers)

    x = jax.random.normal(k_x, (B, 1, C_in, L), jnp.float32)
    h0 = jnp.zeros((2 * num_layers, B, hidden_size), jnp.float32)
    c0 = jnp.zeros((2 * num_layers, B, hidden_size), jnp.float32)

    fwd = jax.jit(functools.partial(swevoice_forward,
                                    hidden_size=hidden_size, num_layers=num_layers))
    logits, (h_n, c_n) = fwd(x, (h0, c0), params)
    jax.block_until_ready((logits, h_n, c_n))

    L_out = (L - 1) // 2 + 1
    assert logits.shape == (B, L_out, n_chars), logits.shape
    assert h_n.shape == (2 * num_layers, B, hidden_size), h_n.shape
    assert c_n.shape == (2 * num_layers, B, hidden_size), c_n.shape
    assert bool(jnp.all(jnp.isfinite(logits)))
    print("KERNEL_OK")
</pallas_src>

<mosaic_0001>
module attributes {stable_mosaic.version = 11 : i64} {
  func.func @_bilstm_kernel(%arg0: i32, %arg1: i32, %arg2: memref<16x2x128xf32, #tpu.memory_space<vmem>>, %arg3: memref<1x32x128xf32, #tpu.memory_space<vmem>>, %arg4: memref<1x2x32xf32, #tpu.memory_space<vmem>>, %arg5: memref<1x2x32xf32, #tpu.memory_space<vmem>>, %arg6: memref<1x16x2x32xf32, #tpu.memory_space<vmem>>, %arg7: memref<1x2x32xf32, #tpu.memory_space<vmem>>, %arg8: memref<1x2x32xf32, #tpu.memory_space<vmem>>, %arg9: memref<2x32xf32, #tpu.memory_space<vmem>>, %arg10: memref<2x32xf32, #tpu.memory_space<vmem>>) attributes {dimension_semantics = [#tpu.dimension_semantics<parallel>, #tpu.dimension_semantics<arbitrary>], iteration_bounds = array<i64: 2, 1>, scalar_prefetch = 0 : i64, scratch_operands = 2 : i64, tpu.core_type = #tpu.core_type<tc>, window_params = [{transform_indices = @transform_0, window_bounds = array<i64: 16, 2, 128>}, {transform_indices = @transform_1, window_bounds = array<i64: 1, 32, 128>}, {transform_indices = @transform_2, window_bounds = array<i64: 1, 2, 32>}, {transform_indices = @transform_3, window_bounds = array<i64: 1, 2, 32>}, {transform_indices = @transform_4, window_bounds = array<i64: 1, 16, 2, 32>}, {transform_indices = @transform_5, window_bounds = array<i64: 1, 2, 32>}, {transform_indices = @transform_6, window_bounds = array<i64: 1, 2, 32>}]} {
    %c0_i32 = arith.constant 0 : i32
    %0 = arith.cmpi eq, %arg1, %c0_i32 : i32
    %1 = arith.extui %0 : i1 to i32
    %c0_i32_0 = arith.constant 0 : i32
    %2 = arith.cmpi ne, %1, %c0_i32_0 : i32
    scf.if %2 {
      %c0_157 = arith.constant 0 : index
      %c0_158 = arith.constant 0 : index
      %c0_159 = arith.constant 0 : index
      %482 = vector.load %arg4[%c0_157, %c0_158, %c0_159] : memref<1x2x32xf32, #tpu.memory_space<vmem>>, vector<1x2x32xf32>
      %483 = vector.shape_cast %482 : vector<1x2x32xf32> to vector<2x32xf32>
      %c0_160 = arith.constant 0 : index
      %c0_161 = arith.constant 0 : index
      %484 = vector.load %arg9[%c0_160, %c0_161] : memref<2x32xf32, #tpu.memory_space<vmem>>, vector<2x32xf32>
      tpu.vector_store %arg9[%c0_160, %c0_161], %483 {strides = array<i32>} : memref<2x32xf32, #tpu.memory_space<vmem>>, vector<2x32xf32>,
      %c0_162 = arith.constant 0 : index
      %c0_163 = arith.constant 0 : index
      %c0_164 = arith.constant 0 : index
      %485 = vector.load %arg5[%c0_162, %c0_163, %c0_164] : memref<1x2x32xf32, #tpu.memory_space<vmem>>, vector<1x2x32xf32>
      %486 = vector.shape_cast %485 : vector<1x2x32xf32> to vector<2x32xf32>
      %c0_165 = arith.constant 0 : index
      %c0_166 = arith.constant 0 : index
      %487 = vector.load %arg10[%c0_165, %c0_166] : memref<2x32xf32, #tpu.memory_space<vmem>>, vector<2x32xf32>
      tpu.vector_store %arg10[%c0_165, %c0_166], %486 {strides = array<i32>} : memref<2x32xf32, #tpu.memory_space<vmem>>, vector<2x32xf32>,
    } else {
    }
    %c0 = arith.constant 0 : index
    %c0_1 = arith.constant 0 : index
    %c0_2 = arith.constant 0 : index
    %3 = vector.load %arg3[%c0, %c0_1, %c0_2] : memref<1x32x128xf32, #tpu.memory_space<vmem>>, vector<1x32x128xf32>
    %4 = vector.shape_cast %3 : vector<1x32x128xf32> to vector<32x128xf32>
    %5 = tpu.iota {dimensions = array<i32: 1>} : vector<2x128xi32>
    %c64_i32 = arith.constant 64 : i32
    %6 = vector.broadcast %c64_i32 : i32 to vector<2x128xi32>
    %7 = arith.cmpi sge, %5, %6 : vector<2x128xi32>
    %c96_i32 = arith.constant 96 : i32
    %8 = vector.broadcast %c96_i32 : i32 to vector<2x128xi32>
    %9 = arith.cmpi slt, %5, %8 : vector<2x128xi32>
    %10 = arith.andi %7, %9 : vector<2x128xi1>
    %c0_3 = arith.constant 0 : index
    %c0_4 = arith.constant 0 : index
    %11 = vector.load %arg9[%c0_3, %c0_4] : memref<2x32xf32, #tpu.memory_space<vmem>>, vector<2x32xf32>
    %c0_5 = arith.constant 0 : index
    %c0_6 = arith.constant 0 : index
    %12 = vector.load %arg10[%c0_5, %c0_6] : memref<2x32xf32, #tpu.memory_space<vmem>>, vector<2x32xf32>
    %c0_i32_7 = arith.constant 0 : i32
    %c2_i32 = arith.constant 2 : i32
    %13 = arith.muli %c2_i32, %c0_i32_7 : i32
    %c15_i32 = arith.constant 15 : i32
    %14 = arith.subi %c15_i32, %13 : i32
    %15 = arith.muli %arg0, %14 : i32
    %16 = arith.addi %15, %c0_i32_7 : i32
    %17 = arith.index_cast %16 : i32 to index
    %c0_8 = arith.constant 0 : index
    %c0_9 = arith.constant 0 : index
    %18 = vector.load %arg2[%17, %c0_8, %c0_9] : memref<16x2x128xf32, #tpu.memory_space<vmem>>, vector<1x2x128xf32>
    %19 = vector.shape_cast %18 : vector<1x2x128xf32> to vector<2x128xf32>
    %cst = arith.constant dense<0.000000e+00> : vector<2x128xf32>
    %20 = tpu.matmul %11, %4, %cst {dimension_numbers = #tpu.dot_dimension_numbers<[1], [0], [0], [1], [0, 0, 1, 1], [], []>} : vector<2x32xf32>, vector<32x128xf32>, vector<2x128xf32> -> vector<2x128xf32>
    %21 = arith.addf %19, %20 : vector<2x128xf32>
    %22 = math.tanh %21 : vector<2x128xf32>
    %23 = arith.negf %21 : vector<2x128xf32>
    %24 = math.exp %23 : vector<2x128xf32>
    %cst_10 = arith.constant 1.000000e+00 : f32
    %25 = vector.broadcast %cst_10 : f32 to vector<2x128xf32>
    %26 = arith.addf %25, %24 : vector<2x128xf32>
    %27 = arith.divf %25, %26 : vector<2x128xf32>
    %28 = arith.select %10, %22, %27 : vector<2x128xi1>, vector<2x128xf32>
    %29 = vector.extract_strided_slice %28 {offsets = [0, 0], sizes = [2, 32], strides = [1, 1]} : vector<2x128xf32> to vector<2x32xf32>
    %30 = vector.extract_strided_slice %28 {offsets = [0, 32], sizes = [2, 32], strides = [1, 1]} : vector<2x128xf32> to vector<2x32xf32>
    %31 = vector.extract_strided_slice %28 {offsets = [0, 64], sizes = [2, 32], strides = [1, 1]} : vector<2x128xf32> to vector<2x32xf32>
    %32 = vector.extract_strided_slice %28 {offsets = [0, 96], sizes = [2, 32], strides = [1, 1]} : vector<2x128xf32> to vector<2x32xf32>
    %33 = arith.mulf %30, %12 : vector<2x32xf32>
    %34 = arith.mulf %29, %31 : vector<2x32xf32>
    %35 = arith.addf %33, %34 : vector<2x32xf32>
    %36 = math.tanh %35 : vector<2x32xf32>
    %37 = arith.mulf %32, %36 : vector<2x32xf32>
    %c0_11 = arith.constant 0 : index
    %38 = arith.index_cast %16 : i32 to index
    %c0_12 = arith.constant 0 : index
    %c0_13 = arith.constant 0 : index
    %39 = vector.load %arg6[%c0_11, %38, %c0_12, %c0_13] : memref<1x16x2x32xf32, #tpu.memory_space<vmem>>, vector<1x1x2x32xf32>
    %40 = vector.shape_cast %39 : vector<1x1x2x32xf32> to vector<2x32xf32>
    %41 = vector.shape_cast %37 : vector<2x32xf32> to vector<1x1x2x32xf32>
    tpu.vector_store %arg6[%c0_11, %38, %c0_12, %c0_13], %41 {strides = array<i32>} : memref<1x16x2x32xf32, #tpu.memory_space<vmem>>, vector<1x1x2x32xf32>,
    %c1_i32 = arith.constant 1 : i32
    %c2_i32_14 = arith.constant 2 : i32
    %42 = arith.muli %c2_i32_14, %c1_i32 : i32
    %c15_i32_15 = arith.constant 15 : i32
    %43 = arith.subi %c15_i32_15, %42 : i32
    %44 = arith.muli %arg0, %43 : i32
    %45 = arith.addi %44, %c1_i32 : i32
    %46 = arith.index_cast %45 : i32 to index
    %c0_16 = arith.constant 0 : index
    %c0_17 = arith.constant 0 : index
    %47 = vector.load %arg2[%46, %c0_16, %c0_17] : memref<16x2x128xf32, #tpu.memory_space<vmem>>, vector<1x2x128xf32>
    %48 = vector.shape_cast %47 : vector<1x2x128xf32> to vector<2x128xf32>
    %cst_18 = arith.constant dense<0.000000e+00> : vector<2x128xf32>
    %49 = tpu.matmul %37, %4, %cst_18 {dimension_numbers = #tpu.dot_dimension_numbers<[1], [0], [0], [1], [0, 0, 1, 1], [], []>} : vector<2x32xf32>, vector<32x128xf32>, vector<2x128xf32> -> vector<2x128xf32>
    %50 = arith.addf %48, %49 : vector<2x128xf32>
    %51 = math.tanh %50 : vector<2x128xf32>
    %52 = arith.negf %50 : vector<2x128xf32>
    %53 = math.exp %52 : vector<2x128xf32>
    %cst_19 = arith.constant 1.000000e+00 : f32
    %54 = vector.broadcast %cst_19 : f32 to vector<2x128xf32>
    %55 = arith.addf %54, %53 : vector<2x128xf32>
    %56 = arith.divf %54, %55 : vector<2x128xf32>
    %57 = arith.select %10, %51, %56 : vector<2x128xi1>, vector<2x128xf32>
    %58 = vector.extract_strided_slice %57 {offsets = [0, 0], sizes = [2, 32], strides = [1, 1]} : vector<2x128xf32> to vector<2x32xf32>
    %59 = vector.extract_strided_slice %57 {offsets = [0, 32], sizes = [2, 32], strides = [1, 1]} : vector<2x128xf32> to vector<2x32xf32>
    %60 = vector.extract_strided_slice %57 {offsets = [0, 64], sizes = [2, 32], strides = [1, 1]} : vector<2x128xf32> to vector<2x32xf32>
    %61 = vector.extract_strided_slice %57 {offsets = [0, 96], sizes = [2, 32], strides = [1, 1]} : vector<2x128xf32> to vector<2x32xf32>
    %62 = arith.mulf %59, %35 : vector<2x32xf32>
    %63 = arith.mulf %58, %60 : vector<2x32xf32>
    %64 = arith.addf %62, %63 : vector<2x32xf32>
    %65 = math.tanh %64 : vector<2x32xf32>
    %66 = arith.mulf %61, %65 : vector<2x32xf32>
    %c0_20 = arith.constant 0 : index
    %67 = arith.index_cast %45 : i32 to index
    %c0_21 = arith.constant 0 : index
    %c0_22 = arith.constant 0 : index
    %68 = vector.load %arg6[%c0_20, %67, %c0_21, %c0_22] : memref<1x16x2x32xf32, #tpu.memory_space<vmem>>, vector<1x1x2x32xf32>
    %69 = vector.shape_cast %68 : vector<1x1x2x32xf32> to vector<2x32xf32>
    %70 = vector.shape_cast %66 : vector<2x32xf32> to vector<1x1x2x32xf32>
    tpu.vector_store %arg6[%c0_20, %67, %c0_21, %c0_22], %70 {strides = array<i32>} : memref<1x16x2x32xf32, #tpu.memory_space<vmem>>, vector<1x1x2x32xf32>,
    %c2_i32_23 = arith.constant 2 : i32
    %c2_i32_24 = arith.constant 2 : i32
    %71 = arith.muli %c2_i32_24, %c2_i32_23 : i32
    %c15_i32_25 = arith.constant 15 : i32
    %72 = arith.subi %c15_i32_25, %71 : i32
    %73 = arith.muli %arg0, %72 : i32
    %74 = arith.addi %73, %c2_i32_23 : i32
    %75 = arith.index_cast %74 : i32 to index
    %c0_26 = arith.constant 0 : index
    %c0_27 = arith.constant 0 : index
    %76 = vector.load %arg2[%75, %c0_26, %c0_27] : memref<16x2x128xf32, #tpu.memory_space<vmem>>, vector<1x2x128xf32>
    %77 = vector.shape_cast %76 : vector<1x2x128xf32> to vector<2x128xf32>
    %cst_28 = arith.constant dense<0.000000e+00> : vector<2x128xf32>
    %78 = tpu.matmul %66, %4, %cst_28 {dimension_numbers = #tpu.dot_dimension_numbers<[1], [0], [0], [1], [0, 0, 1, 1], [], []>} : vector<2x32xf32>, vector<32x128xf32>, vector<2x128xf32> -> vector<2x128xf32>
    %79 = arith.addf %77, %78 : vector<2x128xf32>
    %80 = math.tanh %79 : vector<2x128xf32>
    %81 = arith.negf %79 : vector<2x128xf32>
    %82 = math.exp %81 : vector<2x128xf32>
    %cst_29 = arith.constant 1.000000e+00 : f32
    %83 = vector.broadcast %cst_29 : f32 to vector<2x128xf32>
    %84 = arith.addf %83, %82 : vector<2x128xf32>
    %85 = arith.divf %83, %84 : vector<2x128xf32>
    %86 = arith.select %10, %80, %85 : vector<2x128xi1>, vector<2x128xf32>
    %87 = vector.extract_strided_slice %86 {offsets = [0, 0], sizes = [2, 32], strides = [1, 1]} : vector<2x128xf32> to vector<2x32xf32>
    %88 = vector.extract_strided_slice %86 {offsets = [0, 32], sizes = [2, 32], strides = [1, 1]} : vector<2x128xf32> to vector<2x32xf32>
    %89 = vector.extract_strided_slice %86 {offsets = [0, 64], sizes = [2, 32], strides = [1, 1]} : vector<2x128xf32> to vector<2x32xf32>
    %90 = vector.extract_strided_slice %86 {offsets = [0, 96], sizes = [2, 32], strides = [1, 1]} : vector<2x128xf32> to vector<2x32xf32>
    %91 = arith.mulf %88, %64 : vector<2x32xf32>
    %92 = arith.mulf %87, %89 : vector<2x32xf32>
    %93 = arith.addf %91, %92 : vector<2x32xf32>
    %94 = math.tanh %93 : vector<2x32xf32>
    %95 = arith.mulf %90, %94 : vector<2x32xf32>
    %c0_30 = arith.constant 0 : index
    %96 = arith.index_cast %74 : i32 to index
    %c0_31 = arith.constant 0 : index
    %c0_32 = arith.constant 0 : index
    %97 = vector.load %arg6[%c0_30, %96, %c0_31, %c0_32] : memref<1x16x2x32xf32, #tpu.memory_space<vmem>>, vector<1x1x2x32xf32>
    %98 = vector.shape_cast %97 : vector<1x1x2x32xf32> to vector<2x32xf32>
    %99 = vector.shape_cast %95 : vector<2x32xf32> to vector<1x1x2x32xf32>
    tpu.vector_store %arg6[%c0_30, %96, %c0_31, %c0_32], %99 {strides = array<i32>} : memref<1x16x2x32xf32, #tpu.memory_space<vmem>>, vector<1x1x2x32xf32>,
    %c3_i32 = arith.constant 3 : i32
    %c2_i32_33 = arith.constant 2 : i32
    %100 = arith.muli %c2_i32_33, %c3_i32 : i32
    %c15_i32_34 = arith.constant 15 : i32
    %101 = arith.subi %c15_i32_34, %100 : i32
    %102 = arith.muli %arg0, %101 : i32
    %103 = arith.addi %102, %c3_i32 : i32
    %104 = arith.index_cast %103 : i32 to index
    %c0_35 = arith.constant 0 : index
    %c0_36 = arith.constant 0 : index
    %105 = vector.load %arg2[%104, %c0_35, %c0_36] : memref<16x2x128xf32, #tpu.memory_space<vmem>>, vector<1x2x128xf32>
    %106 = vector.shape_cast %105 : vector<1x2x128xf32> to vector<2x128xf32>
    %cst_37 = arith.constant dense<0.000000e+00> : vector<2x128xf32>
    %107 = tpu.matmul %95, %4, %cst_37 {dimension_numbers = #tpu.dot_dimension_numbers<[1], [0], [0], [1], [0, 0, 1, 1], [], []>} : vector<2x32xf32>, vector<32x128xf32>, vector<2x128xf32> -> vector<2x128xf32>
    %108 = arith.addf %106, %107 : vector<2x128xf32>
    %109 = math.tanh %108 : vector<2x128xf32>
    %110 = arith.negf %108 : vector<2x128xf32>
    %111 = math.exp %110 : vector<2x128xf32>
    %cst_38 = arith.constant 1.000000e+00 : f32
    %112 = vector.broadcast %cst_38 : f32 to vector<2x128xf32>
    %113 = arith.addf %112, %111 : vector<2x128xf32>
    %114 = arith.divf %112, %113 : vector<2x128xf32>
    %115 = arith.select %10, %109, %114 : vector<2x128xi1>, vector<2x128xf32>
    %116 = vector.extract_strided_slice %115 {offsets = [0, 0], sizes = [2, 32], strides = [1, 1]} : vector<2x128xf32> to vector<2x32xf32>
    %117 = vector.extract_strided_slice %115 {offsets = [0, 32], sizes = [2, 32], strides = [1, 1]} : vector<2x128xf32> to vector<2x32xf32>
    %118 = vector.extract_strided_slice %115 {offsets = [0, 64], sizes = [2, 32], strides = [1, 1]} : vector<2x128xf32> to vector<2x32xf32>
    %119 = vector.extract_strided_slice %115 {offsets = [0, 96], sizes = [2, 32], strides = [1, 1]} : vector<2x128xf32> to vector<2x32xf32>
    %120 = arith.mulf %117, %93 : vector<2x32xf32>
    %121 = arith.mulf %116, %118 : vector<2x32xf32>
    %122 = arith.addf %120, %121 : vector<2x32xf32>
    %123 = math.tanh %122 : vector<2x32xf32>
    %124 = arith.mulf %119, %123 : vector<2x32xf32>
    %c0_39 = arith.constant 0 : index
    %125 = arith.index_cast %103 : i32 to index
    %c0_40 = arith.constant 0 : index
    %c0_41 = arith.constant 0 : index
    %126 = vector.load %arg6[%c0_39, %125, %c0_40, %c0_41] : memref<1x16x2x32xf32, #tpu.memory_space<vmem>>, vector<1x1x2x32xf32>
    %127 = vector.shape_cast %126 : vector<1x1x2x32xf32> to vector<2x32xf32>
    %128 = vector.shape_cast %124 : vector<2x32xf32> to vector<1x1x2x32xf32>
    tpu.vector_store %arg6[%c0_39, %125, %c0_40, %c0_41], %128 {strides = array<i32>} : memref<1x16x2x32xf32, #tpu.memory_space<vmem>>, vector<1x1x2x32xf32>,
    %c4_i32 = arith.constant 4 : i32
    %c2_i32_42 = arith.constant 2 : i32
    %129 = arith.muli %c2_i32_42, %c4_i32 : i32
    %c15_i32_43 = arith.constant 15 : i32
    %130 = arith.subi %c15_i32_43, %129 : i32
    %131 = arith.muli %arg0, %130 : i32
    %132 = arith.addi %131, %c4_i32 : i32
    %133 = arith.index_cast %132 : i32 to index
    %c0_44 = arith.constant 0 : index
    %c0_45 = arith.constant 0 : index
    %134 = vector.load %arg2[%133, %c0_44, %c0_45] : memref<16x2x128xf32, #tpu.memory_space<vmem>>, vector<1x2x128xf32>
    %135 = vector.shape_cast %134 : vector<1x2x128xf32> to vector<2x128xf32>
    %cst_46 = arith.constant dense<0.000000e+00> : vector<2x128xf32>
    %136 = tpu.matmul %124, %4, %cst_46 {dimension_numbers = #tpu.dot_dimension_numbers<[1], [0], [0], [1], [0, 0, 1, 1], [], []>} : vector<2x32xf32>, vector<32x128xf32>, vector<2x128xf32> -> vector<2x128xf32>
    %137 = arith.addf %135, %136 : vector<2x128xf32>
    %138 = math.tanh %137 : vector<2x128xf32>
    %139 = arith.negf %137 : vector<2x128xf32>
    %140 = math.exp %139 : vector<2x128xf32>
    %cst_47 = arith.constant 1.000000e+00 : f32
    %141 = vector.broadcast %cst_47 : f32 to vector<2x128xf32>
    %142 = arith.addf %141, %140 : vector<2x128xf32>
    %143 = arith.divf %141, %142 : vector<2x128xf32>
    %144 = arith.select %10, %138, %143 : vector<2x128xi1>, vector<2x128xf32>
    %145 = vector.extract_strided_slice %144 {offsets = [0, 0], sizes = [2, 32], strides = [1, 1]} : vector<2x128xf32> to vector<2x32xf32>
    %146 = vector.extract_strided_slice %144 {offsets = [0, 32], sizes = [2, 32], strides = [1, 1]} : vector<2x128xf32> to vector<2x32xf32>
    %147 = vector.extract_strided_slice %144 {offsets = [0, 64], sizes = [2, 32], strides = [1, 1]} : vector<2x128xf32> to vector<2x32xf32>
    %148 = vector.extract_strided_slice %144 {offsets = [0, 96], sizes = [2, 32], strides = [1, 1]} : vector<2x128xf32> to vector<2x32xf32>
    %149 = arith.mulf %146, %122 : vector<2x32xf32>
    %150 = arith.mulf %145, %147 : vector<2x32xf32>
    %151 = arith.addf %149, %150 : vector<2x32xf32>
    %152 = math.tanh %151 : vector<2x32xf32>
    %153 = arith.mulf %148, %152 : vector<2x32xf32>
    %c0_48 = arith.constant 0 : index
    %154 = arith.index_cast %132 : i32 to index
    %c0_49 = arith.constant 0 : index
    %c0_50 = arith.constant 0 : index
    %155 = vector.load %arg6[%c0_48, %154, %c0_49, %c0_50] : memref<1x16x2x32xf32, #tpu.memory_space<vmem>>, vector<1x1x2x32xf32>
    %156 = vector.shape_cast %155 : vector<1x1x2x32xf32> to vector<2x32xf32>
    %157 = vector.shape_cast %153 : vector<2x32xf32> to vector<1x1x2x32xf32>
    tpu.vector_store %arg6[%c0_48, %154, %c0_49, %c0_50], %157 {strides = array<i32>} : memref<1x16x2x32xf32, #tpu.memory_space<vmem>>, vector<1x1x2x32xf32>,
    %c5_i32 = arith.constant 5 : i32
    %c2_i32_51 = arith.constant 2 : i32
    %158 = arith.muli %c2_i32_51, %c5_i32 : i32
    %c15_i32_52 = arith.constant 15 : i32
    %159 = arith.subi %c15_i32_52, %158 : i32
    %160 = arith.muli %arg0, %159 : i32
    %161 = arith.addi %160, %c5_i32 : i32
    %162 = arith.index_cast %161 : i32 to index
    %c0_53 = arith.constant 0 : index
    %c0_54 = arith.constant 0 : index
    %163 = vector.load %arg2[%162, %c0_53, %c0_54] : memref<16x2x128xf32, #tpu.memory_space<vmem>>, vector<1x2x128xf32>
    %164 = vector.shape_cast %163 : vector<1x2x128xf32> to vector<2x128xf32>
    %cst_55 = arith.constant dense<0.000000e+00> : vector<2x128xf32>
    %165 = tpu.matmul %153, %4, %cst_55 {dimension_numbers = #tpu.dot_dimension_numbers<[1], [0], [0], [1], [0, 0, 1, 1], [], []>} : vector<2x32xf32>, vector<32x128xf32>, vector<2x128xf32> -> vector<2x128xf32>
    %166 = arith.addf %164, %165 : vector<2x128xf32>
    %167 = math.tanh %166 : vector<2x128xf32>
    %168 = arith.negf %166 : vector<2x128xf32>
    %169 = math.exp %168 : vector<2x128xf32>
    %cst_56 = arith.constant 1.000000e+00 : f32
    %170 = vector.broadcast %cst_56 : f32 to vector<2x128xf32>
    %171 = arith.addf %170, %169 : vector<2x128xf32>
    %172 = arith.divf %170, %171 : vector<2x128xf32>
    %173 = arith.select %10, %167, %172 : vector<2x128xi1>, vector<2x128xf32>
    %174 = vector.extract_strided_slice %173 {offsets = [0, 0], sizes = [2, 32], strides = [1, 1]} : vector<2x128xf32> to vector<2x32xf32>
    %175 = vector.extract_strided_slice %173 {offsets = [0, 32], sizes = [2, 32], strides = [1, 1]} : vector<2x128xf32> to vector<2x32xf32>
    %176 = vector.extract_strided_slice %173 {offsets = [0, 64], sizes = [2, 32], strides = [1, 1]} : vector<2x128xf32> to vector<2x32xf32>
    %177 = vector.extract_strided_slice %173 {offsets = [0, 96], sizes = [2, 32], strides = [1, 1]} : vector<2x128xf32> to vector<2x32xf32>
    %178 = arith.mulf %175, %151 : vector<2x32xf32>
    %179 = arith.mulf %174, %176 : vector<2x32xf32>
    %180 = arith.addf %178, %179 : vector<2x32xf32>
    %181 = math.tanh %180 : vector<2x32xf32>
    %182 = arith.mulf %177, %181 : vector<2x32xf32>
    %c0_57 = arith.constant 0 : index
    %183 = arith.index_cast %161 : i32 to index
    %c0_58 = arith.constant 0 : index
    %c0_59 = arith.constant 0 : index
    %184 = vector.load %arg6[%c0_57, %183, %c0_58, %c0_59] : memref<1x16x2x32xf32, #tpu.memory_space<vmem>>, vector<1x1x2x32xf32>
    %185 = vector.shape_cast %184 : vector<1x1x2x32xf32> to vector<2x32xf32>
    %186 = vector.shape_cast %182 : vector<2x32xf32> to vector<1x1x2x32xf32>
    tpu.vector_store %arg6[%c0_57, %183, %c0_58, %c0_59], %186 {strides = array<i32>} : memref<1x16x2x32xf32, #tpu.memory_space<vmem>>, vector<1x1x2x32xf32>,
    %c6_i32 = arith.constant 6 : i32
    %c2_i32_60 = arith.constant 2 : i32
    %187 = arith.muli %c2_i32_60, %c6_i32 : i32
    %c15_i32_61 = arith.constant 15 : i32
    %188 = arith.subi %c15_i32_61, %187 : i32
    %189 = arith.muli %arg0, %188 : i32
    %190 = arith.addi %189, %c6_i32 : i32
    %191 = arith.index_cast %190 : i32 to index
    %c0_62 = arith.constant 0 : index
    %c0_63 = arith.constant 0 : index
    %192 = vector.load %arg2[%191, %c0_62, %c0_63] : memref<16x2x128xf32, #tpu.memory_space<vmem>>, vector<1x2x128xf32>
    %193 = vector.shape_cast %192 : vector<1x2x128xf32> to vector<2x128xf32>
    %cst_64 = arith.constant dense<0.000000e+00> : vector<2x128xf32>
    %194 = tpu.matmul %182, %4, %cst_64 {dimension_numbers = #tpu.dot_dimension_numbers<[1], [0], [0], [1], [0, 0, 1, 1], [], []>} : vector<2x32xf32>, vector<32x128xf32>, vector<2x128xf32> -> vector<2x128xf32>
    %195 = arith.addf %193, %194 : vector<2x128xf32>
    %196 = math.tanh %195 : vector<2x128xf32>
    %197 = arith.negf %195 : vector<2x128xf32>
    %198 = math.exp %197 : vector<2x128xf32>
    %cst_65 = arith.constant 1.000000e+00 : f32
    %199 = vector.broadcast %cst_65 : f32 to vector<2x128xf32>
    %200 = arith.addf %199, %198 : vector<2x128xf32>
    %201 = arith.divf %199, %200 : vector<2x128xf32>
    %202 = arith.select %10, %196, %201 : vector<2x128xi1>, vector<2x128xf32>
    %203 = vector.extract_strided_slice %202 {offsets = [0, 0], sizes = [2, 32], strides = [1, 1]} : vector<2x128xf32> to vector<2x32xf32>
    %204 = vector.extract_strided_slice %202 {offsets = [0, 32], sizes = [2, 32], strides = [1, 1]} : vector<2x128xf32> to vector<2x32xf32>
    %205 = vector.extract_strided_slice %202 {offsets = [0, 64], sizes = [2, 32], strides = [1, 1]} : vector<2x128xf32> to vector<2x32xf32>
    %206 = vector.extract_strided_slice %202 {offsets = [0, 96], sizes = [2, 32], strides = [1, 1]} : vector<2x128xf32> to vector<2x32xf32>
    %207 = arith.mulf %204, %180 : vector<2x32xf32>
    %208 = arith.mulf %203, %205 : vector<2x32xf32>
    %209 = arith.addf %207, %208 : vector<2x32xf32>
    %210 = math.tanh %209 : vector<2x32xf32>
    %211 = arith.mulf %206, %210 : vector<2x32xf32>
    %c0_66 = arith.constant 0 : index
    %212 = arith.index_cast %190 : i32 to index
    %c0_67 = arith.constant 0 : index
    %c0_68 = arith.constant 0 : index
    %213 = vector.load %arg6[%c0_66, %212, %c0_67, %c0_68] : memref<1x16x2x32xf32, #tpu.memory_space<vmem>>, vector<1x1x2x32xf32>
    %214 = vector.shape_cast %213 : vector<1x1x2x32xf32> to vector<2x32xf32>
    %215 = vector.shape_cast %211 : vector<2x32xf32> to vector<1x1x2x32xf32>
    tpu.vector_store %arg6[%c0_66, %212, %c0_67, %c0_68], %215 {strides = array<i32>} : memref<1x16x2x32xf32, #tpu.memory_space<vmem>>, vector<1x1x2x32xf32>,
    %c7_i32 = arith.constant 7 : i32
    %c2_i32_69 = arith.constant 2 : i32
    %216 = arith.muli %c2_i32_69, %c7_i32 : i32
    %c15_i32_70 = arith.constant 15 : i32
    %217 = arith.subi %c15_i32_70, %216 : i32
    %218 = arith.muli %arg0, %217 : i32
    %219 = arith.addi %218, %c7_i32 : i32
    %220 = arith.index_cast %219 : i32 to index
    %c0_71 = arith.constant 0 : index
    %c0_72 = arith.constant 0 : index
    %221 = vector.load %arg2[%220, %c0_71, %c0_72] : memref<16x2x128xf32, #tpu.memory_space<vmem>>, vector<1x2x128xf32>
    %222 = vector.shape_cast %221 : vector<1x2x128xf32> to vector<2x128xf32>
    %cst_73 = arith.constant dense<0.000000e+00> : vector<2x128xf32>
    %223 = tpu.matmul %211, %4, %cst_73 {dimension_numbers = #tpu.dot_dimension_numbers<[1], [0], [0], [1], [0, 0, 1, 1], [], []>} : vector<2x32xf32>, vector<32x128xf32>, vector<2x128xf32> -> vector<2x128xf32>
    %224 = arith.addf %222, %223 : vector<2x128xf32>
    %225 = math.tanh %224 : vector<2x128xf32>
    %226 = arith.negf %224 : vector<2x128xf32>
    %227 = math.exp %226 : vector<2x128xf32>
    %cst_74 = arith.constant 1.000000e+00 : f32
    %228 = vector.broadcast %cst_74 : f32 to vector<2x128xf32>
    %229 = arith.addf %228, %227 : vector<2x128xf32>
    %230 = arith.divf %228, %229 : vector<2x128xf32>
    %231 = arith.select %10, %225, %230 : vector<2x128xi1>, vector<2x128xf32>
    %232 = vector.extract_strided_slice %231 {offsets = [0, 0], sizes = [2, 32], strides = [1, 1]} : vector<2x128xf32> to vector<2x32xf32>
    %233 = vector.extract_strided_slice %231 {offsets = [0, 32], sizes = [2, 32], strides = [1, 1]} : vector<2x128xf32> to vector<2x32xf32>
    %234 = vector.extract_strided_slice %231 {offsets = [0, 64], sizes = [2, 32], strides = [1, 1]} : vector<2x128xf32> to vector<2x32xf32>
    %235 = vector.extract_strided_slice %231 {offsets = [0, 96], sizes = [2, 32], strides = [1, 1]} : vector<2x128xf32> to vector<2x32xf32>
    %236 = arith.mulf %233, %209 : vector<2x32xf32>
    %237 = arith.mulf %232, %234 : vector<2x32xf32>
    %238 = arith.addf %236, %237 : vector<2x32xf32>
    %239 = math.tanh %238 : vector<2x32xf32>
    %240 = arith.mulf %235, %239 : vector<2x32xf32>
    %c0_75 = arith.constant 0 : index
    %241 = arith.index_cast %219 : i32 to index
    %c0_76 = arith.constant 0 : index
    %c0_77 = arith.constant 0 : index
    %242 = vector.load %arg6[%c0_75, %241, %c0_76, %c0_77] : memref<1x16x2x32xf32, #tpu.memory_space<vmem>>, vector<1x1x2x32xf32>
    %243 = vector.shape_cast %242 : vector<1x1x2x32xf32> to vector<2x32xf32>
    %244 = vector.shape_cast %240 : vector<2x32xf32> to vector<1x1x2x32xf32>
    tpu.vector_store %arg6[%c0_75, %241, %c0_76, %c0_77], %244 {strides = array<i32>} : memref<1x16x2x32xf32, #tpu.memory_space<vmem>>, vector<1x1x2x32xf32>,
    %c8_i32 = arith.constant 8 : i32
    %c2_i32_78 = arith.constant 2 : i32
    %245 = arith.muli %c2_i32_78, %c8_i32 : i32
    %c15_i32_79 = arith.constant 15 : i32
    %246 = arith.subi %c15_i32_79, %245 : i32
    %247 = arith.muli %arg0, %246 : i32
    %248 = arith.addi %247, %c8_i32 : i32
    %249 = arith.index_cast %248 : i32 to index
    %c0_80 = arith.constant 0 : index
    %c0_81 = arith.constant 0 : index
    %250 = vector.load %arg2[%249, %c0_80, %c0_81] : memref<16x2x128xf32, #tpu.memory_space<vmem>>, vector<1x2x128xf32>
    %251 = vector.shape_cast %250 : vector<1x2x128xf32> to vector<2x128xf32>
    %cst_82 = arith.constant dense<0.000000e+00> : vector<2x128xf32>
    %252 = tpu.matmul %240, %4, %cst_82 {dimension_numbers = #tpu.dot_dimension_numbers<[1], [0], [0], [1], [0, 0, 1, 1], [], []>} : vector<2x32xf32>, vector<32x128xf32>, vector<2x128xf32> -> vector<2x128xf32>
    %253 = arith.addf %251, %252 : vector<2x128xf32>
    %254 = math.tanh %253 : vector<2x128xf32>
    %255 = arith.negf %253 : vector<2x128xf32>
    %256 = math.exp %255 : vector<2x128xf32>
    %cst_83 = arith.constant 1.000000e+00 : f32
    %257 = vector.broadcast %cst_83 : f32 to vector<2x128xf32>
    %258 = arith.addf %257, %256 : vector<2x128xf32>
    %259 = arith.divf %257, %258 : vector<2x128xf32>
    %260 = arith.select %10, %254, %259 : vector<2x128xi1>, vector<2x128xf32>
    %261 = vector.extract_strided_slice %260 {offsets = [0, 0], sizes = [2, 32], strides = [1, 1]} : vector<2x128xf32> to vector<2x32xf32>
    %262 = vector.extract_strided_slice %260 {offsets = [0, 32], sizes = [2, 32], strides = [1, 1]} : vector<2x128xf32> to vector<2x32xf32>
    %263 = vector.extract_strided_slice %260 {offsets = [0, 64], sizes = [2, 32], strides = [1, 1]} : vector<2x128xf32> to vector<2x32xf32>
    %264 = vector.extract_strided_slice %260 {offsets = [0, 96], sizes = [2, 32], strides = [1, 1]} : vector<2x128xf32> to vector<2x32xf32>
    %265 = arith.mulf %262, %238 : vector<2x32xf32>
    %266 = arith.mulf %261, %263 : vector<2x32xf32>
    %267 = arith.addf %265, %266 : vector<2x32xf32>
    %268 = math.tanh %267 : vector<2x32xf32>
    %269 = arith.mulf %264, %268 : vector<2x32xf32>
    %c0_84 = arith.constant 0 : index
    %270 = arith.index_cast %248 : i32 to index
    %c0_85 = arith.constant 0 : index
    %c0_86 = arith.constant 0 : index
    %271 = vector.load %arg6[%c0_84, %270, %c0_85, %c0_86] : memref<1x16x2x32xf32, #tpu.memory_space<vmem>>, vector<1x1x2x32xf32>
    %272 = vector.shape_cast %271 : vector<1x1x2x32xf32> to vector<2x32xf32>
    %273 = vector.shape_cast %269 : vector<2x32xf32> to vector<1x1x2x32xf32>
    tpu.vector_store %arg6[%c0_84, %270, %c0_85, %c0_86], %273 {strides = array<i32>} : memref<1x16x2x32xf32, #tpu.memory_space<vmem>>, vector<1x1x2x32xf32>,
    %c9_i32 = arith.constant 9 : i32
    %c2_i32_87 = arith.constant 2 : i32
    %274 = arith.muli %c2_i32_87, %c9_i32 : i32
    %c15_i32_88 = arith.constant 15 : i32
    %275 = arith.subi %c15_i32_88, %274 : i32
    %276 = arith.muli %arg0, %275 : i32
    %277 = arith.addi %276, %c9_i32 : i32
    %278 = arith.index_cast %277 : i32 to index
    %c0_89 = arith.constant 0 : index
    %c0_90 = arith.constant 0 : index
    %279 = vector.load %arg2[%278, %c0_89, %c0_90] : memref<16x2x128xf32, #tpu.memory_space<vmem>>, vector<1x2x128xf32>
    %280 = vector.shape_cast %279 : vector<1x2x128xf32> to vector<2x128xf32>
    %cst_91 = arith.constant dense<0.000000e+00> : vector<2x128xf32>
    %281 = tpu.matmul %269, %4, %cst_91 {dimension_numbers = #tpu.dot_dimension_numbers<[1], [0], [0], [1], [0, 0, 1, 1], [], []>} : vector<2x32xf32>, vector<32x128xf32>, vector<2x128xf32> -> vector<2x128xf32>
    %282 = arith.addf %280, %281 : vector<2x128xf32>
    %283 = math.tanh %282 : vector<2x128xf32>
    %284 = arith.negf %282 : vector<2x128xf32>
    %285 = math.exp %284 : vector<2x128xf32>
    %cst_92 = arith.constant 1.000000e+00 : f32
    %286 = vector.broadcast %cst_92 : f32 to vector<2x128xf32>
    %287 = arith.addf %286, %285 : vector<2x128xf32>
    %288 = arith.divf %286, %287 : vector<2x128xf32>
    %289 = arith.select %10, %283, %288 : vector<2x128xi1>, vector<2x128xf32>
    %290 = vector.extract_strided_slice %289 {offsets = [0, 0], sizes = [2, 32], strides = [1, 1]} : vector<2x128xf32> to vector<2x32xf32>
    %291 = vector.extract_strided_slice %289 {offsets = [0, 32], sizes = [2, 32], strides = [1, 1]} : vector<2x128xf32> to vector<2x32xf32>
    %292 = vector.extract_strided_slice %289 {offsets = [0, 64], sizes = [2, 32], strides = [1, 1]} : vector<2x128xf32> to vector<2x32xf32>
    %293 = vector.extract_strided_slice %289 {offsets = [0, 96], sizes = [2, 32], strides = [1, 1]} : vector<2x128xf32> to vector<2x32xf32>
    %294 = arith.mulf %291, %267 : vector<2x32xf32>
    %295 = arith.mulf %290, %292 : vector<2x32xf32>
    %296 = arith.addf %294, %295 : vector<2x32xf32>
    %297 = math.tanh %296 : vector<2x32xf32>
    %298 = arith.mulf %293, %297 : vector<2x32xf32>
    %c0_93 = arith.constant 0 : index
    %299 = arith.index_cast %277 : i32 to index
    %c0_94 = arith.constant 0 : index
    %c0_95 = arith.constant 0 : index
    %300 = vector.load %arg6[%c0_93, %299, %c0_94, %c0_95] : memref<1x16x2x32xf32, #tpu.memory_space<vmem>>, vector<1x1x2x32xf32>
    %301 = vector.shape_cast %300 : vector<1x1x2x32xf32> to vector<2x32xf32>
    %302 = vector.shape_cast %298 : vector<2x32xf32> to vector<1x1x2x32xf32>
    tpu.vector_store %arg6[%c0_93, %299, %c0_94, %c0_95], %302 {strides = array<i32>} : memref<1x16x2x32xf32, #tpu.memory_space<vmem>>, vector<1x1x2x32xf32>,
    %c10_i32 = arith.constant 10 : i32
    %c2_i32_96 = arith.constant 2 : i32
    %303 = arith.muli %c2_i32_96, %c10_i32 : i32
    %c15_i32_97 = arith.constant 15 : i32
    %304 = arith.subi %c15_i32_97, %303 : i32
    %305 = arith.muli %arg0, %304 : i32
    %306 = arith.addi %305, %c10_i32 : i32
    %307 = arith.index_cast %306 : i32 to index
    %c0_98 = arith.constant 0 : index
    %c0_99 = arith.constant 0 : index
    %308 = vector.load %arg2[%307, %c0_98, %c0_99] : memref<16x2x128xf32, #tpu.memory_space<vmem>>, vector<1x2x128xf32>
    %309 = vector.shape_cast %308 : vector<1x2x128xf32> to vector<2x128xf32>
    %cst_100 = arith.constant dense<0.000000e+00> : vector<2x128xf32>
    %310 = tpu.matmul %298, %4, %cst_100 {dimension_numbers = #tpu.dot_dimension_numbers<[1], [0], [0], [1], [0, 0, 1, 1], [], []>} : vector<2x32xf32>, vector<32x128xf32>, vector<2x128xf32> -> vector<2x128xf32>
    %311 = arith.addf %309, %310 : vector<2x128xf32>
    %312 = math.tanh %311 : vector<2x128xf32>
    %313 = arith.negf %311 : vector<2x128xf32>
    %314 = math.exp %313 : vector<2x128xf32>
    %cst_101 = arith.constant 1.000000e+00 : f32
    %315 = vector.broadcast %cst_101 : f32 to vector<2x128xf32>
    %316 = arith.addf %315, %314 : vector<2x128xf32>
    %317 = arith.divf %315, %316 : vector<2x128xf32>
    %318 = arith.select %10, %312, %317 : vector<2x128xi1>, vector<2x128xf32>
    %319 = vector.extract_strided_slice %318 {offsets = [0, 0], sizes = [2, 32], strides = [1, 1]} : vector<2x128xf32> to vector<2x32xf32>
    %320 = vector.extract_strided_slice %318 {offsets = [0, 32], sizes = [2, 32], strides = [1, 1]} : vector<2x128xf32> to vector<2x32xf32>
    %321 = vector.extract_strided_slice %318 {offsets = [0, 64], sizes = [2, 32], strides = [1, 1]} : vector<2x128xf32> to vector<2x32xf32>
    %322 = vector.extract_strided_slice %318 {offsets = [0, 96], sizes = [2, 32], strides = [1, 1]} : vector<2x128xf32> to vector<2x32xf32>
    %323 = arith.mulf %320, %296 : vector<2x32xf32>
    %324 = arith.mulf %319, %321 : vector<2x32xf32>
    %325 = arith.addf %323, %324 : vector<2x32xf32>
    %326 = math.tanh %325 : vector<2x32xf32>
    %327 = arith.mulf %322, %326 : vector<2x32xf32>
    %c0_102 = arith.constant 0 : index
    %328 = arith.index_cast %306 : i32 to index
    %c0_103 = arith.constant 0 : index
    %c0_104 = arith.constant 0 : index
    %329 = vector.load %arg6[%c0_102, %328, %c0_103, %c0_104] : memref<1x16x2x32xf32, #tpu.memory_space<vmem>>, vector<1x1x2x32xf32>
    %330 = vector.shape_cast %329 : vector<1x1x2x32xf32> to vector<2x32xf32>
    %331 = vector.shape_cast %327 : vector<2x32xf32> to vector<1x1x2x32xf32>
    tpu.vector_store %arg6[%c0_102, %328, %c0_103, %c0_104], %331 {strides = array<i32>} : memref<1x16x2x32xf32, #tpu.memory_space<vmem>>, vector<1x1x2x32xf32>,
    %c11_i32 = arith.constant 11 : i32
    %c2_i32_105 = arith.constant 2 : i32
    %332 = arith.muli %c2_i32_105, %c11_i32 : i32
    %c15_i32_106 = arith.constant 15 : i32
    %333 = arith.subi %c15_i32_106, %332 : i32
    %334 = arith.muli %arg0, %333 : i32
    %335 = arith.addi %334, %c11_i32 : i32
    %336 = arith.index_cast %335 : i32 to index
    %c0_107 = arith.constant 0 : index
    %c0_108 = arith.constant 0 : index
    %337 = vector.load %arg2[%336, %c0_107, %c0_108] : memref<16x2x128xf32, #tpu.memory_space<vmem>>, vector<1x2x128xf32>
    %338 = vector.shape_cast %337 : vector<1x2x128xf32> to vector<2x128xf32>
    %cst_109 = arith.constant dense<0.000000e+00> : vector<2x128xf32>
    %339 = tpu.matmul %327, %4, %cst_109 {dimension_numbers = #tpu.dot_dimension_numbers<[1], [0], [0], [1], [0, 0, 1, 1], [], []>} : vector<2x32xf32>, vector<32x128xf32>, vector<2x128xf32> -> vector<2x128xf32>
    %340 = arith.addf %338, %339 : vector<2x128xf32>
    %341 = math.tanh %340 : vector<2x128xf32>
    %342 = arith.negf %340 : vector<2x128xf32>
    %343 = math.exp %342 : vector<2x128xf32>
    %cst_110 = arith.constant 1.000000e+00 : f32
    %344 = vector.broadcast %cst_110 : f32 to vector<2x128xf32>
    %345 = arith.addf %344, %343 : vector<2x128xf32>
    %346 = arith.divf %344, %345 : vector<2x128xf32>
    %347 = arith.select %10, %341, %346 : vector<2x128xi1>, vector<2x128xf32>
    %348 = vector.extract_strided_slice %347 {offsets = [0, 0], sizes = [2, 32], strides = [1, 1]} : vector<2x128xf32> to vector<2x32xf32>
    %349 = vector.extract_strided_slice %347 {offsets = [0, 32], sizes = [2, 32], strides = [1, 1]} : vector<2x128xf32> to vector<2x32xf32>
    %350 = vector.extract_strided_slice %347 {offsets = [0, 64], sizes = [2, 32], strides = [1, 1]} : vector<2x128xf32> to vector<2x32xf32>
    %351 = vector.extract_strided_slice %347 {offsets = [0, 96], sizes = [2, 32], strides = [1, 1]} : vector<2x128xf32> to vector<2x32xf32>
    %352 = arith.mulf %349, %325 : vector<2x32xf32>
    %353 = arith.mulf %348, %350 : vector<2x32xf32>
    %354 = arith.addf %352, %353 : vector<2x32xf32>
    %355 = math.tanh %354 : vector<2x32xf32>
    %356 = arith.mulf %351, %355 : vector<2x32xf32>
    %c0_111 = arith.constant 0 : index
    %357 = arith.index_cast %335 : i32 to index
    %c0_112 = arith.constant 0 : index
    %c0_113 = arith.constant 0 : index
    %358 = vector.load %arg6[%c0_111, %357, %c0_112, %c0_113] : memref<1x16x2x32xf32, #tpu.memory_space<vmem>>, vector<1x1x2x32xf32>
    %359 = vector.shape_cast %358 : vector<1x1x2x32xf32> to vector<2x32xf32>
    %360 = vector.shape_cast %356 : vector<2x32xf32> to vector<1x1x2x32xf32>
    tpu.vector_store %arg6[%c0_111, %357, %c0_112, %c0_113], %360 {strides = array<i32>} : memref<1x16x2x32xf32, #tpu.memory_space<vmem>>, vector<1x1x2x32xf32>,
    %c12_i32 = arith.constant 12 : i32
    %c2_i32_114 = arith.constant 2 : i32
    %361 = arith.muli %c2_i32_114, %c12_i32 : i32
    %c15_i32_115 = arith.constant 15 : i32
    %362 = arith.subi %c15_i32_115, %361 : i32
    %363 = arith.muli %arg0, %362 : i32
    %364 = arith.addi %363, %c12_i32 : i32
    %365 = arith.index_cast %364 : i32 to index
    %c0_116 = arith.constant 0 : index
    %c0_117 = arith.constant 0 : index
    %366 = vector.load %arg2[%365, %c0_116, %c0_117] : memref<16x2x128xf32, #tpu.memory_space<vmem>>, vector<1x2x128xf32>
    %367 = vector.shape_cast %366 : vector<1x2x128xf32> to vector<2x128xf32>
    %cst_118 = arith.constant dense<0.000000e+00> : vector<2x128xf32>
    %368 = tpu.matmul %356, %4, %cst_118 {dimension_numbers = #tpu.dot_dimension_numbers<[1], [0], [0], [1], [0, 0, 1, 1], [], []>} : vector<2x32xf32>, vector<32x128xf32>, vector<2x128xf32> -> vector<2x128xf32>
    %369 = arith.addf %367, %368 : vector<2x128xf32>
    %370 = math.tanh %369 : vector<2x128xf32>
    %371 = arith.negf %369 : vector<2x128xf32>
    %372 = math.exp %371 : vector<2x128xf32>
    %cst_119 = arith.constant 1.000000e+00 : f32
    %373 = vector.broadcast %cst_119 : f32 to vector<2x128xf32>
    %374 = arith.addf %373, %372 : vector<2x128xf32>
    %375 = arith.divf %373, %374 : vector<2x128xf32>
    %376 = arith.select %10, %370, %375 : vector<2x128xi1>, vector<2x128xf32>
    %377 = vector.extract_strided_slice %376 {offsets = [0, 0], sizes = [2, 32], strides = [1, 1]} : vector<2x128xf32> to vector<2x32xf32>
    %378 = vector.extract_strided_slice %376 {offsets = [0, 32], sizes = [2, 32], strides = [1, 1]} : vector<2x128xf32> to vector<2x32xf32>
    %379 = vector.extract_strided_slice %376 {offsets = [0, 64], sizes = [2, 32], strides = [1, 1]} : vector<2x128xf32> to vector<2x32xf32>
    %380 = vector.extract_strided_slice %376 {offsets = [0, 96], sizes = [2, 32], strides = [1, 1]} : vector<2x128xf32> to vector<2x32xf32>
    %381 = arith.mulf %378, %354 : vector<2x32xf32>
    %382 = arith.mulf %377, %379 : vector<2x32xf32>
    %383 = arith.addf %381, %382 : vector<2x32xf32>
    %384 = math.tanh %383 : vector<2x32xf32>
    %385 = arith.mulf %380, %384 : vector<2x32xf32>
    %c0_120 = arith.constant 0 : index
    %386 = arith.index_cast %364 : i32 to index
    %c0_121 = arith.constant 0 : index
    %c0_122 = arith.constant 0 : index
    %387 = vector.load %arg6[%c0_120, %386, %c0_121, %c0_122] : memref<1x16x2x32xf32, #tpu.memory_space<vmem>>, vector<1x1x2x32xf32>
    %388 = vector.shape_cast %387 : vector<1x1x2x32xf32> to vector<2x32xf32>
    %389 = vector.shape_cast %385 : vector<2x32xf32> to vector<1x1x2x32xf32>
    tpu.vector_store %arg6[%c0_120, %386, %c0_121, %c0_122], %389 {strides = array<i32>} : memref<1x16x2x32xf32, #tpu.memory_space<vmem>>, vector<1x1x2x32xf32>,
    %c13_i32 = arith.constant 13 : i32
    %c2_i32_123 = arith.constant 2 : i32
    %390 = arith.muli %c2_i32_123, %c13_i32 : i32
    %c15_i32_124 = arith.constant 15 : i32
    %391 = arith.subi %c15_i32_124, %390 : i32
    %392 = arith.muli %arg0, %391 : i32
    %393 = arith.addi %392, %c13_i32 : i32
    %394 = arith.index_cast %393 : i32 to index
    %c0_125 = arith.constant 0 : index
    %c0_126 = arith.constant 0 : index
    %395 = vector.load %arg2[%394, %c0_125, %c0_126] : memref<16x2x128xf32, #tpu.memory_space<vmem>>, vector<1x2x128xf32>
    %396 = vector.shape_cast %395 : vector<1x2x128xf32> to vector<2x128xf32>
    %cst_127 = arith.constant dense<0.000000e+00> : vector<2x128xf32>
    %397 = tpu.matmul %385, %4, %cst_127 {dimension_numbers = #tpu.dot_dimension_numbers<[1], [0], [0], [1], [0, 0, 1, 1], [], []>} : vector<2x32xf32>, vector<32x128xf32>, vector<2x128xf32> -> vector<2x128xf32>
    %398 = arith.addf %396, %397 : vector<2x128xf32>
    %399 = math.tanh %398 : vector<2x128xf32>
    %400 = arith.negf %398 : vector<2x128xf32>
    %401 = math.exp %400 : vector<2x128xf32>
    %cst_128 = arith.constant 1.000000e+00 : f32
    %402 = vector.broadcast %cst_128 : f32 to vector<2x128xf32>
    %403 = arith.addf %402, %401 : vector<2x128xf32>
    %404 = arith.divf %402, %403 : vector<2x128xf32>
    %405 = arith.select %10, %399, %404 : vector<2x128xi1>, vector<2x128xf32>
    %406 = vector.extract_strided_slice %405 {offsets = [0, 0], sizes = [2, 32], strides = [1, 1]} : vector<2x128xf32> to vector<2x32xf32>
    %407 = vector.extract_strided_slice %405 {offsets = [0, 32], sizes = [2, 32], strides = [1, 1]} : vector<2x128xf32> to vector<2x32xf32>
    %408 = vector.extract_strided_slice %405 {offsets = [0, 64], sizes = [2, 32], strides = [1, 1]} : vector<2x128xf32> to vector<2x32xf32>
    %409 = vector.extract_strided_slice %405 {offsets = [0, 96], sizes = [2, 32], strides = [1, 1]} : vector<2x128xf32> to vector<2x32xf32>
    %410 = arith.mulf %407, %383 : vector<2x32xf32>
    %411 = arith.mulf %406, %408 : vector<2x32xf32>
    %412 = arith.addf %410, %411 : vector<2x32xf32>
    %413 = math.tanh %412 : vector<2x32xf32>
    %414 = arith.mulf %409, %413 : vector<2x32xf32>
    %c0_129 = arith.constant 0 : index
    %415 = arith.index_cast %393 : i32 to index
    %c0_130 = arith.constant 0 : index
    %c0_131 = arith.constant 0 : index
    %416 = vector.load %arg6[%c0_129, %415, %c0_130, %c0_131] : memref<1x16x2x32xf32, #tpu.memory_space<vmem>>, vector<1x1x2x32xf32>
    %417 = vector.shape_cast %416 : vector<1x1x2x32xf32> to vector<2x32xf32>
    %418 = vector.shape_cast %414 : vector<2x32xf32> to vector<1x1x2x32xf32>
    tpu.vector_store %arg6[%c0_129, %415, %c0_130, %c0_131], %418 {strides = array<i32>} : memref<1x16x2x32xf32, #tpu.memory_space<vmem>>, vector<1x1x2x32xf32>,
    %c14_i32 = arith.constant 14 : i32
    %c2_i32_132 = arith.constant 2 : i32
    %419 = arith.muli %c2_i32_132, %c14_i32 : i32
    %c15_i32_133 = arith.constant 15 : i32
    %420 = arith.subi %c15_i32_133, %419 : i32
    %421 = arith.muli %arg0, %420 : i32
    %422 = arith.addi %421, %c14_i32 : i32
    %423 = arith.index_cast %422 : i32 to index
    %c0_134 = arith.constant 0 : index
    %c0_135 = arith.constant 0 : index
    %424 = vector.load %arg2[%423, %c0_134, %c0_135] : memref<16x2x128xf32, #tpu.memory_space<vmem>>, vector<1x2x128xf32>
    %425 = vector.shape_cast %424 : vector<1x2x128xf32> to vector<2x128xf32>
    %cst_136 = arith.constant dense<0.000000e+00> : vector<2x128xf32>
    %426 = tpu.matmul %414, %4, %cst_136 {dimension_numbers = #tpu.dot_dimension_numbers<[1], [0], [0], [1], [0, 0, 1, 1], [], []>} : vector<2x32xf32>, vector<32x128xf32>, vector<2x128xf32> -> vector<2x128xf32>
    %427 = arith.addf %425, %426 : vector<2x128xf32>
    %428 = math.tanh %427 : vector<2x128xf32>
    %429 = arith.negf %427 : vector<2x128xf32>
    %430 = math.exp %429 : vector<2x128xf32>
    %cst_137 = arith.constant 1.000000e+00 : f32
    %431 = vector.broadcast %cst_137 : f32 to vector<2x128xf32>
    %432 = arith.addf %431, %430 : vector<2x128xf32>
    %433 = arith.divf %431, %432 : vector<2x128xf32>
    %434 = arith.select %10, %428, %433 : vector<2x128xi1>, vector<2x128xf32>
    %435 = vector.extract_strided_slice %434 {offsets = [0, 0], sizes = [2, 32], strides = [1, 1]} : vector<2x128xf32> to vector<2x32xf32>
    %436 = vector.extract_strided_slice %434 {offsets = [0, 32], sizes = [2, 32], strides = [1, 1]} : vector<2x128xf32> to vector<2x32xf32>
    %437 = vector.extract_strided_slice %434 {offsets = [0, 64], sizes = [2, 32], strides = [1, 1]} : vector<2x128xf32> to vector<2x32xf32>
    %438 = vector.extract_strided_slice %434 {offsets = [0, 96], sizes = [2, 32], strides = [1, 1]} : vector<2x128xf32> to vector<2x32xf32>
    %439 = arith.mulf %436, %412 : vector<2x32xf32>
    %440 = arith.mulf %435, %437 : vector<2x32xf32>
    %441 = arith.addf %439, %440 : vector<2x32xf32>
    %442 = math.tanh %441 : vector<2x32xf32>
    %443 = arith.mulf %438, %442 : vector<2x32xf32>
    %c0_138 = arith.constant 0 : index
    %444 = arith.index_cast %422 : i32 to index
    %c0_139 = arith.constant 0 : index
    %c0_140 = arith.constant 0 : index
    %445 = vector.load %arg6[%c0_138, %444, %c0_139, %c0_140] : memref<1x16x2x32xf32, #tpu.memory_space<vmem>>, vector<1x1x2x32xf32>
    %446 = vector.shape_cast %445 : vector<1x1x2x32xf32> to vector<2x32xf32>
    %447 = vector.shape_cast %443 : vector<2x32xf32> to vector<1x1x2x32xf32>
    tpu.vector_store %arg6[%c0_138, %444, %c0_139, %c0_140], %447 {strides = array<i32>} : memref<1x16x2x32xf32, #tpu.memory_space<vmem>>, vector<1x1x2x32xf32>,
    %c15_i32_141 = arith.constant 15 : i32
    %c2_i32_142 = arith.constant 2 : i32
    %448 = arith.muli %c2_i32_142, %c15_i32_141 : i32
    %c15_i32_143 = arith.constant 15 : i32
    %449 = arith.subi %c15_i32_143, %448 : i32
    %450 = arith.muli %arg0, %449 : i32
    %451 = arith.addi %450, %c15_i32_141 : i32
    %452 = arith.index_cast %451 : i32 to index
    %c0_144 = arith.constant 0 : index
    %c0_145 = arith.constant 0 : index
    %453 = vector.load %arg2[%452, %c0_144, %c0_145] : memref<16x2x128xf32, #tpu.memory_space<vmem>>, vector<1x2x128xf32>
    %454 = vector.shape_cast %453 : vector<1x2x128xf32> to vector<2x128xf32>
    %cst_146 = arith.constant dense<0.000000e+00> : vector<2x128xf32>
    %455 = tpu.matmul %443, %4, %cst_146 {dimension_numbers = #tpu.dot_dimension_numbers<[1], [0], [0], [1], [0, 0, 1, 1], [], []>} : vector<2x32xf32>, vector<32x128xf32>, vector<2x128xf32> -> vector<2x128xf32>
    %456 = arith.addf %454, %455 : vector<2x128xf32>
    %457 = math.tanh %456 : vector<2x128xf32>
    %458 = arith.negf %456 : vector<2x128xf32>
    %459 = math.exp %458 : vector<2x128xf32>
    %cst_147 = arith.constant 1.000000e+00 : f32
    %460 = vector.broadcast %cst_147 : f32 to vector<2x128xf32>
    %461 = arith.addf %460, %459 : vector<2x128xf32>
    %462 = arith.divf %460, %461 : vector<2x128xf32>
    %463 = arith.select %10, %457, %462 : vector<2x128xi1>, vector<2x128xf32>
    %464 = vector.extract_strided_slice %463 {offsets = [0, 0], sizes = [2, 32], strides = [1, 1]} : vector<2x128xf32> to vector<2x32xf32>
    %465 = vector.extract_strided_slice %463 {offsets = [0, 32], sizes = [2, 32], strides = [1, 1]} : vector<2x128xf32> to vector<2x32xf32>
    %466 = vector.extract_strided_slice %463 {offsets = [0, 64], sizes = [2, 32], strides = [1, 1]} : vector<2x128xf32> to vector<2x32xf32>
    %467 = vector.extract_strided_slice %463 {offsets = [0, 96], sizes = [2, 32], strides = [1, 1]} : vector<2x128xf32> to vector<2x32xf32>
    %468 = arith.mulf %465, %441 : vector<2x32xf32>
    %469 = arith.mulf %464, %466 : vector<2x32xf32>
    %470 = arith.addf %468, %469 : vector<2x32xf32>
    %471 = math.tanh %470 : vector<2x32xf32>
    %472 = arith.mulf %467, %471 : vector<2x32xf32>
    %c0_148 = arith.constant 0 : index
    %473 = arith.index_cast %451 : i32 to index
    %c0_149 = arith.constant 0 : index
    %c0_150 = arith.constant 0 : index
    %474 = vector.load %arg6[%c0_148, %473, %c0_149, %c0_150] : memref<1x16x2x32xf32, #tpu.memory_space<vmem>>, vector<1x1x2x32xf32>
    %475 = vector.shape_cast %474 : vector<1x1x2x32xf32> to vector<2x32xf32>
    %476 = vector.shape_cast %472 : vector<2x32xf32> to vector<1x1x2x32xf32>
    tpu.vector_store %arg6[%c0_148, %473, %c0_149, %c0_150], %476 {strides = array<i32>} : memref<1x16x2x32xf32, #tpu.memory_space<vmem>>, vector<1x1x2x32xf32>,
    %c16_i32 = arith.constant 16 : i32
    %c0_151 = arith.constant 0 : index
    %c0_152 = arith.constant 0 : index
    %477 = vector.load %arg9[%c0_151, %c0_152] : memref<2x32xf32, #tpu.memory_space<vmem>>, vector<2x32xf32>
    tpu.vector_store %arg9[%c0_151, %c0_152], %472 {strides = array<i32>} : memref<2x32xf32, #tpu.memory_space<vmem>>, vector<2x32xf32>,
    %c0_153 = arith.constant 0 : index
    %c0_154 = arith.constant 0 : index
    %478 = vector.load %arg10[%c0_153, %c0_154] : memref<2x32xf32, #tpu.memory_space<vmem>>, vector<2x32xf32>
    tpu.vector_store %arg10[%c0_153, %c0_154], %470 {strides = array<i32>} : memref<2x32xf32, #tpu.memory_space<vmem>>, vector<2x32xf32>,
    %c0_i32_155 = arith.constant 0 : i32
    %479 = arith.cmpi eq, %arg1, %c0_i32_155 : i32
    %480 = arith.extui %479 : i1 to i32
    %c0_i32_156 = arith.constant 0 : i32
    %481 = arith.cmpi ne, %480, %c0_i32_156 : i32
    scf.if %481 {
      %c0_157 = arith.constant 0 : index
      %c0_158 = arith.constant 0 : index
      %c0_159 = arith.constant 0 : index
      %482 = vector.load %arg7[%c0_157, %c0_158, %c0_159] : memref<1x2x32xf32, #tpu.memory_space<vmem>>, vector<1x2x32xf32>
      %483 = vector.shape_cast %482 : vector<1x2x32xf32> to vector<2x32xf32>
      %484 = vector.shape_cast %472 : vector<2x32xf32> to vector<1x2x32xf32>
      tpu.vector_store %arg7[%c0_157, %c0_158, %c0_159], %484 {strides = array<i32>} : memref<1x2x32xf32, #tpu.memory_space<vmem>>, vector<1x2x32xf32>,
      %c0_160 = arith.constant 0 : index
      %c0_161 = arith.constant 0 : index
      %c0_162 = arith.constant 0 : index
      %485 = vector.load %arg8[%c0_160, %c0_161, %c0_162] : memref<1x2x32xf32, #tpu.memory_space<vmem>>, vector<1x2x32xf32>
      %486 = vector.shape_cast %485 : vector<1x2x32xf32> to vector<2x32xf32>
      %487 = vector.shape_cast %470 : vector<2x32xf32> to vector<1x2x32xf32>
      tpu.vector_store %arg8[%c0_160, %c0_161, %c0_162], %487 {strides = array<i32>} : memref<1x2x32xf32, #tpu.memory_space<vmem>>, vector<1x2x32xf32>,
    } else {
    }
    return
  }
  func.func @transform_0(%arg0: i32, %arg1: i32) -> (i32, i32, i32) {
    %c1_i32 = arith.constant 1 : i32
    %0 = arith.subi %c1_i32, %arg0 : i32
    %1 = arith.muli %0, %arg1 : i32
    %c0_i32 = arith.constant 0 : i32
    %2 = arith.subi %c0_i32, %arg1 : i32
    %3 = arith.muli %arg0, %2 : i32
    %4 = arith.addi %1, %3 : i32
    %c0_i32_0 = arith.constant 0 : i32
    %c0_i32_1 = arith.constant 0 : i32
    return %4, %c0_i32_0, %arg0 : i32, i32, i32
  }
  func.func @transform_1(%arg0: i32, %arg1: i32) -> (i32, i32, i32) {
    %c0_i32 = arith.constant 0 : i32
    %c0_i32_0 = arith.constant 0 : i32
    %c0_i32_1 = arith.constant 0 : i32
    return %arg0, %c0_i32, %c0_i32_0 : i32, i32, i32
  }
  func.func @transform_2(%arg0: i32, %arg1: i32) -> (i32, i32, i32) {
    %c0_i32 = arith.constant 0 : i32
    %c0_i32_0 = arith.constant 0 : i32
    %c0_i32_1 = arith.constant 0 : i32
    return %arg0, %c0_i32, %c0_i32_0 : i32, i32, i32
  }
  func.func @transform_3(%arg0: i32, %arg1: i32) -> (i32, i32, i32) {
    %c0_i32 = arith.constant 0 : i32
    %c0_i32_0 = arith.constant 0 : i32
    %c0_i32_1 = arith.constant 0 : i32
    return %arg0, %c0_i32, %c0_i32_0 : i32, i32, i32
  }
  func.func @transform_4(%arg0: i32, %arg1: i32) -> (i32, i32, i32, i32) {
    %c1_i32 = arith.constant 1 : i32
    %0 = arith.subi %c1_i32, %arg0 : i32
    %1 = arith.muli %0, %arg1 : i32
    %c0_i32 = arith.constant 0 : i32
    %2 = arith.subi %c0_i32, %arg1 : i32
    %3 = arith.muli %arg0, %2 : i32
    %4 = arith.addi %1, %3 : i32
    %c0_i32_0 = arith.constant 0 : i32
    %c0_i32_1 = arith.constant 0 : i32
    %c0_i32_2 = arith.constant 0 : i32
    return %arg0, %4, %c0_i32_0, %c0_i32_1 : i32, i32, i32, i32
  }
  func.func @transform_5(%arg0: i32, %arg1: i32) -> (i32, i32, i32) {
    %c0_i32 = arith.constant 0 : i32
    %c0_i32_0 = arith.constant 0 : i32
    %c0_i32_1 = arith.constant 0 : i32
    return %arg0, %c0_i32, %c0_i32_0 : i32, i32, i32
  }
  func.func @transform_6(%arg0: i32, %arg1: i32) -> (i32, i32, i32) {
    %c0_i32 = arith.constant 0 : i32
    %c0_i32_0 = arith.constant 0 : i32
    %c0_i32_1 = arith.constant 0 : i32
    return %arg0, %c0_i32, %c0_i32_0 : i32, i32, i32
  }
}

module attributes {stable_mosaic.version = 11 : i64} {
  func.func @_dense_stack_gates_kernel(%arg0: i32, %arg1: memref<32x56xf32, #tpu.memory_space<vmem>>, %arg2: memref<56x64xf32, #tpu.memory_space<vmem>>, %arg3: memref<1x64xf32, #tpu.memory_space<vmem>>, %arg4: memref<1x64xf32, #tpu.memory_space<vmem>>, %arg5: memref<1x64xf32, #tpu.memory_space<vmem>>, %arg6: memref<64x64xf32, #tpu.memory_space<vmem>>, %arg7: memref<1x64xf32, #tpu.memory_space<vmem>>, %arg8: memref<1x64xf32, #tpu.memory_space<vmem>>, %arg9: memref<1x64xf32, #tpu.memory_space<vmem>>, %arg10: memref<64x64xf32, #tpu.memory_space<vmem>>, %arg11: memref<1x64xf32, #tpu.memory_space<vmem>>, %arg12: memref<1x64xf32, #tpu.memory_space<vmem>>, %arg13: memref<1x64xf32, #tpu.memory_space<vmem>>, %arg14: memref<64x256xf32, #tpu.memory_space<vmem>>, %arg15: memref<1x256xf32, #tpu.memory_space<vmem>>, %arg16: memref<32x256xf32, #tpu.memory_space<vmem>>) attributes {dimension_semantics = [#tpu.dimension_semantics<parallel>], iteration_bounds = array<i64: 1>, scalar_prefetch = 0 : i64, scratch_operands = 0 : i64, tpu.core_type = #tpu.core_type<tc>, window_params = [{transform_indices = @transform_0, window_bounds = array<i64: 32, 56>}, {pipeline_mode = #tpu.pipeline_mode<synchronous>, transform_indices = @transform_1, window_bounds = array<i64: 56, 64>}, {pipeline_mode = #tpu.pipeline_mode<synchronous>, transform_indices = @transform_2, window_bounds = array<i64: 1, 64>}, {pipeline_mode = #tpu.pipeline_mode<synchronous>, transform_indices = @transform_3, window_bounds = array<i64: 1, 64>}, {pipeline_mode = #tpu.pipeline_mode<synchronous>, transform_indices = @transform_4, window_bounds = array<i64: 1, 64>}, {pipeline_mode = #tpu.pipeline_mode<synchronous>, transform_indices = @transform_5, window_bounds = array<i64: 64, 64>}, {pipeline_mode = #tpu.pipeline_mode<synchronous>, transform_indices = @transform_6, window_bounds = array<i64: 1, 64>}, {pipeline_mode = #tpu.pipeline_mode<synchronous>, transform_indices = @transform_7, window_bounds = array<i64: 1, 64>}, {pipeline_mode = #tpu.pipeline_mode<synchronous>, transform_indices = @transform_8, window_bounds = array<i64: 1, 64>}, {pipeline_mode = #tpu.pipeline_mode<synchronous>, transform_indices = @transform_9, window_bounds = array<i64: 64, 64>}, {pipeline_mode = #tpu.pipeline_mode<synchronous>, transform_indices = @transform_10, window_bounds = array<i64: 1, 64>}, {pipeline_mode = #tpu.pipeline_mode<synchronous>, transform_indices = @transform_11, window_bounds = array<i64: 1, 64>}, {pipeline_mode = #tpu.pipeline_mode<synchronous>, transform_indices = @transform_12, window_bounds = array<i64: 1, 64>}, {pipeline_mode = #tpu.pipeline_mode<synchronous>, transform_indices = @transform_13, window_bounds = array<i64: 64, 256>}, {pipeline_mode = #tpu.pipeline_mode<synchronous>, transform_indices = @transform_14, window_bounds = array<i64: 1, 256>}, {transform_indices = @transform_15, window_bounds = array<i64: 32, 256>}]} {
    %c0 = arith.constant 0 : index
    %c0_0 = arith.constant 0 : index
    %0 = vector.load %arg1[%c0, %c0_0] : memref<32x56xf32, #tpu.memory_space<vmem>>, vector<32x56xf32>
    %c0_1 = arith.constant 0 : index
    %c0_2 = arith.constant 0 : index
    %1 = vector.load %arg2[%c0_1, %c0_2] : memref<56x64xf32, #tpu.memory_space<vmem>>, vector<56x64xf32>
    %cst = arith.constant dense<0.000000e+00> : vector<32x64xf32>
    %2 = tpu.matmul %0, %1, %cst {dimension_numbers = #tpu.dot_dimension_numbers<[1], [0], [0], [1], [0, 0, 1, 1], [], []>} : vector<32x56xf32>, vector<56x64xf32>, vector<32x64xf32> -> vector<32x64xf32>
    %c0_3 = arith.constant 0 : index
    %c0_4 = arith.constant 0 : index
    %3 = vector.load %arg3[%c0_3, %c0_4] : memref<1x64xf32, #tpu.memory_space<vmem>>, vector<1x64xf32>
    %4 = vector.broadcast %3 : vector<1x64xf32> to vector<32x64xf32>
    %5 = arith.addf %2, %4 : vector<32x64xf32>
    %c0_5 = arith.constant 0 : index
    %c0_6 = arith.constant 0 : index
    %6 = vector.load %arg4[%c0_5, %c0_6] : memref<1x64xf32, #tpu.memory_space<vmem>>, vector<1x64xf32>
    %c0_7 = arith.constant 0 : index
    %c0_8 = arith.constant 0 : index
    %7 = vector.load %arg5[%c0_7, %c0_8] : memref<1x64xf32, #tpu.memory_space<vmem>>, vector<1x64xf32>
    %cst_9 = arith.constant dense<0.000000e+00> : vector<32xf32>
    %8 = vector.multi_reduction <add>, %5, %cst_9 [1] : vector<32x64xf32> to vector<32xf32>
    %9 = vector.shape_cast %8 : vector<32xf32> to vector<32x1xf32>
    %cst_10 = arith.constant 6.400000e+01 : f32
    %10 = vector.broadcast %cst_10 : f32 to vector<32x1xf32>
    %11 = arith.divf %9, %10 : vector<32x1xf32>
    %12 = vector.broadcast %11 : vector<32x1xf32> to vector<32x64xf32>
    %13 = arith.subf %5, %12 : vector<32x64xf32>
    %14 = arith.mulf %13, %13 : vector<32x64xf32>
    %cst_11 = arith.constant dense<0.000000e+00> : vector<32xf32>
    %15 = vector.multi_reduction <add>, %14, %cst_11 [1] : vector<32x64xf32> to vector<32xf32>
    %16 = vector.shape_cast %15 : vector<32xf32> to vector<32x1xf32>
    %cst_12 = arith.constant 6.400000e+01 : f32
    %17 = vector.broadcast %cst_12 : f32 to vector<32x1xf32>
    %18 = arith.divf %16, %17 : vector<32x1xf32>
    %19 = vector.broadcast %11 : vector<32x1xf32> to vector<32x64xf32>
    %20 = arith.subf %5, %19 : vector<32x64xf32>
    %cst_13 = arith.constant 9.99999974E-6 : f32
    %21 = vector.broadcast %cst_13 : f32 to vector<32x1xf32>
    %22 = arith.addf %18, %21 : vector<32x1xf32>
    %23 = math.rsqrt %22 : vector<32x1xf32>
    %24 = vector.broadcast %23 : vector<32x1xf32> to vector<32x64xf32>
    %25 = arith.mulf %20, %24 : vector<32x64xf32>
    %26 = vector.broadcast %6 : vector<1x64xf32> to vector<32x64xf32>
    %27 = arith.mulf %25, %26 : vector<32x64xf32>
    %28 = vector.broadcast %7 : vector<1x64xf32> to vector<32x64xf32>
    %29 = arith.addf %27, %28 : vector<32x64xf32>
    %c0_14 = arith.constant 0 : index
    %c0_15 = arith.constant 0 : index
    %30 = vector.load %arg6[%c0_14, %c0_15] : memref<64x64xf32, #tpu.memory_space<vmem>>, vector<64x64xf32>
    %cst_16 = arith.constant dense<0.000000e+00> : vector<32x64xf32>
    %31 = tpu.matmul %29, %30, %cst_16 {dimension_numbers = #tpu.dot_dimension_numbers<[1], [0], [0], [1], [0, 0, 1, 1], [], []>} : vector<32x64xf32>, vector<64x64xf32>, vector<32x64xf32> -> vector<32x64xf32>
    %c0_17 = arith.constant 0 : index
    %c0_18 = arith.constant 0 : index
    %32 = vector.load %arg7[%c0_17, %c0_18] : memref<1x64xf32, #tpu.memory_space<vmem>>, vector<1x64xf32>
    %33 = vector.broadcast %32 : vector<1x64xf32> to vector<32x64xf32>
    %34 = arith.addf %31, %33 : vector<32x64xf32>
    %c0_19 = arith.constant 0 : index
    %c0_20 = arith.constant 0 : index
    %35 = vector.load %arg8[%c0_19, %c0_20] : memref<1x64xf32, #tpu.memory_space<vmem>>, vector<1x64xf32>
    %c0_21 = arith.constant 0 : index
    %c0_22 = arith.constant 0 : index
    %36 = vector.load %arg9[%c0_21, %c0_22] : memref<1x64xf32, #tpu.memory_space<vmem>>, vector<1x64xf32>
    %cst_23 = arith.constant dense<0.000000e+00> : vector<32xf32>
    %37 = vector.multi_reduction <add>, %34, %cst_23 [1] : vector<32x64xf32> to vector<32xf32>
    %38 = vector.shape_cast %37 : vector<32xf32> to vector<32x1xf32>
    %cst_24 = arith.constant 6.400000e+01 : f32
    %39 = vector.broadcast %cst_24 : f32 to vector<32x1xf32>
    %40 = arith.divf %38, %39 : vector<32x1xf32>
    %41 = vector.broadcast %40 : vector<32x1xf32> to vector<32x64xf32>
    %42 = arith.subf %34, %41 : vector<32x64xf32>
    %43 = arith.mulf %42, %42 : vector<32x64xf32>
    %cst_25 = arith.constant dense<0.000000e+00> : vector<32xf32>
    %44 = vector.multi_reduction <add>, %43, %cst_25 [1] : vector<32x64xf32> to vector<32xf32>
    %45 = vector.shape_cast %44 : vector<32xf32> to vector<32x1xf32>
    %cst_26 = arith.constant 6.400000e+01 : f32
    %46 = vector.broadcast %cst_26 : f32 to vector<32x1xf32>
    %47 = arith.divf %45, %46 : vector<32x1xf32>
    %48 = vector.broadcast %40 : vector<32x1xf32> to vector<32x64xf32>
    %49 = arith.subf %34, %48 : vector<32x64xf32>
    %cst_27 = arith.constant 9.99999974E-6 : f32
    %50 = vector.broadcast %cst_27 : f32 to vector<32x1xf32>
    %51 = arith.addf %47, %50 : vector<32x1xf32>
    %52 = math.rsqrt %51 : vector<32x1xf32>
    %53 = vector.broadcast %52 : vector<32x1xf32> to vector<32x64xf32>
    %54 = arith.mulf %49, %53 : vector<32x64xf32>
    %55 = vector.broadcast %35 : vector<1x64xf32> to vector<32x64xf32>
    %56 = arith.mulf %54, %55 : vector<32x64xf32>
    %57 = vector.broadcast %36 : vector<1x64xf32> to vector<32x64xf32>
    %58 = arith.addf %56, %57 : vector<32x64xf32>
    %cst_28 = arith.constant 0.000000e+00 : f32
    %59 = vector.broadcast %cst_28 : f32 to vector<32x64xf32>
    %60 = arith.maximumf %58, %59 : vector<32x64xf32>
    %c0_29 = arith.constant 0 : index
    %c0_30 = arith.constant 0 : index
    %61 = vector.load %arg10[%c0_29, %c0_30] : memref<64x64xf32, #tpu.memory_space<vmem>>, vector<64x64xf32>
    %cst_31 = arith.constant dense<0.000000e+00> : vector<32x64xf32>
    %62 = tpu.matmul %60, %61, %cst_31 {dimension_numbers = #tpu.dot_dimension_numbers<[1], [0], [0], [1], [0, 0, 1, 1], [], []>} : vector<32x64xf32>, vector<64x64xf32>, vector<32x64xf32> -> vector<32x64xf32>
    %c0_32 = arith.constant 0 : index
    %c0_33 = arith.constant 0 : index
    %63 = vector.load %arg11[%c0_32, %c0_33] : memref<1x64xf32, #tpu.memory_space<vmem>>, vector<1x64xf32>
    %64 = vector.broadcast %63 : vector<1x64xf32> to vector<32x64xf32>
    %65 = arith.addf %62, %64 : vector<32x64xf32>
    %c0_34 = arith.constant 0 : index
    %c0_35 = arith.constant 0 : index
    %66 = vector.load %arg12[%c0_34, %c0_35] : memref<1x64xf32, #tpu.memory_space<vmem>>, vector<1x64xf32>
    %c0_36 = arith.constant 0 : index
    %c0_37 = arith.constant 0 : index
    %67 = vector.load %arg13[%c0_36, %c0_37] : memref<1x64xf32, #tpu.memory_space<vmem>>, vector<1x64xf32>
    %cst_38 = arith.constant dense<0.000000e+00> : vector<32xf32>
    %68 = vector.multi_reduction <add>, %65, %cst_38 [1] : vector<32x64xf32> to vector<32xf32>
    %69 = vector.shape_cast %68 : vector<32xf32> to vector<32x1xf32>
    %cst_39 = arith.constant 6.400000e+01 : f32
    %70 = vector.broadcast %cst_39 : f32 to vector<32x1xf32>
    %71 = arith.divf %69, %70 : vector<32x1xf32>
    %72 = vector.broadcast %71 : vector<32x1xf32> to vector<32x64xf32>
    %73 = arith.subf %65, %72 : vector<32x64xf32>
    %74 = arith.mulf %73, %73 : vector<32x64xf32>
    %cst_40 = arith.constant dense<0.000000e+00> : vector<32xf32>
    %75 = vector.multi_reduction <add>, %74, %cst_40 [1] : vector<32x64xf32> to vector<32xf32>
    %76 = vector.shape_cast %75 : vector<32xf32> to vector<32x1xf32>
    %cst_41 = arith.constant 6.400000e+01 : f32
    %77 = vector.broadcast %cst_41 : f32 to vector<32x1xf32>
    %78 = arith.divf %76, %77 : vector<32x1xf32>
    %79 = vector.broadcast %71 : vector<32x1xf32> to vector<32x64xf32>
    %80 = arith.subf %65, %79 : vector<32x64xf32>
    %cst_42 = arith.constant 9.99999974E-6 : f32
    %81 = vector.broadcast %cst_42 : f32 to vector<32x1xf32>
    %82 = arith.addf %78, %81 : vector<32x1xf32>
    %83 = math.rsqrt %82 : vector<32x1xf32>
    %84 = vector.broadcast %83 : vector<32x1xf32> to vector<32x64xf32>
    %85 = arith.mulf %80, %84 : vector<32x64xf32>
    %86 = vector.broadcast %66 : vector<1x64xf32> to vector<32x64xf32>
    %87 = arith.mulf %85, %86 : vector<32x64xf32>
    %88 = vector.broadcast %67 : vector<1x64xf32> to vector<32x64xf32>
    %89 = arith.addf %87, %88 : vector<32x64xf32>
    %cst_43 = arith.constant 0.000000e+00 : f32
    %90 = vector.broadcast %cst_43 : f32 to vector<32x64xf32>
    %91 = arith.maximumf %89, %90 : vector<32x64xf32>
    %c0_44 = arith.constant 0 : index
    %c0_45 = arith.constant 0 : index
    %92 = vector.load %arg14[%c0_44, %c0_45] : memref<64x256xf32, #tpu.memory_space<vmem>>, vector<64x256xf32>
    %cst_46 = arith.constant dense<0.000000e+00> : vector<32x256xf32>
    %93 = tpu.matmul %91, %92, %cst_46 {dimension_numbers = #tpu.dot_dimension_numbers<[1], [0], [0], [1], [0, 0, 1, 1], [], []>} : vector<32x64xf32>, vector<64x256xf32>, vector<32x256xf32> -> vector<32x256xf32>
    %c0_47 = arith.constant 0 : index
    %c0_48 = arith.constant 0 : index
    %94 = vector.load %arg15[%c0_47, %c0_48] : memref<1x256xf32, #tpu.memory_space<vmem>>, vector<1x256xf32>
    %95 = vector.broadcast %94 : vector<1x256xf32> to vector<32x256xf32>
    %96 = arith.addf %93, %95 : vector<32x256xf32>
    %c0_49 = arith.constant 0 : index
    %c0_50 = arith.constant 0 : index
    %97 = vector.load %arg16[%c0_49, %c0_50] : memref<32x256xf32, #tpu.memory_space<vmem>>, vector<32x256xf32>
    tpu.vector_store %arg16[%c0_49, %c0_50], %96 {strides = array<i32>} : memref<32x256xf32, #tpu.memory_space<vmem>>, vector<32x256xf32>,
    return
  }
  func.func @transform_0(%arg0: i32) -> (i32, i32) {
    %c0_i32 = arith.constant 0 : i32
    %c0_i32_0 = arith.constant 0 : i32
    return %arg0, %c0_i32 : i32, i32
  }
  func.func @transform_1(%arg0: i32) -> (i32, i32) {
    %c0_i32 = arith.constant 0 : i32
    %c0_i32_0 = arith.constant 0 : i32
    %c0_i32_1 = arith.constant 0 : i32
    return %c0_i32, %c0_i32_0 : i32, i32
  }
  func.func @transform_2(%arg0: i32) -> (i32, i32) {
    %c0_i32 = arith.constant 0 : i32
    %c0_i32_0 = arith.constant 0 : i32
    %c0_i32_1 = arith.constant 0 : i32
    return %c0_i32, %c0_i32_0 : i32, i32
  }
  func.func @transform_3(%arg0: i32) -> (i32, i32) {
    %c0_i32 = arith.constant 0 : i32
    %c0_i32_0 = arith.constant 0 : i32
    %c0_i32_1 = arith.constant 0 : i32
    return %c0_i32, %c0_i32_0 : i32, i32
  }
  func.func @transform_4(%arg0: i32) -> (i32, i32) {
    %c0_i32 = arith.constant 0 : i32
    %c0_i32_0 = arith.constant 0 : i32
    %c0_i32_1 = arith.constant 0 : i32
    return %c0_i32, %c0_i32_0 : i32, i32
  }
  func.func @transform_5(%arg0: i32) -> (i32, i32) {
    %c0_i32 = arith.constant 0 : i32
    %c0_i32_0 = arith.constant 0 : i32
    %c0_i32_1 = arith.constant 0 : i32
    return %c0_i32, %c0_i32_0 : i32, i32
  }
  func.func @transform_6(%arg0: i32) -> (i32, i32) {
    %c0_i32 = arith.constant 0 : i32
    %c0_i32_0 = arith.constant 0 : i32
    %c0_i32_1 = arith.constant 0 : i32
    return %c0_i32, %c0_i32_0 : i32, i32
  }
  func.func @transform_7(%arg0: i32) -> (i32, i32) {
    %c0_i32 = arith.constant 0 : i32
    %c0_i32_0 = arith.constant 0 : i32
    %c0_i32_1 = arith.constant 0 : i32
    return %c0_i32, %c0_i32_0 : i32, i32
  }
  func.func @transform_8(%arg0: i32) -> (i32, i32) {
    %c0_i32 = arith.constant 0 : i32
    %c0_i32_0 = arith.constant 0 : i32
    %c0_i32_1 = arith.constant 0 : i32
    return %c0_i32, %c0_i32_0 : i32, i32
  }
  func.func @transform_9(%arg0: i32) -> (i32, i32) {
    %c0_i32 = arith.constant 0 : i32
    %c0_i32_0 = arith.constant 0 : i32
    %c0_i32_1 = arith.constant 0 : i32
    return %c0_i32, %c0_i32_0 : i32, i32
  }
  func.func @transform_10(%arg0: i32) -> (i32, i32) {
    %c0_i32 = arith.constant 0 : i32
    %c0_i32_0 = arith.constant 0 : i32
    %c0_i32_1 = arith.constant 0 : i32
    return %c0_i32, %c0_i32_0 : i32, i32
  }
  func.func @transform_11(%arg0: i32) -> (i32, i32) {
    %c0_i32 = arith.constant 0 : i32
    %c0_i32_0 = arith.constant 0 : i32
    %c0_i32_1 = arith.constant 0 : i32
    return %c0_i32, %c0_i32_0 : i32, i32
  }
  func.func @transform_12(%arg0: i32) -> (i32, i32) {
    %c0_i32 = arith.constant 0 : i32
    %c0_i32_0 = arith.constant 0 : i32
    %c0_i32_1 = arith.constant 0 : i32
    return %c0_i32, %c0_i32_0 : i32, i32
  }
  func.func @transform_13(%arg0: i32) -> (i32, i32) {
    %c0_i32 = arith.constant 0 : i32
    %c0_i32_0 = arith.constant 0 : i32
    %c0_i32_1 = arith.constant 0 : i32
    return %c0_i32, %c0_i32_0 : i32, i32
  }
  func.func @transform_14(%arg0: i32) -> (i32, i32) {
    %c0_i32 = arith.constant 0 : i32
    %c0_i32_0 = arith.constant 0 : i32
    %c0_i32_1 = arith.constant 0 : i32
    return %c0_i32, %c0_i32_0 : i32, i32
  }
  func.func @transform_15(%arg0: i32) -> (i32, i32) {
    %c0_i32 = arith.constant 0 : i32
    %c0_i32_0 = arith.constant 0 : i32
    return %arg0, %c0_i32 : i32, i32
  }
}

module attributes {stable_mosaic.version = 11 : i64} {
  func.func @_dir_gates_kernel(%arg0: i32, %arg1: memref<32x32xf32, #tpu.memory_space<vmem>>, %arg2: memref<32x32xf32, #tpu.memory_space<vmem>>, %arg3: memref<32x256xf32, #tpu.memory_space<vmem>>, %arg4: memref<32x256xf32, #tpu.memory_space<vmem>>, %arg5: memref<1x256xf32, #tpu.memory_space<vmem>>, %arg6: memref<32x256xf32, #tpu.memory_space<vmem>>) attributes {dimension_semantics = [#tpu.dimension_semantics<parallel>], iteration_bounds = array<i64: 1>, scalar_prefetch = 0 : i64, scratch_operands = 0 : i64, tpu.core_type = #tpu.core_type<tc>, window_params = [{transform_indices = @transform_0, window_bounds = array<i64: 32, 32>}, {transform_indices = @transform_1, window_bounds = array<i64: 32, 32>}, {pipeline_mode = #tpu.pipeline_mode<synchronous>, transform_indices = @transform_2, window_bounds = array<i64: 32, 256>}, {pipeline_mode = #tpu.pipeline_mode<synchronous>, transform_indices = @transform_3, window_bounds = array<i64: 32, 256>}, {pipeline_mode = #tpu.pipeline_mode<synchronous>, transform_indices = @transform_4, window_bounds = array<i64: 1, 256>}, {transform_indices = @transform_5, window_bounds = array<i64: 32, 256>}]} {
    %c0 = arith.constant 0 : index
    %c0_0 = arith.constant 0 : index
    %0 = vector.load %arg1[%c0, %c0_0] : memref<32x32xf32, #tpu.memory_space<vmem>>, vector<32x32xf32>
    %c0_1 = arith.constant 0 : index
    %c0_2 = arith.constant 0 : index
    %1 = vector.load %arg3[%c0_1, %c0_2] : memref<32x256xf32, #tpu.memory_space<vmem>>, vector<32x256xf32>
    %cst = arith.constant dense<0.000000e+00> : vector<32x256xf32>
    %2 = tpu.matmul %0, %1, %cst {dimension_numbers = #tpu.dot_dimension_numbers<[1], [0], [0], [1], [0, 0, 1, 1], [], []>} : vector<32x32xf32>, vector<32x256xf32>, vector<32x256xf32> -> vector<32x256xf32>
    %c0_3 = arith.constant 0 : index
    %c0_4 = arith.constant 0 : index
    %3 = vector.load %arg2[%c0_3, %c0_4] : memref<32x32xf32, #tpu.memory_space<vmem>>, vector<32x32xf32>
    %c0_5 = arith.constant 0 : index
    %c0_6 = arith.constant 0 : index
    %4 = vector.load %arg4[%c0_5, %c0_6] : memref<32x256xf32, #tpu.memory_space<vmem>>, vector<32x256xf32>
    %cst_7 = arith.constant dense<0.000000e+00> : vector<32x256xf32>
    %5 = tpu.matmul %3, %4, %cst_7 {dimension_numbers = #tpu.dot_dimension_numbers<[1], [0], [0], [1], [0, 0, 1, 1], [], []>} : vector<32x32xf32>, vector<32x256xf32>, vector<32x256xf32> -> vector<32x256xf32>
    %6 = arith.addf %2, %5 : vector<32x256xf32>
    %c0_8 = arith.constant 0 : index
    %c0_9 = arith.constant 0 : index
    %7 = vector.load %arg5[%c0_8, %c0_9] : memref<1x256xf32, #tpu.memory_space<vmem>>, vector<1x256xf32>
    %8 = vector.broadcast %7 : vector<1x256xf32> to vector<32x256xf32>
    %9 = arith.addf %6, %8 : vector<32x256xf32>
    %c0_10 = arith.constant 0 : index
    %c0_11 = arith.constant 0 : index
    %10 = vector.load %arg6[%c0_10, %c0_11] : memref<32x256xf32, #tpu.memory_space<vmem>>, vector<32x256xf32>
    tpu.vector_store %arg6[%c0_10, %c0_11], %9 {strides = array<i32>} : memref<32x256xf32, #tpu.memory_space<vmem>>, vector<32x256xf32>,
    return
  }
  func.func @transform_0(%arg0: i32) -> (i32, i32) {
    %c0_i32 = arith.constant 0 : i32
    %c0_i32_0 = arith.constant 0 : i32
    return %arg0, %c0_i32 : i32, i32
  }
  func.func @transform_1(%arg0: i32) -> (i32, i32) {
    %c0_i32 = arith.constant 0 : i32
    %c0_i32_0 = arith.constant 0 : i32
    return %arg0, %c0_i32 : i32, i32
  }
  func.func @transform_2(%arg0: i32) -> (i32, i32) {
    %c0_i32 = arith.constant 0 : i32
    %c0_i32_0 = arith.constant 0 : i32
    %c0_i32_1 = arith.constant 0 : i32
    return %c0_i32, %c0_i32_0 : i32, i32
  }
  func.func @transform_3(%arg0: i32) -> (i32, i32) {
    %c0_i32 = arith.constant 0 : i32
    %c0_i32_0 = arith.constant 0 : i32
    %c0_i32_1 = arith.constant 0 : i32
    return %c0_i32, %c0_i32_0 : i32, i32
  }
  func.func @transform_4(%arg0: i32) -> (i32, i32) {
    %c0_i32 = arith.constant 0 : i32
    %c0_i32_0 = arith.constant 0 : i32
    %c0_i32_1 = arith.constant 0 : i32
    return %c0_i32, %c0_i32_0 : i32, i32
  }
  func.func @transform_5(%arg0: i32) -> (i32, i32) {
    %c0_i32 = arith.constant 0 : i32
    %c0_i32_0 = arith.constant 0 : i32
    return %arg0, %c0_i32 : i32, i32
  }
}

module attributes {stable_mosaic.version = 11 : i64} {
  func.func @_head_kernel(%arg0: i32, %arg1: memref<32x32xf32, #tpu.memory_space<vmem>>, %arg2: memref<32x32xf32, #tpu.memory_space<vmem>>, %arg3: memref<1x32xf32, #tpu.memory_space<vmem>>, %arg4: memref<1x32xf32, #tpu.memory_space<vmem>>, %arg5: memref<1x32xf32, #tpu.memory_space<vmem>>, %arg6: memref<1x32xf32, #tpu.memory_space<vmem>>, %arg7: memref<32x128xf32, #tpu.memory_space<vmem>>, %arg8: memref<32x128xf32, #tpu.memory_space<vmem>>, %arg9: memref<1x128xf32, #tpu.memory_space<vmem>>, %arg10: memref<32x128xf32, #tpu.memory_space<vmem>>) attributes {dimension_semantics = [#tpu.dimension_semantics<parallel>], iteration_bounds = array<i64: 1>, scalar_prefetch = 0 : i64, scratch_operands = 0 : i64, tpu.core_type = #tpu.core_type<tc>, window_params = [{transform_indices = @transform_0, window_bounds = array<i64: 32, 32>}, {transform_indices = @transform_1, window_bounds = array<i64: 32, 32>}, {pipeline_mode = #tpu.pipeline_mode<synchronous>, transform_indices = @transform_2, window_bounds = array<i64: 1, 32>}, {pipeline_mode = #tpu.pipeline_mode<synchronous>, transform_indices = @transform_3, window_bounds = array<i64: 1, 32>}, {pipeline_mode = #tpu.pipeline_mode<synchronous>, transform_indices = @transform_4, window_bounds = array<i64: 1, 32>}, {pipeline_mode = #tpu.pipeline_mode<synchronous>, transform_indices = @transform_5, window_bounds = array<i64: 1, 32>}, {pipeline_mode = #tpu.pipeline_mode<synchronous>, transform_indices = @transform_6, window_bounds = array<i64: 32, 128>}, {pipeline_mode = #tpu.pipeline_mode<synchronous>, transform_indices = @transform_7, window_bounds = array<i64: 32, 128>}, {pipeline_mode = #tpu.pipeline_mode<synchronous>, transform_indices = @transform_8, window_bounds = array<i64: 1, 128>}, {transform_indices = @transform_9, window_bounds = array<i64: 32, 128>}]} {
    %c0 = arith.constant 0 : index
    %c0_0 = arith.constant 0 : index
    %0 = vector.load %arg1[%c0, %c0_0] : memref<32x32xf32, #tpu.memory_space<vmem>>, vector<32x32xf32>
    %c0_1 = arith.constant 0 : index
    %c0_2 = arith.constant 0 : index
    %1 = vector.load %arg2[%c0_1, %c0_2] : memref<32x32xf32, #tpu.memory_space<vmem>>, vector<32x32xf32>
    %cst = arith.constant 5.000000e-01 : f32
    %2 = vector.broadcast %cst : f32 to vector<32x32xf32>
    %3 = arith.mulf %2, %0 : vector<32x32xf32>
    %cst_3 = arith.constant 0.707106769 : f32
    %4 = vector.broadcast %cst_3 : f32 to vector<32x32xf32>
    %5 = arith.mulf %0, %4 : vector<32x32xf32>
    %6 = math.erf %5 : vector<32x32xf32>
    %cst_4 = arith.constant 1.000000e+00 : f32
    %7 = vector.broadcast %cst_4 : f32 to vector<32x32xf32>
    %8 = arith.addf %7, %6 : vector<32x32xf32>
    %9 = arith.mulf %3, %8 : vector<32x32xf32>
    %cst_5 = arith.constant 5.000000e-01 : f32
    %10 = vector.broadcast %cst_5 : f32 to vector<32x32xf32>
    %11 = arith.mulf %10, %1 : vector<32x32xf32>
    %cst_6 = arith.constant 0.707106769 : f32
    %12 = vector.broadcast %cst_6 : f32 to vector<32x32xf32>
    %13 = arith.mulf %1, %12 : vector<32x32xf32>
    %14 = math.erf %13 : vector<32x32xf32>
    %cst_7 = arith.constant 1.000000e+00 : f32
    %15 = vector.broadcast %cst_7 : f32 to vector<32x32xf32>
    %16 = arith.addf %15, %14 : vector<32x32xf32>
    %17 = arith.mulf %11, %16 : vector<32x32xf32>
    %cst_8 = arith.constant dense<0.000000e+00> : vector<32xf32>
    %18 = vector.multi_reduction <add>, %9, %cst_8 [1] : vector<32x32xf32> to vector<32xf32>
    %19 = vector.shape_cast %18 : vector<32xf32> to vector<32x1xf32>
    %cst_9 = arith.constant dense<0.000000e+00> : vector<32xf32>
    %20 = vector.multi_reduction <add>, %17, %cst_9 [1] : vector<32x32xf32> to vector<32xf32>
    %21 = vector.shape_cast %20 : vector<32xf32> to vector<32x1xf32>
    %22 = arith.addf %19, %21 : vector<32x1xf32>
    %cst_10 = arith.constant 6.400000e+01 : f32
    %23 = vector.broadcast %cst_10 : f32 to vector<32x1xf32>
    %24 = arith.divf %22, %23 : vector<32x1xf32>
    %25 = vector.broadcast %24 : vector<32x1xf32> to vector<32x32xf32>
    %26 = arith.subf %9, %25 : vector<32x32xf32>
    %27 = arith.mulf %26, %26 : vector<32x32xf32>
    %cst_11 = arith.constant dense<0.000000e+00> : vector<32xf32>
    %28 = vector.multi_reduction <add>, %27, %cst_11 [1] : vector<32x32xf32> to vector<32xf32>
    %29 = vector.shape_cast %28 : vector<32xf32> to vector<32x1xf32>
    %30 = vector.broadcast %24 : vector<32x1xf32> to vector<32x32xf32>
    %31 = arith.subf %17, %30 : vector<32x32xf32>
    %32 = arith.mulf %31, %31 : vector<32x32xf32>
    %cst_12 = arith.constant dense<0.000000e+00> : vector<32xf32>
    %33 = vector.multi_reduction <add>, %32, %cst_12 [1] : vector<32x32xf32> to vector<32xf32>
    %34 = vector.shape_cast %33 : vector<32xf32> to vector<32x1xf32>
    %35 = arith.addf %29, %34 : vector<32x1xf32>
    %cst_13 = arith.constant 6.400000e+01 : f32
    %36 = vector.broadcast %cst_13 : f32 to vector<32x1xf32>
    %37 = arith.divf %35, %36 : vector<32x1xf32>
    %cst_14 = arith.constant 9.99999974E-6 : f32
    %38 = vector.broadcast %cst_14 : f32 to vector<32x1xf32>
    %39 = arith.addf %37, %38 : vector<32x1xf32>
    %40 = math.rsqrt %39 : vector<32x1xf32>
    %41 = vector.broadcast %24 : vector<32x1xf32> to vector<32x32xf32>
    %42 = arith.subf %9, %41 : vector<32x32xf32>
    %43 = vector.broadcast %40 : vector<32x1xf32> to vector<32x32xf32>
    %44 = arith.mulf %42, %43 : vector<32x32xf32>
    %c0_15 = arith.constant 0 : index
    %c0_16 = arith.constant 0 : index
    %45 = vector.load %arg3[%c0_15, %c0_16] : memref<1x32xf32, #tpu.memory_space<vmem>>, vector<1x32xf32>
    %46 = vector.broadcast %45 : vector<1x32xf32> to vector<32x32xf32>
    %47 = arith.mulf %44, %46 : vector<32x32xf32>
    %c0_17 = arith.constant 0 : index
    %c0_18 = arith.constant 0 : index
    %48 = vector.load %arg5[%c0_17, %c0_18] : memref<1x32xf32, #tpu.memory_space<vmem>>, vector<1x32xf32>
    %49 = vector.broadcast %48 : vector<1x32xf32> to vector<32x32xf32>
    %50 = arith.addf %47, %49 : vector<32x32xf32>
    %51 = vector.broadcast %24 : vector<32x1xf32> to vector<32x32xf32>
    %52 = arith.subf %17, %51 : vector<32x32xf32>
    %53 = vector.broadcast %40 : vector<32x1xf32> to vector<32x32xf32>
    %54 = arith.mulf %52, %53 : vector<32x32xf32>
    %c0_19 = arith.constant 0 : index
    %c0_20 = arith.constant 0 : index
    %55 = vector.load %arg4[%c0_19, %c0_20] : memref<1x32xf32, #tpu.memory_space<vmem>>, vector<1x32xf32>
    %56 = vector.broadcast %55 : vector<1x32xf32> to vector<32x32xf32>
    %57 = arith.mulf %54, %56 : vector<32x32xf32>
    %c0_21 = arith.constant 0 : index
    %c0_22 = arith.constant 0 : index
    %58 = vector.load %arg6[%c0_21, %c0_22] : memref<1x32xf32, #tpu.memory_space<vmem>>, vector<1x32xf32>
    %59 = vector.broadcast %58 : vector<1x32xf32> to vector<32x32xf32>
    %60 = arith.addf %57, %59 : vector<32x32xf32>
    %c0_23 = arith.constant 0 : index
    %c0_24 = arith.constant 0 : index
    %61 = vector.load %arg7[%c0_23, %c0_24] : memref<32x128xf32, #tpu.memory_space<vmem>>, vector<32x128xf32>
    %cst_25 = arith.constant dense<0.000000e+00> : vector<32x128xf32>
    %62 = tpu.matmul %50, %61, %cst_25 {dimension_numbers = #tpu.dot_dimension_numbers<[1], [0], [0], [1], [0, 0, 1, 1], [], []>} : vector<32x32xf32>, vector<32x128xf32>, vector<32x128xf32> -> vector<32x128xf32>
    %c0_26 = arith.constant 0 : index
    %c0_27 = arith.constant 0 : index
    %63 = vector.load %arg8[%c0_26, %c0_27] : memref<32x128xf32, #tpu.memory_space<vmem>>, vector<32x128xf32>
    %cst_28 = arith.constant dense<0.000000e+00> : vector<32x128xf32>
    %64 = tpu.matmul %60, %63, %cst_28 {dimension_numbers = #tpu.dot_dimension_numbers<[1], [0], [0], [1], [0, 0, 1, 1], [], []>} : vector<32x32xf32>, vector<32x128xf32>, vector<32x128xf32> -> vector<32x128xf32>
    %65 = arith.addf %62, %64 : vector<32x128xf32>
    %c0_29 = arith.constant 0 : index
    %c0_30 = arith.constant 0 : index
    %66 = vector.load %arg9[%c0_29, %c0_30] : memref<1x128xf32, #tpu.memory_space<vmem>>, vector<1x128xf32>
    %67 = vector.broadcast %66 : vector<1x128xf32> to vector<32x128xf32>
    %68 = arith.addf %65, %67 : vector<32x128xf32>
    %c0_31 = arith.constant 0 : index
    %c0_32 = arith.constant 0 : index
    %69 = vector.load %arg10[%c0_31, %c0_32] : memref<32x128xf32, #tpu.memory_space<vmem>>, vector<32x128xf32>
    tpu.vector_store %arg10[%c0_31, %c0_32], %68 {strides = array<i32>} : memref<32x128xf32, #tpu.memory_space<vmem>>, vector<32x128xf32>,
    return
  }
  func.func @transform_0(%arg0: i32) -> (i32, i32) {
    %c0_i32 = arith.constant 0 : i32
    %c0_i32_0 = arith.constant 0 : i32
    return %arg0, %c0_i32 : i32, i32
  }
  func.func @transform_1(%arg0: i32) -> (i32, i32) {
    %c0_i32 = arith.constant 0 : i32
    %c0_i32_0 = arith.constant 0 : i32
    return %arg0, %c0_i32 : i32, i32
  }
  func.func @transform_2(%arg0: i32) -> (i32, i32) {
    %c0_i32 = arith.constant 0 : i32
    %c0_i32_0 = arith.constant 0 : i32
    %c0_i32_1 = arith.constant 0 : i32
    return %c0_i32, %c0_i32_0 : i32, i32
  }
  func.func @transform_3(%arg0: i32) -> (i32, i32) {
    %c0_i32 = arith.constant 0 : i32
    %c0_i32_0 = arith.constant 0 : i32
    %c0_i32_1 = arith.constant 0 : i32
    return %c0_i32, %c0_i32_0 : i32, i32
  }
  func.func @transform_4(%arg0: i32) -> (i32, i32) {
    %c0_i32 = arith.constant 0 : i32
    %c0_i32_0 = arith.constant 0 : i32
    %c0_i32_1 = arith.constant 0 : i32
    return %c0_i32, %c0_i32_0 : i32, i32
  }
  func.func @transform_5(%arg0: i32) -> (i32, i32) {
    %c0_i32 = arith.constant 0 : i32
    %c0_i32_0 = arith.constant 0 : i32
    %c0_i32_1 = arith.constant 0 : i32
    return %c0_i32, %c0_i32_0 : i32, i32
  }
  func.func @transform_6(%arg0: i32) -> (i32, i32) {
    %c0_i32 = arith.constant 0 : i32
    %c0_i32_0 = arith.constant 0 : i32
    %c0_i32_1 = arith.constant 0 : i32
    return %c0_i32, %c0_i32_0 : i32, i32
  }
  func.func @transform_7(%arg0: i32) -> (i32, i32) {
    %c0_i32 = arith.constant 0 : i32
    %c0_i32_0 = arith.constant 0 : i32
    %c0_i32_1 = arith.constant 0 : i32
    return %c0_i32, %c0_i32_0 : i32, i32
  }
  func.func @transform_8(%arg0: i32) -> (i32, i32) {
    %c0_i32 = arith.constant 0 : i32
    %c0_i32_0 = arith.constant 0 : i32
    %c0_i32_1 = arith.constant 0 : i32
    return %c0_i32, %c0_i32_0 : i32, i32
  }
  func.func @transform_9(%arg0: i32) -> (i32, i32) {
    %c0_i32 = arith.constant 0 : i32
    %c0_i32_0 = arith.constant 0 : i32
    return %arg0, %c0_i32 : i32, i32
  }
}

</mosaic_0001>

<llo_original>
// kernel: swevoice_forward.7
$region0: #{swevoice_forward.7}
  #allocation0 [shape = 'u32[]', space=smem, size = 0x4, offset = 0x4, fixed_abs, tag = 'smem constant byte address 0x4 - core index']
  #allocation1 [shape = 'u32[144,128]{1,0:T(1,128)}', space=vmem, size = 0x12000, scoped, tag = 'internal scratch']
  %s0 = inlined_call_operand.vmem [shape: f32[32,32], index: 0, kind: input, shape index: {}]
  %s1 = inlined_call_operand.vmem [shape: f32[32,32], index: 1, kind: input, shape index: {}]
  %s2 = inlined_call_operand.vmem [shape: f32[32,256], index: 2, kind: input, shape index: {}]
  %s3 = inlined_call_operand.vmem [shape: f32[32,256], index: 3, kind: input, shape index: {}]
  %s4 = inlined_call_operand.vmem [shape: f32[1,256], index: 4, kind: input, shape index: {}]
  %s5 = inlined_call_operand.vmem [shape: f32[32,256], index: 5, kind: output, shape index: {}]
  %s6 = sld [smem:[#allocation0]]
  $region30: #{swevoice_forward.7} parent=0
    _
  %s8 = ssub.s32 1, %s6
  %s9 = scalar_select 0, %s8, %s6
  // Predicated region
  $region2: #{swevoice_forward.7} parent=0 // pred_check
    _
  $region3: #{swevoice_forward.7} parent=0 // pred_check_branch
    %11 = sbr.rel (0) target = $region5
  $region4: #{swevoice_forward.7} parent=0 // pred_region
    _
  $region5: #{swevoice_forward.7} parent=0 // pred_fallthru
    _
  // Predicated region
  $region6: #{swevoice_forward.7} parent=0 // pred_check
    _
  $region7: #{swevoice_forward.7} parent=0 // pred_check_branch
    %13 = sbr.rel (0) target = $region9
  $region8: #{swevoice_forward.7} parent=0 // pred_region
    _
  $region9: #{swevoice_forward.7} parent=0 // pred_fallthru
    _
  // Predicated region
  $region10: #{swevoice_forward.7} parent=0 // pred_check
    _
  $region11: #{swevoice_forward.7} parent=0 // pred_check_branch
    %15 = sbr.rel (0) target = $region13
  $region12: #{swevoice_forward.7} parent=0 // pred_region
    _
  $region13: #{swevoice_forward.7} parent=0 // pred_fallthru
    _
  // Predicated region
  $region14: #{swevoice_forward.7} parent=0 // pred_check
    _
  $region15: #{swevoice_forward.7} parent=0 // pred_check_branch
    %17 = sbr.rel (0) target = $region17
  $region16: #{swevoice_forward.7} parent=0 // pred_region
    _
  $region17: #{swevoice_forward.7} parent=0 // pred_fallthru
    _
  // Predicated region
  $region18: #{swevoice_forward.7} parent=0 // pred_check
    _
  $region19: #{swevoice_forward.7} parent=0 // pred_check_branch
    %19 = sbr.rel (0) target = $region21
  $region20: #{swevoice_forward.7} parent=0 // pred_region
    _
  $region21: #{swevoice_forward.7} parent=0 // pred_fallthru
    _
  %v20 = vld [vmem:[%s0] sm:$0xff]
  %v21 = vld [vmem:[%s0 + $0x8] sm:$0xff]
  %v22 = vld [vmem:[%s0 + $0x10] sm:$0xff]
  %v23 = vld [vmem:[%s0 + $0x18] sm:$0xff]
  %v24 = vld [vmem:[%s2] sm:$0xff]
  %v25 = vld [vmem:[%s2 + $0x8] sm:$0xff]
  %v26 = vld [vmem:[%s2 + $0x10] sm:$0xff]
  %v27 = vld [vmem:[%s2 + $0x18] sm:$0xff]
  %v28 = vld [vmem:[%s2 + $0x20] sm:$0xff]
  %v29 = vld [vmem:[%s2 + $0x28] sm:$0xff]
  %v30 = vld [vmem:[%s2 + $0x30] sm:$0xff]
  %v31 = vld [vmem:[%s2 + $0x38] sm:$0xff]
  %v32 = vld [vmem:[%s1] sm:$0xff]
  %v33 = vld [vmem:[%s1 + $0x8] sm:$0xff]
  %v34 = vld [vmem:[%s1 + $0x10] sm:$0xff]
  %v35 = vld [vmem:[%s1 + $0x18] sm:$0xff]
  %v36 = vld [vmem:[%s3] sm:$0xff]
  %v37 = vld [vmem:[%s3 + $0x8] sm:$0xff]
  %v38 = vld [vmem:[%s3 + $0x10] sm:$0xff]
  %v39 = vld [vmem:[%s3 + $0x18] sm:$0xff]
  %v40 = vld [vmem:[%s3 + $0x20] sm:$0xff]
  %v41 = vld [vmem:[%s3 + $0x28] sm:$0xff]
  %v42 = vld [vmem:[%s3 + $0x30] sm:$0xff]
  %v43 = vld [vmem:[%s3 + $0x38] sm:$0xff]
  %vm44 = vcmask 261120
  %v46 = vsel %vm44, %v32, 0
  %v49 = vsel %vm44, %v33, 0
  %v52 = vsel %vm44, %v34, 0
  %v55 = vsel %vm44, %v35, 0
  %57 = vmatprep.subr.mxu0 %v37
  %58 = vmatpush1.msra.mxu0 %v36
  %59 = vmatprep.subr.mxu0 %v39
  %60 = vmatpush1.msra.mxu0 %v38
  %61 = vmatprep.subr.mxu0 %v41
  %62 = vmatpush1.msra.mxu0 %v40
  %63 = vmatprep.subr.mxu0 %v43
  %64 = vmatpush1.msra.mxu0 %v42
  %65 = vmatprep.subr.mxu0 0.0
  %66 = vmatpush1.msra.mxu0 0.0
  %67 = vmatprep.subr.mxu0 0.0
  %68 = vmatpush1.msra.mxu0 0.0
  %69 = vmatprep.subr.mxu0 0.0
  %70 = vmatpush1.msra.mxu0 0.0
  %71 = vmatprep.subr.mxu0 0.0
  %72 = vmatpush1.msra.mxu0 0.0
  %73 = vmatprep.subr.mxu0 0.0
  %74 = vmatpush1.msra.mxu0 0.0
  %75 = vmatprep.subr.mxu0 0.0
  %76 = vmatpush1.msra.mxu0 0.0
  %77 = vmatprep.subr.mxu0 0.0
  %78 = vmatpush1.msra.mxu0 0.0
  %79 = vmatprep.subr.mxu0 0.0
  %80 = vmatpush1.msra.mxu0 0.0
  %81 = vmatprep.subr.mxu0 0.0
  %82 = vmatpush1.msra.mxu0 0.0
  %83 = vmatprep.subr.mxu0 0.0
  %84 = vmatpush1.msra.mxu0 0.0
  %85 = vmatprep.subr.mxu0 0.0
  %86 = vmatpush1.msra.mxu0 0.0
  %87 = vmatprep.subr.mxu0 0.0
  %88 = vmatpush1.msra.mxu0 0.0
  %89 = vmatprep.subr.mxu0 0.0
  %90 = vmatpush1.msra.mxu0 0.0
  %91 = vmatprep.subr.mxu0 0.0
  %92 = vmatpush1.msra.mxu0 0.0
  %93 = vmatprep.subr.mxu0 0.0
  %94 = vmatpush1.msra.mxu0 0.0
  %95 = vmatprep.subr.mxu0 0.0
  %96 = vmatpush1.msra.mxu0 0.0
  %97 = vmatprep.subr.mxu0 0.0
  %98 = vmatpush1.msra.mxu0 0.0
  %99 = vmatprep.subr.mxu0 0.0
  %100 = vmatpush1.msra.mxu0 0.0
  %101 = vmatprep.subr.mxu0 0.0
  %102 = vmatpush1.msra.mxu0 0.0
  %103 = vmatprep.subr.mxu0 0.0
  %104 = vmatpush1.msra.mxu0 0.0
  %105 = vmatprep.subr.mxu0 0.0
  %106 = vmatpush1.msra.mxu0 0.0
  %107 = vmatprep.subr.mxu0 0.0
  %108 = vmatpush1.msra.mxu0 0.0
  %109 = vmatprep.subr.mxu0 0.0
  %110 = vmatpush1.msra.mxu0 0.0
  %111 = vmatprep.subr.mxu0 0.0
  %112 = vmatpush1.msra.mxu0 0.0
  %113 = vmatprep.subr.mxu0 0.0
  %114 = vmatpush1.msra.mxu0 0.0
  %115 = vmatprep.subr.mxu0 0.0
  %116 = vmatpush1.msra.mxu0 0.0
  %117 = vmatprep.subr.mxu0 0.0
  %118 = vmatpush1.msra.mxu0 0.0
  %119 = vmatprep.subr.mxu0 0.0
  %120 = vmatpush1.msra.mxu0 0.0
  %121 = vmatprep.mubr.f32.mxu0 0.0
  %122 = vmatmul.mubr.f32.gmra.mrb[0].mxu0 %v46
  %v123 = vpop.f32.mrb[0].mxu0
  %v124 = vadd.f32 0.0, %v123
  %v125 = vpop.f32.mrb[0].mxu0
  %v126 = vadd.f32 0.0, %v125
  %127 = vmatprep.mubr.f32.mxu0 0.0
  %128 = vmatmul.mubr.f32.gmra.mrb[0].mxu0 %v49
  %v129 = vpop.f32.mrb[0].mxu0
  %v130 = vadd.f32 0.0, %v129
  %v131 = vpop.f32.mrb[0].mxu0
  %v132 = vadd.f32 0.0, %v131
  %133 = vmatprep.mubr.f32.mxu0 0.0
  %134 = vmatmul.mubr.f32.gmra.mrb[0].mxu0 %v52
  %v135 = vpop.f32.mrb[0].mxu0
  %v136 = vadd.f32 0.0, %v135
  %v137 = vpop.f32.mrb[0].mxu0
  %v138 = vadd.f32 0.0, %v137
  %139 = vmatprep.mubr.f32.mxu0 0.0
  %140 = vmatmul.mubr.f32.gmra.mrb[0].mxu0 %v55
  %v141 = vpop.f32.mrb[0].mxu0
  %v142 = vadd.f32 0.0, %v141
  %v143 = vpop.f32.mrb[0].mxu0
  %v144 = vadd.f32 0.0, %v143
  %145 = vdwg.mxu0
  %v147 = vsel %vm44, %v20, 0
  %v150 = vsel %vm44, %v21, 0
  %v153 = vsel %vm44, %v22, 0
  %v156 = vsel %vm44, %v23, 0
  %158 = vmatprep.subr.mxu0 %v25
  %159 = vmatpush1.msra.mxu0 %v24
  %160 = vmatprep.subr.mxu0 %v27
  %161 = vmatpush1.msra.mxu0 %v26
  %162 = vmatprep.subr.mxu0 %v29
  %163 = vmatpush1.msra.mxu0 %v28
  %164 = vmatprep.subr.mxu0 %v31
  %165 = vmatpush1.msra.mxu0 %v30
  %166 = vmatprep.subr.mxu0 0.0
  %167 = vmatpush1.msra.mxu0 0.0
  %168 = vmatprep.subr.mxu0 0.0
  %169 = vmatpush1.msra.mxu0 0.0
  %170 = vmatprep.subr.mxu0 0.0
  %171 = vmatpush1.msra.mxu0 0.0
  %172 = vmatprep.subr.mxu0 0.0
  %173 = vmatpush1.msra.mxu0 0.0
  %174 = vmatprep.subr.mxu0 0.0
  %175 = vmatpush1.msra.mxu0 0.0
  %176 = vmatprep.subr.mxu0 0.0
  %177 = vmatpush1.msra.mxu0 0.0
  %178 = vmatprep.subr.mxu0 0.0
  %179 = vmatpush1.msra.mxu0 0.0
  %180 = vmatprep.subr.mxu0 0.0
  %181 = vmatpush1.msra.mxu0 0.0
  %182 = vmatprep.subr.mxu0 0.0
  %183 = vmatpush1.msra.mxu0 0.0
  %184 = vmatprep.subr.mxu0 0.0
  %185 = vmatpush1.msra.mxu0 0.0
  %186 = vmatprep.subr.mxu0 0.0
  %187 = vmatpush1.msra.mxu0 0.0
  %188 = vmatprep.subr.mxu0 0.0
  %189 = vmatpush1.msra.mxu0 0.0
  %190 = vmatprep.subr.mxu0 0.0
  %191 = vmatpush1.msra.mxu0 0.0
  %192 = vmatprep.subr.mxu0 0.0
  %193 = vmatpush1.msra.mxu0 0.0
  %194 = vmatprep.subr.mxu0 0.0
  %195 = vmatpush1.msra.mxu0 0.0
  %196 = vmatprep.subr.mxu0 0.0
  %197 = vmatpush1.msra.mxu0 0.0
  %198 = vmatprep.subr.mxu0 0.0
  %199 = vmatpush1.msra.mxu0 0.0
  %200 = vmatprep.subr.mxu0 0.0
  %201 = vmatpush1.msra.mxu0 0.0
  %202 = vmatprep.subr.mxu0 0.0
  %203 = vmatpush1.msra.mxu0 0.0
  %204 = vmatprep.subr.mxu0 0.0
  %205 = vmatpush1.msra.mxu0 0.0
  %206 = vmatprep.subr.mxu0 0.0
  %207 = vmatpush1.msra.mxu0 0.0
  %208 = vmatprep.subr.mxu0 0.0
  %209 = vmatpush1.msra.mxu0 0.0
  %210 = vmatprep.subr.mxu0 0.0
  %211 = vmatpush1.msra.mxu0 0.0
  %212 = vmatprep.subr.mxu0 0.0
  %213 = vmatpush1.msra.mxu0 0.0
  %214 = vmatprep.subr.mxu0 0.0
  %215 = vmatpush1.msra.mxu0 0.0
  %216 = vmatprep.subr.mxu0 0.0
  %217 = vmatpush1.msra.mxu0 0.0
  %218 = vmatprep.subr.mxu0 0.0
  %219 = vmatpush1.msra.mxu0 0.0
  %220 = vmatprep.subr.mxu0 0.0
  %221 = vmatpush1.msra.mxu0 0.0
  %222 = vmatprep.mubr.f32.mxu0 0.0
  %223 = vmatmul.mubr.f32.gmra.mrb[0].mxu0 %v147
  %v224 = vpop.f32.mrb[0].mxu0
  %v225 = vadd.f32 %v124, %v224
  %v226 = vpop.f32.mrb[0].mxu0
  %v227 = vadd.f32 %v126, %v226
  %228 = vmatprep.mubr.f32.mxu0 0.0
  %229 = vmatmul.mubr.f32.gmra.mrb[0].mxu0 %v150
  %v230 = vpop.f32.mrb[0].mxu0
  %v231 = vadd.f32 %v130, %v230
  %v232 = vpop.f32.mrb[0].mxu0
  %v233 = vadd.f32 %v132, %v232
  %234 = vmatprep.mubr.f32.mxu0 0.0
  %235 = vmatmul.mubr.f32.gmra.mrb[0].mxu0 %v153
  %v236 = vpop.f32.mrb[0].mxu0
  %v237 = vadd.f32 %v136, %v236
  %v238 = vpop.f32.mrb[0].mxu0
  %v239 = vadd.f32 %v138, %v238
  %240 = vmatprep.mubr.f32.mxu0 0.0
  %241 = vmatmul.mubr.f32.gmra.mrb[0].mxu0 %v156
  %v242 = vpop.f32.mrb[0].mxu0
  %v243 = vadd.f32 %v142, %v242
  %v244 = vpop.f32.mrb[0].mxu0
  %v245 = vadd.f32 %v144, %v244
  %246 = vdwg.mxu0
  %v247 = vld [vmem:[%s4] sm:$0x3]
  %v249 = vlaneseq
  %v250 = vshrl.u32 %v249, 7
  %v251 = vsub.s32 0, %v250
  %v252 = vrot.slane %v247, %v251
  %v253 = vlaneseq
  %v254 = vshrl.u32 %v253, 7
  %v255 = vsub.s32 1, %v254
  %v256 = vrot.slane %v247, %v255
  %v259 = vadd.f32 %v225, %v252
  %v260 = vadd.f32 %v227, %v256
  %v261 = vadd.f32 %v231, %v252
  %v262 = vadd.f32 %v233, %v256
  %v263 = vadd.f32 %v237, %v252
  %v264 = vadd.f32 %v239, %v256
  %v265 = vadd.f32 %v243, %v252
  %v266 = vadd.f32 %v245, %v256
  %267 = vst [vmem:[%s5] sm:$0xff] %v259
  %268 = vst [vmem:[%s5 + $0x8] sm:$0xff] %v260
  %269 = vst [vmem:[%s5 + $0x10] sm:$0xff] %v261
  %270 = vst [vmem:[%s5 + $0x18] sm:$0xff] %v262
  %271 = vst [vmem:[%s5 + $0x20] sm:$0xff] %v263
  %272 = vst [vmem:[%s5 + $0x28] sm:$0xff] %v264
  %273 = vst [vmem:[%s5 + $0x30] sm:$0xff] %v265
  %274 = vst [vmem:[%s5 + $0x38] sm:$0xff] %v266
  // Predicated region
  $region22: #{swevoice_forward.7} parent=0 // pred_check
    _
  $region23: #{swevoice_forward.7} parent=0 // pred_check_branch
    %276 = sbr.rel (0) target = $region25
  $region24: #{swevoice_forward.7} parent=0 // pred_region
    _
  $region25: #{swevoice_forward.7} parent=0 // pred_fallthru
    _
  // Predicated region
  $region26: #{swevoice_forward.7} parent=0 // pred_check
    _
  $region27: #{swevoice_forward.7} parent=0 // pred_check_branch
    %278 = sbr.rel (0) target = $region29
  $region28: #{swevoice_forward.7} parent=0 // pred_region
    _
  $region29: #{swevoice_forward.7} parent=0 // pred_fallthru
    _

// kernel: swevoice_forward.5
$region0: #{swevoice_forward.5}
  #allocation0 [shape = 'u32[]', space=smem, size = 0x4, offset = 0x4, fixed_abs, tag = 'smem constant byte address 0x4 - core index']
  #allocation1 [shape = 'u32[144,128]{1,0:T(1,128)}', space=vmem, size = 0x12000, scoped, tag = 'internal scratch']
  %s0 = inlined_call_operand.vmem [shape: f32[32,56], index: 0, kind: input, shape index: {}]
  %s1 = inlined_call_operand.vmem [shape: f32[56,64], index: 1, kind: input, shape index: {}]
  %s2 = inlined_call_operand.vmem [shape: f32[1,64], index: 2, kind: input, shape index: {}]
  %s3 = inlined_call_operand.vmem [shape: f32[1,64], index: 3, kind: input, shape index: {}]
  %s4 = inlined_call_operand.vmem [shape: f32[1,64], index: 4, kind: input, shape index: {}]
  %s5 = inlined_call_operand.vmem [shape: f32[64,64], index: 5, kind: input, shape index: {}]
  %s6 = inlined_call_operand.vmem [shape: f32[1,64], index: 6, kind: input, shape index: {}]
  %s7 = inlined_call_operand.vmem [shape: f32[1,64], index: 7, kind: input, shape index: {}]
  %s8 = inlined_call_operand.vmem [shape: f32[1,64], index: 8, kind: input, shape index: {}]
  %s9 = inlined_call_operand.vmem [shape: f32[64,64], index: 9, kind: input, shape index: {}]
  %s10 = inlined_call_operand.vmem [shape: f32[1,64], index: 10, kind: input, shape index: {}]
  %s11 = inlined_call_operand.vmem [shape: f32[1,64], index: 11, kind: input, shape index: {}]
  %s12 = inlined_call_operand.vmem [shape: f32[1,64], index: 12, kind: input, shape index: {}]
  %s13 = inlined_call_operand.vmem [shape: f32[64,256], index: 13, kind: input, shape index: {}]
  %s14 = inlined_call_operand.vmem [shape: f32[1,256], index: 14, kind: input, shape index: {}]
  %s15 = inlined_call_operand.vmem [shape: f32[32,256], index: 15, kind: output, shape index: {}]
  %s16 = sld [smem:[#allocation0]]
  $region70: #{swevoice_forward.5} parent=0
    _
  %s18 = ssub.s32 1, %s16
  %s19 = scalar_select 0, %s18, %s16
  // Predicated region
  $region2: #{swevoice_forward.5} parent=0 // pred_check
    _
  $region3: #{swevoice_forward.5} parent=0 // pred_check_branch
    %21 = sbr.rel (0) target = $region5
  $region4: #{swevoice_forward.5} parent=0 // pred_region
    _
  $region5: #{swevoice_forward.5} parent=0 // pred_fallthru
    _
  // Predicated region
  $region6: #{swevoice_forward.5} parent=0 // pred_check
    _
  $region7: #{swevoice_forward.5} parent=0 // pred_check_branch
    %23 = sbr.rel (0) target = $region9
  $region8: #{swevoice_forward.5} parent=0 // pred_region
    _
  $region9: #{swevoice_forward.5} parent=0 // pred_fallthru
    _
  // Predicated region
  $region10: #{swevoice_forward.5} parent=0 // pred_check
    _
  $region11: #{swevoice_forward.5} parent=0 // pred_check_branch
    %25 = sbr.rel (0) target = $region13
  $region12: #{swevoice_forward.5} parent=0 // pred_region
    _
  $region13: #{swevoice_forward.5} parent=0 // pred_fallthru
    _
  // Predicated region
  $region14: #{swevoice_forward.5} parent=0 // pred_check
    _
  $region15: #{swevoice_forward.5} parent=0 // pred_check_branch
    %27 = sbr.rel (0) target = $region17
  $region16: #{swevoice_forward.5} parent=0 // pred_region
    _
  $region17: #{swevoice_forward.5} parent=0 // pred_fallthru
    _
  // Predicated region
  $region18: #{swevoice_forward.5} parent=0 // pred_check
    _
  $region19: #{swevoice_forward.5} parent=0 // pred_check_branch
    %29 = sbr.rel (0) target = $region21
  $region20: #{swevoice_forward.5} parent=0 // pred_region
    _
  $region21: #{swevoice_forward.5} parent=0 // pred_fallthru
    _
  // Predicated region
  $region22: #{swevoice_forward.5} parent=0 // pred_check
    _
  $region23: #{swevoice_forward.5} parent=0 // pred_check_branch
    %31 = sbr.rel (0) target = $region25
  $region24: #{swevoice_forward.5} parent=0 // pred_region
    _
  $region25: #{swevoice_forward.5} parent=0 // pred_fallthru
    _
  // Predicated region
  $region26: #{swevoice_forward.5} parent=0 // pred_check
    _
  $region27: #{swevoice_forward.5} parent=0 // pred_check_branch
    %33 = sbr.rel (0) target = $region29
  $region28: #{swevoice_forward.5} parent=0 // pred_region
    _
  $region29: #{swevoice_forward.5} parent=0 // pred_fallthru
    _
  // Predicated region
  $region30: #{swevoice_forward.5} parent=0 // pred_check
    _
  $region31: #{swevoice_forward.5} parent=0 // pred_check_branch
    %35 = sbr.rel (0) target = $region33
  $region32: #{swevoice_forward.5} parent=0 // pred_region
    _
  $region33: #{swevoice_forward.5} parent=0 // pred_fallthru
    _
  // Predicated region
  $region34: #{swevoice_forward.5} parent=0 // pred_check
    _
  $region35: #{swevoice_forward.5} parent=0 // pred_check_branch
    %37 = sbr.rel (0) target = $region37
  $region36: #{swevoice_forward.5} parent=0 // pred_region
    _
  $region37: #{swevoice_forward.5} parent=0 // pred_fallthru
    _
  // Predicated region
  $region38: #{swevoice_forward.5} parent=0 // pred_check
    _
  $region39: #{swevoice_forward.5} parent=0 // pred_check_branch
    %39 = sbr.rel (0) target = $region41
  $region40: #{swevoice_forward.5} parent=0 // pred_region
    _
  $region41: #{swevoice_forward.5} parent=0 // pred_fallthru
    _
  // Predicated region
  $region42: #{swevoice_forward.5} parent=0 // pred_check
    _
  $region43: #{swevoice_forward.5} parent=0 // pred_check_branch
    %41 = sbr.rel (0) target = $region45
  $region44: #{swevoice_forward.5} parent=0 // pred_region
    _
  $region45: #{swevoice_forward.5} parent=0 // pred_fallthru
    _
  // Predicated region
  $region46: #{swevoice_forward.5} parent=0 // pred_check
    _
  $region47: #{swevoice_forward.5} parent=0 // pred_check_branch
    %43 = sbr.rel (0) target = $region49
  $region48: #{swevoice_forward.5} parent=0 // pred_region
    _
  $region49: #{swevoice_forward.5} parent=0 // pred_fallthru
    _
  // Predicated region
  $region50: #{swevoice_forward.5} parent=0 // pred_check
    _
  $region51: #{swevoice_forward.5} parent=0 // pred_check_branch
    %45 = sbr.rel (0) target = $region53
  $region52: #{swevoice_forward.5} parent=0 // pred_region
    _
  $region53: #{swevoice_forward.5} parent=0 // pred_fallthru
    _
  // Predicated region
  $region54: #{swevoice_forward.5} parent=0 // pred_check
    _
  $region55: #{swevoice_forward.5} parent=0 // pred_check_branch
    %47 = sbr.rel (0) target = $region57
  $region56: #{swevoice_forward.5} parent=0 // pred_region
    _
  $region57: #{swevoice_forward.5} parent=0 // pred_fallthru
    _
  // Predicated region
  $region58: #{swevoice_forward.5} parent=0 // pred_check
    _
  $region59: #{swevoice_forward.5} parent=0 // pred_check_branch
    %49 = sbr.rel (0) target = $region61
  $region60: #{swevoice_forward.5} parent=0 // pred_region
    _
  $region61: #{swevoice_forward.5} parent=0 // pred_fallthru
    _
  %v50 = vld [vmem:[%s0] sm:$0xff]
  %v51 = vld [vmem:[%s0 + $0x8] sm:$0xff]
  %v52 = vld [vmem:[%s0 + $0x10] sm:$0xff]
  %v53 = vld [vmem:[%s0 + $0x18] sm:$0xff]
  %v54 = vld [vmem:[%s1] sm:$0xff]
  %v55 = vld [vmem:[%s1 + $0x8] sm:$0xff]
  %v56 = vld [vmem:[%s1 + $0x10] sm:$0xff]
  %v57 = vld [vmem:[%s1 + $0x18] sm:$0xff]
  %v58 = vld [vmem:[%s1 + $0x20] sm:$0xff]
  %v59 = vld [vmem:[%s1 + $0x28] sm:$0xff]
  %v60 = vld [vmem:[%s1 + $0x30] sm:$0xff]
  %v61 = vld [vmem:[%s2] sm:$0x1]
  %v63 = vlaneseq
  %v64 = vshrl.u32 %v63, 7
  %v65 = vsub.s32 0, %v64
  %v66 = vrot.slane %v61, %v65
  %vm68 = vcmask 457728
  %v70 = vsel %vm68, %v50, 0
  %v73 = vsel %vm68, %v51, 0
  %v76 = vsel %vm68, %v52, 0
  %v79 = vsel %vm68, %v53, 0
  %81 = vmatprep.subr.mxu0 0.0
  %82 = vmatpush1.msra.mxu0 %v54
  %83 = vmatprep.subr.mxu0 0.0
  %84 = vmatpush1.msra.mxu0 %v55
  %85 = vmatprep.subr.mxu0 0.0
  %86 = vmatpush1.msra.mxu0 %v56
  %87 = vmatprep.subr.mxu0 0.0
  %88 = vmatpush1.msra.mxu0 %v57
  %89 = vmatprep.subr.mxu0 0.0
  %90 = vmatpush1.msra.mxu0 %v58
  %91 = vmatprep.subr.mxu0 0.0
  %92 = vmatpush1.msra.mxu0 %v59
  %93 = vmatprep.subr.mxu0 0.0
  %94 = vmatpush1.msra.mxu0 %v60
  %95 = vmatprep.subr.mxu0 0.0
  %96 = vmatpush1.msra.mxu0 0.0
  %97 = vmatprep.subr.mxu0 0.0
  %98 = vmatpush1.msra.mxu0 0.0
  %99 = vmatprep.subr.mxu0 0.0
  %100 = vmatpush1.msra.mxu0 0.0
  %101 = vmatprep.subr.mxu0 0.0
  %102 = vmatpush1.msra.mxu0 0.0
  %103 = vmatprep.subr.mxu0 0.0
  %104 = vmatpush1.msra.mxu0 0.0
  %105 = vmatprep.subr.mxu0 0.0
  %106 = vmatpush1.msra.mxu0 0.0
  %107 = vmatprep.subr.mxu0 0.0
  %108 = vmatpush1.msra.mxu0 0.0
  %109 = vmatprep.subr.mxu0 0.0
  %110 = vmatpush1.msra.mxu0 0.0
  %111 = vmatprep.subr.mxu0 0.0
  %112 = vmatpush1.msra.mxu0 0.0
  %113 = vmatprep.subr.mxu0 0.0
  %114 = vmatpush1.msra.mxu0 0.0
  %115 = vmatprep.subr.mxu0 0.0
  %116 = vmatpush1.msra.mxu0 0.0
  %117 = vmatprep.subr.mxu0 0.0
  %118 = vmatpush1.msra.mxu0 0.0
  %119 = vmatprep.subr.mxu0 0.0
  %120 = vmatpush1.msra.mxu0 0.0
  %121 = vmatprep.subr.mxu0 0.0
  %122 = vmatpush1.msra.mxu0 0.0
  %123 = vmatprep.subr.mxu0 0.0
  %124 = vmatpush1.msra.mxu0 0.0
  %125 = vmatprep.subr.mxu0 0.0
  %126 = vmatpush1.msra.mxu0 0.0
  %127 = vmatprep.subr.mxu0 0.0
  %128 = vmatpush1.msra.mxu0 0.0
  %129 = vmatprep.subr.mxu0 0.0
  %130 = vmatpush1.msra.mxu0 0.0
  %131 = vmatprep.subr.mxu0 0.0
  %132 = vmatpush1.msra.mxu0 0.0
  %133 = vmatprep.subr.mxu0 0.0
  %134 = vmatpush1.msra.mxu0 0.0
  %135 = vmatprep.subr.mxu0 0.0
  %136 = vmatpush1.msra.mxu0 0.0
  %137 = vmatprep.subr.mxu0 0.0
  %138 = vmatpush1.msra.mxu0 0.0
  %139 = vmatprep.subr.mxu0 0.0
  %140 = vmatpush1.msra.mxu0 0.0
  %141 = vmatprep.subr.mxu0 0.0
  %142 = vmatpush1.msra.mxu0 0.0
  %143 = vmatprep.subr.mxu0 0.0
  %144 = vmatpush1.msra.mxu0 0.0
  %145 = vmatprep.mubr.f32.mxu0 0.0
  %146 = vmatmul.mubr.f32.gmra.mrb[0].mxu0 %v70
  %v147 = vpop.f32.mrb[0].mxu0
  %v148 = vadd.f32 %v66, %v147
  %v149 = vpop.f32.mrb[0].mxu0
  %150 = vmatprep.mubr.f32.mxu0 0.0
  %151 = vmatmul.mubr.f32.gmra.mrb[0].mxu0 %v73
  %v152 = vpop.f32.mrb[0].mxu0
  %v153 = vadd.f32 %v66, %v152
  %v154 = vpop.f32.mrb[0].mxu0
  %155 = vmatprep.mubr.f32.mxu0 0.0
  %156 = vmatmul.mubr.f32.gmra.mrb[0].mxu0 %v76
  %v157 = vpop.f32.mrb[0].mxu0
  %v158 = vadd.f32 %v66, %v157
  %v159 = vpop.f32.mrb[0].mxu0
  %160 = vmatprep.mubr.f32.mxu0 0.0
  %161 = vmatmul.mubr.f32.gmra.mrb[0].mxu0 %v79
  %v162 = vpop.f32.mrb[0].mxu0
  %v163 = vadd.f32 %v66, %v162
  %v164 = vpop.f32.mrb[0].mxu0
  %165 = vdwg.mxu0
  %v166 = vld [vmem:[%s3] sm:$0x1]
  %v167 = vld [vmem:[%s4] sm:$0x1]
  %vm168 = vcmask 523264
  %v169 = vsel %vm168, %v148, 0.0
  %170 = vadd.xlane.f32.xlu0 %v169
  %v171 = vpop.xlane.xlu0 %170
  %v172 = vsel %vm168, %v153, 0.0
  %173 = vadd.xlane.f32.xlu0 %v172
  %v174 = vpop.xlane.xlu0 %173
  %v175 = vsel %vm168, %v158, 0.0
  %176 = vadd.xlane.f32.xlu0 %v175
  %v177 = vpop.xlane.xlu0 %176
  %v178 = vsel %vm168, %v163, 0.0
  %179 = vadd.xlane.f32.xlu0 %v178
  %v180 = vpop.xlane.xlu0 %179
  %v181 = vrcp.pop 64.0
  %v182 = vmul.f32 %v171, %v181
  %v183 = vmul.f32 %v174, %v181
  %v184 = vmul.f32 %v177, %v181
  %v185 = vmul.f32 %v180, %v181
  %v186 = vsub.f32 %v148, %v182
  %v187 = vsub.f32 %v153, %v183
  %v188 = vsub.f32 %v158, %v184
  %v189 = vsub.f32 %v163, %v185
  %v190 = vmul.f32 %v186, %v186
  %v191 = vmul.f32 %v187, %v187
  %v192 = vmul.f32 %v188, %v188
  %v193 = vmul.f32 %v189, %v189
  %v194 = vsel %vm168, %v190, 0.0
  %195 = vadd.xlane.f32.xlu0 %v194
  %v196 = vpop.xlane.xlu0 %195
  %v197 = vsel %vm168, %v191, 0.0
  %198 = vadd.xlane.f32.xlu0 %v197
  %v199 = vpop.xlane.xlu0 %198
  %v200 = vsel %vm168, %v192, 0.0
  %201 = vadd.xlane.f32.xlu0 %v200
  %v202 = vpop.xlane.xlu0 %201
  %v203 = vsel %vm168, %v193, 0.0
  %204 = vadd.xlane.f32.xlu0 %v203
  %v205 = vpop.xlane.xlu0 %204
  %v206 = vmul.f32 %v196, %v181
  %v207 = vmul.f32 %v199, %v181
  %v208 = vmul.f32 %v202, %v181
  %v209 = vmul.f32 %v205, %v181
  %v210 = vadd.f32 %v206, 1e-05
  %v211 = vadd.f32 %v207, 1e-05
  %v212 = vadd.f32 %v208, 1e-05
  %v213 = vadd.f32 %v209, 1e-05
  %v214 = vrsqrt.pop %v210
  %v215 = vrsqrt.pop %v211
  %v216 = vrsqrt.pop %v212
  %v217 = vrsqrt.pop %v213
  %v218 = vmul.f32 %v186, %v214
  %v219 = vmul.f32 %v187, %v215
  %v220 = vmul.f32 %v188, %v216
  %v221 = vmul.f32 %v189, %v217
  %v223 = vlaneseq
  %v224 = vshrl.u32 %v223, 7
  %v225 = vsub.s32 0, %v224
  %v226 = vrot.slane %v166, %v225
  %v228 = vmul.f32 %v218, %v226
  %v229 = vmul.f32 %v219, %v226
  %v230 = vmul.f32 %v220, %v226
  %v231 = vmul.f32 %v221, %v226
  %v233 = vlaneseq
  %v234 = vshrl.u32 %v233, 7
  %v235 = vsub.s32 0, %v234
  %v236 = vrot.slane %v167, %v235
  %v238 = vadd.f32 %v228, %v236
  %v239 = vadd.f32 %v229, %v236
  %v240 = vadd.f32 %v230, %v236
  %v241 = vadd.f32 %v231, %v236
  %v242 = vld [vmem:[%s5] sm:$0xff]
  %v243 = vld [vmem:[%s5 + $0x8] sm:$0xff]
  %v244 = vld [vmem:[%s5 + $0x10] sm:$0xff]
  %v245 = vld [vmem:[%s5 + $0x18] sm:$0xff]
  %v246 = vld [vmem:[%s5 + $0x20] sm:$0xff]
  %v247 = vld [vmem:[%s5 + $0x28] sm:$0xff]
  %v248 = vld [vmem:[%s5 + $0x30] sm:$0xff]
  %v249 = vld [vmem:[%s5 + $0x38] sm:$0xff]
  %v250 = vld [vmem:[%s6] sm:$0x1]
  %v252 = vlaneseq
  %v253 = vshrl.u32 %v252, 7
  %v254 = vsub.s32 0, %v253
  %v255 = vrot.slane %v250, %v254
  %v258 = vsel %vm168, %v238, 0
  %v261 = vsel %vm168, %v239, 0
  %v264 = vsel %vm168, %v240, 0
  %v267 = vsel %vm168, %v241, 0
  %269 = vmatprep.subr.mxu0 0.0
  %270 = vmatpush1.msra.mxu0 %v242
  %271 = vmatprep.subr.mxu0 0.0
  %272 = vmatpush1.msra.mxu0 %v243
  %273 = vmatprep.subr.mxu0 0.0
  %274 = vmatpush1.msra.mxu0 %v244
  %275 = vmatprep.subr.mxu0 0.0
  %276 = vmatpush1.msra.mxu0 %v245
  %277 = vmatprep.subr.mxu0 0.0
  %278 = vmatpush1.msra.mxu0 %v246
  %279 = vmatprep.subr.mxu0 0.0
  %280 = vmatpush1.msra.mxu0 %v247
  %281 = vmatprep.subr.mxu0 0.0
  %282 = vmatpush1.msra.mxu0 %v248
  %283 = vmatprep.subr.mxu0 0.0
  %284 = vmatpush1.msra.mxu0 %v249
  %285 = vmatprep.subr.mxu0 0.0
  %286 = vmatpush1.msra.mxu0 0.0
  %287 = vmatprep.subr.mxu0 0.0
  %288 = vmatpush1.msra.mxu0 0.0
  %289 = vmatprep.subr.mxu0 0.0
  %290 = vmatpush1.msra.mxu0 0.0
  %291 = vmatprep.subr.mxu0 0.0
  %292 = vmatpush1.msra.mxu0 0.0
  %293 = vmatprep.subr.mxu0 0.0
  %294 = vmatpush1.msra.mxu0 0.0
  %295 = vmatprep.subr.mxu0 0.0
  %296 = vmatpush1.msra.mxu0 0.0
  %297 = vmatprep.subr.mxu0 0.0
  %298 = vmatpush1.msra.mxu0 0.0
  %299 = vmatprep.subr.mxu0 0.0
  %300 = vmatpush1.msra.mxu0 0.0
  %301 = vmatprep.subr.mxu0 0.0
  %302 = vmatpush1.msra.mxu0 0.0
  %303 = vmatprep.subr.mxu0 0.0
  %304 = vmatpush1.msra.mxu0 0.0
  %305 = vmatprep.subr.mxu0 0.0
  %306 = vmatpush1.msra.mxu0 0.0
  %307 = vmatprep.subr.mxu0 0.0
  %308 = vmatpush1.msra.mxu0 0.0
  %309 = vmatprep.subr.mxu0 0.0
  %310 = vmatpush1.msra.mxu0 0.0
  %311 = vmatprep.subr.mxu0 0.0
  %312 = vmatpush1.msra.mxu0 0.0
  %313 = vmatprep.subr.mxu0 0.0
  %314 = vmatpush1.msra.mxu0 0.0
  %315 = vmatprep.subr.mxu0 0.0
  %316 = vmatpush1.msra.mxu0 0.0
  %317 = vmatprep.subr.mxu0 0.0
  %318 = vmatpush1.msra.mxu0 0.0
  %319 = vmatprep.subr.mxu0 0.0
  %320 = vmatpush1.msra.mxu0 0.0
  %321 = vmatprep.subr.mxu0 0.0
  %322 = vmatpush1.msra.mxu0 0.0
  %323 = vmatprep.subr.mxu0 0.0
  %324 = vmatpush1.msra.mxu0 0.0
  %325 = vmatprep.subr.mxu0 0.0
  %326 = vmatpush1.msra.mxu0 0.0
  %327 = vmatprep.subr.mxu0 0.0
  %328 = vmatpush1.msra.mxu0 0.0
  %329 = vmatprep.subr.mxu0 0.0
  %330 = vmatpush1.msra.mxu0 0.0
  %331 = vmatprep.subr.mxu0 0.0
  %332 = vmatpush1.msra.mxu0 0.0
  %333 = vmatprep.mubr.f32.mxu0 0.0
  %334 = vmatmul.mubr.f32.gmra.mrb[0].mxu0 %v258
  %v335 = vpop.f32.mrb[0].mxu0
  %v336 = vadd.f32 %v255, %v335
  %v337 = vpop.f32.mrb[0].mxu0
  %338 = vmatprep.mubr.f32.mxu0 0.0
  %339 = vmatmul.mubr.f32.gmra.mrb[0].mxu0 %v261
  %v340 = vpop.f32.mrb[0].mxu0
  %v341 = vadd.f32 %v255, %v340
  %v342 = vpop.f32.mrb[0].mxu0
  %343 = vmatprep.mubr.f32.mxu0 0.0
  %344 = vmatmul.mubr.f32.gmra.mrb[0].mxu0 %v264
  %v345 = vpop.f32.mrb[0].mxu0
  %v346 = vadd.f32 %v255, %v345
  %v347 = vpop.f32.mrb[0].mxu0
  %348 = vmatprep.mubr.f32.mxu0 0.0
  %349 = vmatmul.mubr.f32.gmra.mrb[0].mxu0 %v267
  %v350 = vpop.f32.mrb[0].mxu0
  %v351 = vadd.f32 %v255, %v350
  %v352 = vpop.f32.mrb[0].mxu0
  %353 = vdwg.mxu0
  %v354 = vld [vmem:[%s7] sm:$0x1]
  %v355 = vld [vmem:[%s8] sm:$0x1]
  %v356 = vsel %vm168, %v336, 0.0
  %357 = vadd.xlane.f32.xlu0 %v356
  %v358 = vpop.xlane.xlu0 %357
  %v359 = vsel %vm168, %v341, 0.0
  %360 = vadd.xlane.f32.xlu0 %v359
  %v361 = vpop.xlane.xlu0 %360
  %v362 = vsel %vm168, %v346, 0.0
  %363 = vadd.xlane.f32.xlu0 %v362
  %v364 = vpop.xlane.xlu0 %363
  %v365 = vsel %vm168, %v351, 0.0
  %366 = vadd.xlane.f32.xlu0 %v365
  %v367 = vpop.xlane.xlu0 %366
  %v368 = vmul.f32 %v358, %v181
  %v369 = vmul.f32 %v361, %v181
  %v370 = vmul.f32 %v364, %v181
  %v371 = vmul.f32 %v367, %v181
  %v372 = vsub.f32 %v336, %v368
  %v373 = vsub.f32 %v341, %v369
  %v374 = vsub.f32 %v346, %v370
  %v375 = vsub.f32 %v351, %v371
  %v376 = vmul.f32 %v372, %v372
  %v377 = vmul.f32 %v373, %v373
  %v378 = vmul.f32 %v374, %v374
  %v379 = vmul.f32 %v375, %v375
  %v380 = vsel %vm168, %v376, 0.0
  %381 = vadd.xlane.f32.xlu0 %v380
  %v382 = vpop.xlane.xlu0 %381
  %v383 = vsel %vm168, %v377, 0.0
  %384 = vadd.xlane.f32.xlu0 %v383
  %v385 = vpop.xlane.xlu0 %384
  %v386 = vsel %vm168, %v378, 0.0
  %387 = vadd.xlane.f32.xlu0 %v386
  %v388 = vpop.xlane.xlu0 %387
  %v389 = vsel %vm168, %v379, 0.0
  %390 = vadd.xlane.f32.xlu0 %v389
  %v391 = vpop.xlane.xlu0 %390
  %v392 = vmul.f32 %v382, %v181
  %v393 = vmul.f32 %v385, %v181
  %v394 = vmul.f32 %v388, %v181
  %v395 = vmul.f32 %v391, %v181
  %v396 = vadd.f32 %v392, 1e-05
  %v397 = vadd.f32 %v393, 1e-05
  %v398 = vadd.f32 %v394, 1e-05
  %v399 = vadd.f32 %v395, 1e-05
  %v400 = vrsqrt.pop %v396
  %v401 = vrsqrt.pop %v397
  %v402 = vrsqrt.pop %v398
  %v403 = vrsqrt.pop %v399
  %v404 = vmul.f32 %v372, %v400
  %v405 = vmul.f32 %v373, %v401
  %v406 = vmul.f32 %v374, %v402
  %v407 = vmul.f32 %v375, %v403
  %v409 = vlaneseq
  %v410 = vshrl.u32 %v409, 7
  %v411 = vsub.s32 0, %v410
  %v412 = vrot.slane %v354, %v411
  %v414 = vmul.f32 %v404, %v412
  %v415 = vmul.f32 %v405, %v412
  %v416 = vmul.f32 %v406, %v412
  %v417 = vmul.f32 %v407, %v412
  %v419 = vlaneseq
  %v420 = vshrl.u32 %v419, 7
  %v421 = vsub.s32 0, %v420
  %v422 = vrot.slane %v355, %v421
  %v424 = vadd.f32 %v414, %v422
  %v425 = vadd.f32 %v415, %v422
  %v426 = vadd.f32 %v416, %v422
  %v427 = vadd.f32 %v417, %v422
  %v428 = vmax.f32 %v424, 0.0
  %v429 = vmax.f32 %v425, 0.0
  %v430 = vmax.f32 %v426, 0.0
  %v431 = vmax.f32 %v427, 0.0
  %v432 = vld [vmem:[%s9] sm:$0xff]
  %v433 = vld [vmem:[%s9 + $0x8] sm:$0xff]
  %v434 = vld [vmem:[%s9 + $0x10] sm:$0xff]
  %v435 = vld [vmem:[%s9 + $0x18] sm:$0xff]
  %v436 = vld [vmem:[%s9 + $0x20] sm:$0xff]
  %v437 = vld [vmem:[%s9 + $0x28] sm:$0xff]
  %v438 = vld [vmem:[%s9 + $0x30] sm:$0xff]
  %v439 = vld [vmem:[%s9 + $0x38] sm:$0xff]
  %v440 = vld [vmem:[%s10] sm:$0x1]
  %v442 = vlaneseq
  %v443 = vshrl.u32 %v442, 7
  %v444 = vsub.s32 0, %v443
  %v445 = vrot.slane %v440, %v444
  %v448 = vsel %vm168, %v428, 0
  %v451 = vsel %vm168, %v429, 0
  %v454 = vsel %vm168, %v430, 0
  %v457 = vsel %vm168, %v431, 0
  %459 = vmatprep.subr.mxu0 0.0
  %460 = vmatpush1.msra.mxu0 %v432
  %461 = vmatprep.subr.mxu0 0.0
  %462 = vmatpush1.msra.mxu0 %v433
  %463 = vmatprep.subr.mxu0 0.0
  %464 = vmatpush1.msra.mxu0 %v434
  %465 = vmatprep.subr.mxu0 0.0
  %466 = vmatpush1.msra.mxu0 %v435
  %467 = vmatprep.subr.mxu0 0.0
  %468 = vmatpush1.msra.mxu0 %v436
  %469 = vmatprep.subr.mxu0 0.0
  %470 = vmatpush1.msra.mxu0 %v437
  %471 = vmatprep.subr.mxu0 0.0
  %472 = vmatpush1.msra.mxu0 %v438
  %473 = vmatprep.subr.mxu0 0.0
  %474 = vmatpush1.msra.mxu0 %v439
  %475 = vmatprep.subr.mxu0 0.0
  %476 = vmatpush1.msra.mxu0 0.0
  %477 = vmatprep.subr.mxu0 0.0
  %478 = vmatpush1.msra.mxu0 0.0
  %479 = vmatprep.subr.mxu0 0.0
  %480 = vmatpush1.msra.mxu0 0.0
  %481 = vmatprep.subr.mxu0 0.0
  %482 = vmatpush1.msra.mxu0 0.0
  %483 = vmatprep.subr.mxu0 0.0
  %484 = vmatpush1.msra.mxu0 0.0
  %485 = vmatprep.subr.mxu0 0.0
  %486 = vmatpush1.msra.mxu0 0.0
  %487 = vmatprep.subr.mxu0 0.0
  %488 = vmatpush1.msra.mxu0 0.0
  %489 = vmatprep.subr.mxu0 0.0
  %490 = vmatpush1.msra.mxu0 0.0
  %491 = vmatprep.subr.mxu0 0.0
  %492 = vmatpush1.msra.mxu0 0.0
  %493 = vmatprep.subr.mxu0 0.0
  %494 = vmatpush1.msra.mxu0 0.0
  %495 = vmatprep.subr.mxu0 0.0
  %496 = vmatpush1.msra.mxu0 0.0
  %497 = vmatprep.subr.mxu0 0.0
  %498 = vmatpush1.msra.mxu0 0.0
  %499 = vmatprep.subr.mxu0 0.0
  %500 = vmatpush1.msra.mxu0 0.0
  %501 = vmatprep.subr.mxu0 0.0
  %502 = vmatpush1.msra.mxu0 0.0
  %503 = vmatprep.subr.mxu0 0.0
  %504 = vmatpush1.msra.mxu0 0.0
  %505 = vmatprep.subr.mxu0 0.0
  %506 = vmatpush1.msra.mxu0 0.0
  %507 = vmatprep.subr.mxu0 0.0
  %508 = vmatpush1.msra.mxu0 0.0
  %509 = vmatprep.subr.mxu0 0.0
  %510 = vmatpush1.msra.mxu0 0.0
  %511 = vmatprep.subr.mxu0 0.0
  %512 = vmatpush1.msra.mxu0 0.0
  %513 = vmatprep.subr.mxu0 0.0
  %514 = vmatpush1.msra.mxu0 0.0
  %515 = vmatprep.subr.mxu0 0.0
  %516 = vmatpush1.msra.mxu0 0.0
  %517 = vmatprep.subr.mxu0 0.0
  %518 = vmatpush1.msra.mxu0 0.0
  %519 = vmatprep.subr.mxu0 0.0
  %520 = vmatpush1.msra.mxu0 0.0
  %521 = vmatprep.subr.mxu0 0.0
  %522 = vmatpush1.msra.mxu0 0.0
  %523 = vmatprep.mubr.f32.mxu0 0.0
  %524 = vmatmul.mubr.f32.gmra.mrb[0].mxu0 %v448
  %v525 = vpop.f32.mrb[0].mxu0
  %v526 = vadd.f32 %v445, %v525
  %v527 = vpop.f32.mrb[0].mxu0
  %528 = vmatprep.mubr.f32.mxu0 0.0
  %529 = vmatmul.mubr.f32.gmra.mrb[0].mxu0 %v451
  %v530 = vpop.f32.mrb[0].mxu0
  %v531 = vadd.f32 %v445, %v530
  %v532 = vpop.f32.mrb[0].mxu0
  %533 = vmatprep.mubr.f32.mxu0 0.0
  %534 = vmatmul.mubr.f32.gmra.mrb[0].mxu0 %v454
  %v535 = vpop.f32.mrb[0].mxu0
  %v536 = vadd.f32 %v445, %v535
  %v537 = vpop.f32.mrb[0].mxu0
  %538 = vmatprep.mubr.f32.mxu0 0.0
  %539 = vmatmul.mubr.f32.gmra.mrb[0].mxu0 %v457
  %v540 = vpop.f32.mrb[0].mxu0
  %v541 = vadd.f32 %v445, %v540
  %v542 = vpop.f32.mrb[0].mxu0
  %543 = vdwg.mxu0
  %v544 = vld [vmem:[%s11] sm:$0x1]
  %v545 = vld [vmem:[%s12] sm:$0x1]
  %v546 = vsel %vm168, %v526, 0.0
  %547 = vadd.xlane.f32.xlu0 %v546
  %v548 = vpop.xlane.xlu0 %547
  %v549 = vsel %vm168, %v531, 0.0
  %550 = vadd.xlane.f32.xlu0 %v549
  %v551 = vpop.xlane.xlu0 %550
  %v552 = vsel %vm168, %v536, 0.0
  %553 = vadd.xlane.f32.xlu0 %v552
  %v554 = vpop.xlane.xlu0 %553
  %v555 = vsel %vm168, %v541, 0.0
  %556 = vadd.xlane.f32.xlu0 %v555
  %v557 = vpop.xlane.xlu0 %556
  %v558 = vmul.f32 %v548, %v181
  %v559 = vmul.f32 %v551, %v181
  %v560 = vmul.f32 %v554, %v181
  %v561 = vmul.f32 %v557, %v181
  %v562 = vsub.f32 %v526, %v558
  %v563 = vsub.f32 %v531, %v559
  %v564 = vsub.f32 %v536, %v560
  %v565 = vsub.f32 %v541, %v561
  %v566 = vmul.f32 %v562, %v562
  %v567 = vmul.f32 %v563, %v563
  %v568 = vmul.f32 %v564, %v564
  %v569 = vmul.f32 %v565, %v565
  %v570 = vsel %vm168, %v566, 0.0
  %571 = vadd.xlane.f32.xlu0 %v570
  %v572 = vpop.xlane.xlu0 %571
  %v573 = vsel %vm168, %v567, 0.0
  %574 = vadd.xlane.f32.xlu0 %v573
  %v575 = vpop.xlane.xlu0 %574
  %v576 = vsel %vm168, %v568, 0.0
  %577 = vadd.xlane.f32.xlu0 %v576
  %v578 = vpop.xlane.xlu0 %577
  %v579 = vsel %vm168, %v569, 0.0
  %580 = vadd.xlane.f32.xlu0 %v579
  %v581 = vpop.xlane.xlu0 %580
  %v582 = vmul.f32 %v572, %v181
  %v583 = vmul.f32 %v575, %v181
  %v584 = vmul.f32 %v578, %v181
  %v585 = vmul.f32 %v581, %v181
  %v586 = vadd.f32 %v582, 1e-05
  %v587 = vadd.f32 %v583, 1e-05
  %v588 = vadd.f32 %v584, 1e-05
  %v589 = vadd.f32 %v585, 1e-05
  %v590 = vrsqrt.pop %v586
  %v591 = vrsqrt.pop %v587
  %v592 = vrsqrt.pop %v588
  %v593 = vrsqrt.pop %v589
  %v594 = vmul.f32 %v562, %v590
  %v595 = vmul.f32 %v563, %v591
  %v596 = vmul.f32 %v564, %v592
  %v597 = vmul.f32 %v565, %v593
  %v599 = vlaneseq
  %v600 = vshrl.u32 %v599, 7
  %v601 = vsub.s32 0, %v600
  %v602 = vrot.slane %v544, %v601
  %v604 = vmul.f32 %v594, %v602
  %v605 = vmul.f32 %v595, %v602
  %v606 = vmul.f32 %v596, %v602
  %v607 = vmul.f32 %v597, %v602
  %v609 = vlaneseq
  %v610 = vshrl.u32 %v609, 7
  %v611 = vsub.s32 0, %v610
  %v612 = vrot.slane %v545, %v611
  %v614 = vadd.f32 %v604, %v612
  %v615 = vadd.f32 %v605, %v612
  %v616 = vadd.f32 %v606, %v612
  %v617 = vadd.f32 %v607, %v612
  %v618 = vmax.f32 %v614, 0.0
  %v619 = vmax.f32 %v615, 0.0
  %v620 = vmax.f32 %v616, 0.0
  %v621 = vmax.f32 %v617, 0.0
  %v622 = vld [vmem:[%s13] sm:$0xff]
  %v623 = vld [vmem:[%s13 + $0x8] sm:$0xff]
  %v624 = vld [vmem:[%s13 + $0x10] sm:$0xff]
  %v625 = vld [vmem:[%s13 + $0x18] sm:$0xff]
  %v626 = vld [vmem:[%s13 + $0x20] sm:$0xff]
  %v627 = vld [vmem:[%s13 + $0x28] sm:$0xff]
  %v628 = vld [vmem:[%s13 + $0x30] sm:$0xff]
  %v629 = vld [vmem:[%s13 + $0x38] sm:$0xff]
  %v630 = vld [vmem:[%s13 + $0x40] sm:$0xff]
  %v631 = vld [vmem:[%s13 + $0x48] sm:$0xff]
  %v632 = vld [vmem:[%s13 + $0x50] sm:$0xff]
  %v633 = vld [vmem:[%s13 + $0x58] sm:$0xff]
  %v634 = vld [vmem:[%s13 + $0x60] sm:$0xff]
  %v635 = vld [vmem:[%s13 + $0x68] sm:$0xff]
  %v636 = vld [vmem:[%s13 + $0x70] sm:$0xff]
  %v637 = vld [vmem:[%s13 + $0x78] sm:$0xff]
  %v638 = vld [vmem:[%s14] sm:$0x3]
  %v640 = vlaneseq
  %v641 = vshrl.u32 %v640, 7
  %v642 = vsub.s32 0, %v641
  %v643 = vrot.slane %v638, %v642
  %v644 = vlaneseq
  %v645 = vshrl.u32 %v644, 7
  %v646 = vsub.s32 1, %v645
  %v647 = vrot.slane %v638, %v646
  %v651 = vsel %vm168, %v618, 0
  %v654 = vsel %vm168, %v619, 0
  %v657 = vsel %vm168, %v620, 0
  %v660 = vsel %vm168, %v621, 0
  %662 = vmatprep.subr.mxu0 %v623
  %663 = vmatpush1.msra.mxu0 %v622
  %664 = vmatprep.subr.mxu0 %v625
  %665 = vmatpush1.msra.mxu0 %v624
  %666 = vmatprep.subr.mxu0 %v627
  %667 = vmatpush1.msra.mxu0 %v626
  %668 = vmatprep.subr.mxu0 %v629
  %669 = vmatpush1.msra.mxu0 %v628
  %670 = vmatprep.subr.mxu0 %v631
  %671 = vmatpush1.msra.mxu0 %v630
  %672 = vmatprep.subr.mxu0 %v633
  %673 = vmatpush1.msra.mxu0 %v632
  %674 = vmatprep.subr.mxu0 %v635
  %675 = vmatpush1.msra.mxu0 %v634
  %676 = vmatprep.subr.mxu0 %v637
  %677 = vmatpush1.msra.mxu0 %v636
  %678 = vmatprep.subr.mxu0 0.0
  %679 = vmatpush1.msra.mxu0 0.0
  %680 = vmatprep.subr.mxu0 0.0
  %681 = vmatpush1.msra.mxu0 0.0
  %682 = vmatprep.subr.mxu0 0.0
  %683 = vmatpush1.msra.mxu0 0.0
  %684 = vmatprep.subr.mxu0 0.0
  %685 = vmatpush1.msra.mxu0 0.0
  %686 = vmatprep.subr.mxu0 0.0
  %687 = vmatpush1.msra.mxu0 0.0
  %688 = vmatprep.subr.mxu0 0.0
  %689 = vmatpush1.msra.mxu0 0.0
  %690 = vmatprep.subr.mxu0 0.0
  %691 = vmatpush1.msra.mxu0 0.0
  %692 = vmatprep.subr.mxu0 0.0
  %693 = vmatpush1.msra.mxu0 0.0
  %694 = vmatprep.subr.mxu0 0.0
  %695 = vmatpush1.msra.mxu0 0.0
  %696 = vmatprep.subr.mxu0 0.0
  %697 = vmatpush1.msra.mxu0 0.0
  %698 = vmatprep.subr.mxu0 0.0
  %699 = vmatpush1.msra.mxu0 0.0
  %700 = vmatprep.subr.mxu0 0.0
  %701 = vmatpush1.msra.mxu0 0.0
  %702 = vmatprep.subr.mxu0 0.0
  %703 = vmatpush1.msra.mxu0 0.0
  %704 = vmatprep.subr.mxu0 0.0
  %705 = vmatpush1.msra.mxu0 0.0
  %706 = vmatprep.subr.mxu0 0.0
  %707 = vmatpush1.msra.mxu0 0.0
  %708 = vmatprep.subr.mxu0 0.0
  %709 = vmatpush1.msra.mxu0 0.0
  %710 = vmatprep.subr.mxu0 0.0
  %711 = vmatpush1.msra.mxu0 0.0
  %712 = vmatprep.subr.mxu0 0.0
  %713 = vmatpush1.msra.mxu0 0.0
  %714 = vmatprep.subr.mxu0 0.0
  %715 = vmatpush1.msra.mxu0 0.0
  %716 = vmatprep.subr.mxu0 0.0
  %717 = vmatpush1.msra.mxu0 0.0
  %718 = vmatprep.subr.mxu0 0.0
  %719 = vmatpush1.msra.mxu0 0.0
  %720 = vmatprep.subr.mxu0 0.0
  %721 = vmatpush1.msra.mxu0 0.0
  %722 = vmatprep.subr.mxu0 0.0
  %723 = vmatpush1.msra.mxu0 0.0
  %724 = vmatprep.subr.mxu0 0.0
  %725 = vmatpush1.msra.mxu0 0.0
  %726 = vmatprep.mubr.f32.mxu0 0.0
  %727 = vmatmul.mubr.f32.gmra.mrb[0].mxu0 %v651
  %v728 = vpop.f32.mrb[0].mxu0
  %v729 = vadd.f32 %v643, %v728
  %v730 = vpop.f32.mrb[0].mxu0
  %v731 = vadd.f32 %v647, %v730
  %732 = vmatprep.mubr.f32.mxu0 0.0
  %733 = vmatmul.mubr.f32.gmra.mrb[0].mxu0 %v654
  %v734 = vpop.f32.mrb[0].mxu0
  %v735 = vadd.f32 %v643, %v734
  %v736 = vpop.f32.mrb[0].mxu0
  %v737 = vadd.f32 %v647, %v736
  %738 = vmatprep.mubr.f32.mxu0 0.0
  %739 = vmatmul.mubr.f32.gmra.mrb[0].mxu0 %v657
  %v740 = vpop.f32.mrb[0].mxu0
  %v741 = vadd.f32 %v643, %v740
  %v742 = vpop.f32.mrb[0].mxu0
  %v743 = vadd.f32 %v647, %v742
  %744 = vmatprep.mubr.f32.mxu0 0.0
  %745 = vmatmul.mubr.f32.gmra.mrb[0].mxu0 %v660
  %v746 = vpop.f32.mrb[0].mxu0
  %v747 = vadd.f32 %v643, %v746
  %v748 = vpop.f32.mrb[0].mxu0
  %v749 = vadd.f32 %v647, %v748
  %750 = vdwg.mxu0
  %751 = vst [vmem:[%s15] sm:$0xff] %v729
  %752 = vst [vmem:[%s15 + $0x8] sm:$0xff] %v731
  %753 = vst [vmem:[%s15 + $0x10] sm:$0xff] %v735
  %754 = vst [vmem:[%s15 + $0x18] sm:$0xff] %v737
  %755 = vst [vmem:[%s15 + $0x20] sm:$0xff] %v741
  %756 = vst [vmem:[%s15 + $0x28] sm:$0xff] %v743
  %757 = vst [vmem:[%s15 + $0x30] sm:$0xff] %v747
  %758 = vst [vmem:[%s15 + $0x38] sm:$0xff] %v749
  // Predicated region
  $region62: #{swevoice_forward.5} parent=0 // pred_check
    _
  $region63: #{swevoice_forward.5} parent=0 // pred_check_branch
    %760 = sbr.rel (0) target = $region65
  $region64: #{swevoice_forward.5} parent=0 // pred_region
    _
  $region65: #{swevoice_forward.5} parent=0 // pred_fallthru
    _
  // Predicated region
  $region66: #{swevoice_forward.5} parent=0 // pred_check
    _
  $region67: #{swevoice_forward.5} parent=0 // pred_check_branch
    %762 = sbr.rel (0) target = $region69
  $region68: #{swevoice_forward.5} parent=0 // pred_region
    _
  $region69: #{swevoice_forward.5} parent=0 // pred_fallthru
    _

// kernel: swevoice_forward.6
$region0: #{swevoice_forward.6}
  #allocation0 [shape = 'u32[]', space=smem, size = 0x4, offset = 0x4, fixed_abs, tag = 'smem constant byte address 0x4 - core index']
  #allocation1 [shape = 'u32[144,128]{1,0:T(1,128)}', space=vmem, size = 0x12000, scoped, tag = 'internal scratch']
  #allocation2 [shape = 'f32[2,32]{1,0:T(2,128)}', space=vmem, size = 0x400, scoped, tag = 'scratch operand']
  #allocation3 [shape = 'f32[2,32]{1,0:T(2,128)}', space=vmem, size = 0x400, scoped, tag = 'scratch operand']
  %s0 = inlined_call_operand.vmem [shape: f32[16,2,256], index: 0, kind: input, shape index: {}]
  %s1 = inlined_call_operand.vmem [shape: f32[2,32,128], index: 1, kind: input, shape index: {}]
  %s2 = inlined_call_operand.vmem [shape: f32[2,2,32], index: 2, kind: input, shape index: {}]
  %s3 = inlined_call_operand.vmem [shape: f32[2,2,32], index: 3, kind: input, shape index: {}]
  %s4 = inlined_call_operand.vmem [shape: f32[2,16,2,32], index: 4, kind: output, shape index: {0}]
  %s5 = inlined_call_operand.vmem [shape: f32[2,2,32], index: 5, kind: output, shape index: {1}]
  %s6 = inlined_call_operand.vmem [shape: f32[2,2,32], index: 6, kind: output, shape index: {2}]
  %7 = xla_tuple %s4, %s5, %s6
  %s8 = sld [smem:[#allocation0]]
  $region114: #{swevoice_forward.6} parent=0
    _
  %s10 = ssub.s32 1, %s8
  %s11 = scalar_select 0, %s10, %s8
  $region1: #{swevoice_forward.6} parent=0
    #allocation4 [shape = 'u8[32768]{0}', space=vmem, size = 0x8000, scoped, tag = 'input window, operand 0']
    loop: start=0, step=1, limit=4
    $region2: #{swevoice_forward.6} parent=1 // loop_pre_header
      _
    $region3: #{swevoice_forward.6} parent=1 // loop_header
      %s13 = sphi 0, %s17
      %p14 = scmp.ge.s32.totalorder %s13, 4
      %s20 = sphi 0, %s32
      %s21 = sphi 0, %s28
      %s22 = sphi 0, %s20
      %s23 = sphi 0, %s21
      %s24 = sphi 0, %s22
      %s25 = sphi 0, %s23
      %s47 = sphi 0, %s49
      %s50 = sphi 0, %s47
      %s51 = sphi 0, %s50
      %s67 = sphi 0, %s51
      %s73 = sphi 0, %s75
      %s76 = sphi 0, %s73
      %s77 = sphi 0, %s76
      %s93 = sphi 0, %s77
      %s99 = sphi 0, %s101
      %s102 = sphi 0, %s99
      %s103 = sphi 0, %s102
      %s119 = sphi 0, %s103
      %s125 = sphi 0, %s127
      %s128 = sphi 0, %s125
      %s129 = sphi 0, %s128
      %s145 = sphi 0, %s129
      %s163 = sphi 0, %s165
      %s166 = sphi 0, %s163
      %s167 = sphi 0, %s166
      %s183 = sphi 0, %s167
      %s189 = sphi 0, %s191
      %s192 = sphi 0, %s189
      %s193 = sphi 0, %s192
      %s209 = sphi 0, %s193
      %s215 = sphi 0, %s217
      %s218 = sphi 0, %s215
      %s219 = sphi 0, %s218
      %s235 = sphi 0, %s219
    $region4: #{swevoice_forward.6} parent=1 // loop_header_branch
      %16 = sbr.rel (%p14) target = $region8
    $region5: #{swevoice_forward.6} parent=1 // loop_body
      %s18 = ssub.s32 %s13, 1
      %s19 = ssub.s32 %s13, 2
      %s26 = sadd.s32 1, %s21
      %p27 = scmp.ge.s32.totalorder %s26, 1
      %s28 = scalar_select %p27, 0, %s26
      %s29 = sadd.s32 1, %s20
      %s30 = scalar_select %p27, %s29, %s20
      %p31 = scmp.ge.s32.totalorder %s30, 2
      %s32 = scalar_select %p31, 0, %s30
      %s33 = ssub.s32 1, %s20
      %s34 = smul.u32 %s33, %s21
      %s35 = ssub.s32 0, %s21
      %s36 = smul.u32 %s20, %s35
      %s37 = sadd.s32 %s34, %s36
      %s38 = ssub.s32 1, %s32
      %s39 = smul.u32 %s38, %s28
      %s40 = ssub.s32 0, %s28
      %s41 = smul.u32 %s32, %s40
      %s42 = sadd.s32 %s39, %s41
      %s43 = ssub.s32 %s37, %s42
      %s44 = ssub.s32 %s20, %s32
      %s45 = sor.u32 %s43, %s44
      %p46 = scmp.eq.s32.totalorder %s45, 0
      %s48 = sadd.s32 %s47, 1
      %s49 = scalar_select %p46, %s47, %s48
      %p52 = pneg %p46
      %p53 = scmp.eq.s32.totalorder %s13, 1
      %p54 = por %p52, %p53
      %p55 = scmp.ne.s32.totalorder %s47, %s50
      %p56 = scmp.eq.s32.totalorder %s13, 0
      %p57 = por %p55, %p56
      %p58 = scmp.ne.s32.totalorder %s47, %s50
      %p59 = scmp.eq.s32.totalorder %s18, 1
      %p60 = por %p58, %p59
      %p61 = scmp.ne.s32.totalorder %s50, %s51
      %p62 = scmp.eq.s32.totalorder %s18, 0
      %p63 = por %p61, %p62
      %p64 = scmp.ne.s32.totalorder %s50, %s51
      %p65 = scmp.eq.s32.totalorder %s19, 1
      %p66 = por %p64, %p65
      %p68 = scmp.ne.s32.totalorder %s51, %s67
      %p69 = scmp.eq.s32.totalorder %s19, 0
      %p70 = por %p68, %p69
      %s71 = ssub.s32 %s20, %s32
      %p72 = scmp.eq.s32.totalorder %s71, 0
      %s74 = sadd.s32 %s73, 1
      %s75 = scalar_select %p72, %s73, %s74
      %p78 = pneg %p72
      %p79 = scmp.eq.s32.totalorder %s13, 1
      %p80 = por %p78, %p79
      %p81 = scmp.ne.s32.totalorder %s73, %s76
      %p82 = scmp.eq.s32.totalorder %s13, 0
      %p83 = por %p81, %p82
      %p84 = scmp.ne.s32.totalorder %s73, %s76
      %p85 = scmp.eq.s32.totalorder %s18, 1
      %p86 = por %p84, %p85
      %p87 = scmp.ne.s32.totalorder %s76, %s77
      %p88 = scmp.eq.s32.totalorder %s18, 0
      %p89 = por %p87, %p88
      %p90 = scmp.ne.s32.totalorder %s76, %s77
      %p91 = scmp.eq.s32.totalorder %s19, 1
      %p92 = por %p90, %p91
      %p94 = scmp.ne.s32.totalorder %s77, %s93
      %p95 = scmp.eq.s32.totalorder %s19, 0
      %p96 = por %p94, %p95
      %s97 = ssub.s32 %s20, %s32
      %p98 = scmp.eq.s32.totalorder %s97, 0
      %s100 = sadd.s32 %s99, 1
      %s101 = scalar_select %p98, %s99, %s100
      %p104 = pneg %p98
      %p105 = scmp.eq.s32.totalorder %s13, 1
      %p106 = por %p104, %p105
      %p107 = scmp.ne.s32.totalorder %s99, %s102
      %p108 = scmp.eq.s32.totalorder %s13, 0
      %p109 = por %p107, %p108
      %p110 = scmp.ne.s32.totalorder %s99, %s102
      %p111 = scmp.eq.s32.totalorder %s18, 1
      %p112 = por %p110, %p111
      %p113 = scmp.ne.s32.totalorder %s102, %s103
      %p114 = scmp.eq.s32.totalorder %s18, 0
      %p115 = por %p113, %p114
      %p116 = scmp.ne.s32.totalorder %s102, %s103
      %p117 = scmp.eq.s32.totalorder %s19, 1
      %p118 = por %p116, %p117
      %p120 = scmp.ne.s32.totalorder %s103, %s119
      %p121 = scmp.eq.s32.totalorder %s19, 0
      %p122 = por %p120, %p121
      %s123 = ssub.s32 %s20, %s32
      %p124 = scmp.eq.s32.totalorder %s123, 0
      %s126 = sadd.s32 %s125, 1
      %s127 = scalar_select %p124, %s125, %s126
      %p130 = pneg %p124
      %p131 = scmp.eq.s32.totalorder %s13, 1
      %p132 = por %p130, %p131
      %p133 = scmp.ne.s32.totalorder %s125, %s128
      %p134 = scmp.eq.s32.totalorder %s13, 0
      %p135 = por %p133, %p134
      %p136 = scmp.ne.s32.totalorder %s125, %s128
      %p137 = scmp.eq.s32.totalorder %s18, 1
      %p138 = por %p136, %p137
      %p139 = scmp.ne.s32.totalorder %s128, %s129
      %p140 = scmp.eq.s32.totalorder %s18, 0
      %p141 = por %p139, %p140
      %p142 = scmp.ne.s32.totalorder %s128, %s129
      %p143 = scmp.eq.s32.totalorder %s19, 1
      %p144 = por %p142, %p143
      %p146 = scmp.ne.s32.totalorder %s129, %s145
      %p147 = scmp.eq.s32.totalorder %s19, 0
      %p148 = por %p146, %p147
      %s149 = ssub.s32 1, %s20
      %s150 = smul.u32 %s149, %s21
      %s151 = ssub.s32 0, %s21
      %s152 = smul.u32 %s20, %s151
      %s153 = sadd.s32 %s150, %s152
      %s154 = ssub.s32 1, %s32
      %s155 = smul.u32 %s154, %s28
      %s156 = ssub.s32 0, %s28
      %s157 = smul.u32 %s32, %s156
      %s158 = sadd.s32 %s155, %s157
      %s159 = ssub.s32 %s20, %s32
      %s160 = ssub.s32 %s153, %s158
      %s161 = sor.u32 %s159, %s160
      %p162 = scmp.eq.s32.totalorder %s161, 0
      %s164 = sadd.s32 %s163, 1
      %s165 = scalar_select %p162, %s163, %s164
      %p168 = pneg %p162
      %p169 = scmp.eq.s32.totalorder %s13, 1
      %p170 = por %p168, %p169
      %p171 = scmp.ne.s32.totalorder %s163, %s166
      %p172 = scmp.eq.s32.totalorder %s13, 0
      %p173 = por %p171, %p172
      %p174 = scmp.ne.s32.totalorder %s163, %s166
      %p175 = scmp.eq.s32.totalorder %s18, 1
      %p176 = por %p174, %p175
      %p177 = scmp.ne.s32.totalorder %s166, %s167
      %p178 = scmp.eq.s32.totalorder %s18, 0
      %p179 = por %p177, %p178
      %p180 = scmp.ne.s32.totalorder %s166, %s167
      %p181 = scmp.eq.s32.totalorder %s19, 1
      %p182 = por %p180, %p181
      %p184 = scmp.ne.s32.totalorder %s167, %s183
      %p185 = scmp.eq.s32.totalorder %s19, 0
      %p186 = por %p184, %p185
      %s187 = ssub.s32 %s20, %s32
      %p188 = scmp.eq.s32.totalorder %s187, 0
      %s190 = sadd.s32 %s189, 1
      %s191 = scalar_select %p188, %s189, %s190
      %p194 = pneg %p188
      %p195 = scmp.eq.s32.totalorder %s13, 1
      %p196 = por %p194, %p195
      %p197 = scmp.ne.s32.totalorder %s189, %s192
      %p198 = scmp.eq.s32.totalorder %s13, 0
      %p199 = por %p197, %p198
      %p200 = scmp.ne.s32.totalorder %s189, %s192
      %p201 = scmp.eq.s32.totalorder %s18, 1
      %p202 = por %p200, %p201
      %p203 = scmp.ne.s32.totalorder %s192, %s193
      %p204 = scmp.eq.s32.totalorder %s18, 0
      %p205 = por %p203, %p204
      %p206 = scmp.ne.s32.totalorder %s192, %s193
      %p207 = scmp.eq.s32.totalorder %s19, 1
      %p208 = por %p206, %p207
      %p210 = scmp.ne.s32.totalorder %s193, %s209
      %p211 = scmp.eq.s32.totalorder %s19, 0
      %p212 = por %p210, %p211
      %s213 = ssub.s32 %s20, %s32
      %p214 = scmp.eq.s32.totalorder %s213, 0
      %s216 = sadd.s32 %s215, 1
      %s217 = scalar_select %p214, %s215, %s216
      %p220 = pneg %p214
      %p221 = scmp.eq.s32.totalorder %s13, 1
      %p222 = por %p220, %p221
      %p223 = scmp.ne.s32.totalorder %s215, %s218
      %p224 = scmp.eq.s32.totalorder %s13, 0
      %p225 = por %p223, %p224
      %p226 = scmp.ne.s32.totalorder %s215, %s218
      %p227 = scmp.eq.s32.totalorder %s18, 1
      %p228 = por %p226, %p227
      %p229 = scmp.ne.s32.totalorder %s218, %s219
      %p230 = scmp.eq.s32.totalorder %s18, 0
      %p231 = por %p229, %p230
      %p232 = scmp.ne.s32.totalorder %s218, %s219
      %p233 = scmp.eq.s32.totalorder %s19, 1
      %p234 = por %p232, %p233
      %p236 = scmp.ne.s32.totalorder %s219, %s235
      %p237 = scmp.eq.s32.totalorder %s19, 0
      %p238 = por %p236, %p237
      %p239 = scmp.le.s32.totalorder 1, %s13
      %p240 = scmp.lt.s32.totalorder %s13, 3
      %p241 = pnand %p239, %p240
      %p242 = pneg %p241
      // Predicated region
      $region9: #{swevoice_forward.6} parent=5 // pred_check
        _
      $region10: #{swevoice_forward.6} parent=5 // pred_check_branch
        %244 = sbr.rel (%p241) target = $region12
      $region11: #{swevoice_forward.6} parent=5 // pred_region
        %s245 = ssub.s32 %s13, 1
      $region12: #{swevoice_forward.6} parent=5 // pred_fallthru
        _
      %p246 = scmp.lt.s32.totalorder %s13, 2
      // Predicated region
      $region13: #{swevoice_forward.6} parent=5 // pred_check
        %p247 = pneg %p246
      $region14: #{swevoice_forward.6} parent=5 // pred_check_branch
        %249 = sbr.rel (%p247) target = $region16
      $region15: #{swevoice_forward.6} parent=5 // pred_region
        // Predicated region
        $region17: #{swevoice_forward.6} parent=15 // pred_check
          %p250 = pneg %p57
        $region18: #{swevoice_forward.6} parent=15 // pred_check_branch
          %252 = sbr.rel (%p250) target = $region20
        $region19: #{swevoice_forward.6} parent=15 // pred_region
          %s253 = sand.u32 %s47, 1
          %s254 = sand.u32 %s47, 1
          %s255 = smul.addr %s254, 32
          %s256 = scalar_lea.vmem [#allocation4], %s255
          %s257 = ssub.s32 1, %s20
          %s258 = smul.u32 %s257, %s21
          %s259 = ssub.s32 0, %s21
          %s260 = smul.u32 %s20, %s259
          %s261 = sadd.s32 %s258, %s260
          %s262 = smul.u32 16, %s261
          %s263 = smul.addr %s262, 2
          %s264 = sadd.s32 %s20, %s263
          %s265 = smul.addr %s264, 2
          %s266 = scalar_lea.vmem %s0, %s265
          // Predicated region
          $region21: #{swevoice_forward.6} parent=19 // pred_check
            _
          $region22: #{swevoice_forward.6} parent=19 // pred_check_branch
            %268 = sbr.rel (0) target = $region24
          $region23: #{swevoice_forward.6} parent=19 // pred_region
            // Predicated region
            $region25: #{swevoice_forward.6} parent=23 // pred_check
              _
            $region26: #{swevoice_forward.6} parent=23 // pred_check_branch
              %270 = sbr.rel target = $region28
            $region27: #{swevoice_forward.6} parent=23 // pred_region
              // Predicated region
              $region40: #{swevoice_forward.6} parent=27 // pred_check
                _
              $region41: #{swevoice_forward.6} parent=27 // pred_check_branch
                %315 = sbr.rel (0) target = $region43
              $region42: #{swevoice_forward.6} parent=27 // pred_region
                loop: start=0, step=1, limit=1
                $region44: #{swevoice_forward.6} parent=42 // loop_pre_header
                  _
                $region45: #{swevoice_forward.6} parent=42 // loop_header
                  %s317 = sphi 0, %s321
                  %p318 = scmp.ge.s32.totalorder %s317, 1
                  %s322 = sphi %s266, %s266
                  %s323 = sphi %s256, %s256
                $region46: #{swevoice_forward.6} parent=42 // loop_header_branch
                  %320 = sbr.rel (%p318) target = $region50
                $region47: #{swevoice_forward.6} parent=42 // loop_body
                  _
                $region48: #{swevoice_forward.6} parent=42 // loop_footer
                  %s321 = sadd.s32 1, %s317
                $region49: #{swevoice_forward.6} parent=42 // loop_footer_branch
                  %316 = sbr.rel target = $region45
                $region50: #{swevoice_forward.6} parent=42 // loop_exit
                  _
                loop: start=0, step=1, limit=1
                $region51: #{swevoice_forward.6} parent=42 // loop_pre_header
                  _
                $region52: #{swevoice_forward.6} parent=42 // loop_header
                  %s326 = sphi 0, %s330
                  %p327 = scmp.ge.s32.totalorder %s326, 1
                  %s331 = sphi %s266, %s266
                  %s332 = sphi %s256, %s256
                $region53: #{swevoice_forward.6} parent=42 // loop_header_branch
                  %329 = sbr.rel (%p327) target = $region57
                $region54: #{swevoice_forward.6} parent=42 // loop_body
                  %v333 = vld [vmem:[%s331] sm:$0x3]
                  %334 = vst [vmem:[%s332] sm:$0x3] %v333
                  %v335 = vld [vmem:[%s331 + $0x4] sm:$0x3]
                  %336 = vst [vmem:[%s332 + $0x2] sm:$0x3] %v335
                  %v337 = vld [vmem:[%s331 + $0x8] sm:$0x3]
                  %338 = vst [vmem:[%s332 + $0x4] sm:$0x3] %v337
                  %v339 = vld [vmem:[%s331 + $0xc] sm:$0x3]
                  %340 = vst [vmem:[%s332 + $0x6] sm:$0x3] %v339
                  %v341 = vld [vmem:[%s331 + $0x10] sm:$0x3]
                  %342 = vst [vmem:[%s332 + $0x8] sm:$0x3] %v341
                  %v343 = vld [vmem:[%s331 + $0x14] sm:$0x3]
                  %344 = vst [vmem:[%s332 + $0xa] sm:$0x3] %v343
                  %v345 = vld [vmem:[%s331 + $0x18] sm:$0x3]
                  %346 = vst [vmem:[%s332 + $0xc] sm:$0x3] %v345
                  %v347 = vld [vmem:[%s331 + $0x1c] sm:$0x3]
                  %348 = vst [vmem:[%s332 + $0xe] sm:$0x3] %v347
                  %v349 = vld [vmem:[%s331 + $0x20] sm:$0x3]
                  %350 = vst [vmem:[%s332 + $0x10] sm:$0x3] %v349
                  %v351 = vld [vmem:[%s331 + $0x24] sm:$0x3]
                  %352 = vst [vmem:[%s332 + $0x12] sm:$0x3] %v351
                  %v353 = vld [vmem:[%s331 + $0x28] sm:$0x3]
                  %354 = vst [vmem:[%s332 + $0x14] sm:$0x3] %v353
                  %v355 = vld [vmem:[%s331 + $0x2c] sm:$0x3]
                  %356 = vst [vmem:[%s332 + $0x16] sm:$0x3] %v355
                  %v357 = vld [vmem:[%s331 + $0x30] sm:$0x3]
                  %358 = vst [vmem:[%s332 + $0x18] sm:$0x3] %v357
                  %v359 = vld [vmem:[%s331 + $0x34] sm:$0x3]
                  %360 = vst [vmem:[%s332 + $0x1a] sm:$0x3] %v359
                  %v361 = vld [vmem:[%s331 + $0x38] sm:$0x3]
                  %362 = vst [vmem:[%s332 + $0x1c] sm:$0x3] %v361
                  %v363 = vld [vmem:[%s331 + $0x3c] sm:$0x3]
                  %364 = vst [vmem:[%s332 + $0x1e] sm:$0x3] %v363
                $region55: #{swevoice_forward.6} parent=42 // loop_footer
                  %s330 = sadd.s32 1, %s326
                $region56: #{swevoice_forward.6} parent=42 // loop_footer_branch
                  %325 = sbr.rel target = $region52
                $region57: #{swevoice_forward.6} parent=42 // loop_exit
                  _
              $region43: #{swevoice_forward.6} parent=27 // pred_fallthru
                _
            $region28: #{swevoice_forward.6} parent=23 // pred_fallthru
              _
            // Predicated region
            $region29: #{swevoice_forward.6} parent=23 // pred_check
              _
            $region30: #{swevoice_forward.6} parent=23 // pred_check_branch
              %272 = sbr.rel (0) target = $region32
            $region31: #{swevoice_forward.6} parent=23 // pred_region
              loop: start=0, step=1, limit=1
              $region33: #{swevoice_forward.6} parent=31 // loop_pre_header
                _
              $region34: #{swevoice_forward.6} parent=31 // loop_header
                %s275 = sphi 0, %s279
                %p276 = scmp.ge.s32.totalorder %s275, 1
                %s280 = sphi %s266, %s266
                %s281 = sphi %s256, %s256
              $region35: #{swevoice_forward.6} parent=31 // loop_header_branch
                %278 = sbr.rel (%p276) target = $region39
              $region36: #{swevoice_forward.6} parent=31 // loop_body
                %v282 = vld [vmem:[%s280] sm:$0x3]
                %283 = vst [vmem:[%s281] sm:$0x3] %v282
                %v284 = vld [vmem:[%s280 + $0x4] sm:$0x3]
                %285 = vst [vmem:[%s281 + $0x2] sm:$0x3] %v284
                %v286 = vld [vmem:[%s280 + $0x8] sm:$0x3]
                %287 = vst [vmem:[%s281 + $0x4] sm:$0x3] %v286
                %v288 = vld [vmem:[%s280 + $0xc] sm:$0x3]
                %289 = vst [vmem:[%s281 + $0x6] sm:$0x3] %v288
                %v290 = vld [vmem:[%s280 + $0x10] sm:$0x3]
                %291 = vst [vmem:[%s281 + $0x8] sm:$0x3] %v290
                %v292 = vld [vmem:[%s280 + $0x14] sm:$0x3]
                %293 = vst [vmem:[%s281 + $0xa] sm:$0x3] %v292
                %v294 = vld [vmem:[%s280 + $0x18] sm:$0x3]
                %295 = vst [vmem:[%s281 + $0xc] sm:$0x3] %v294
                %v296 = vld [vmem:[%s280 + $0x1c] sm:$0x3]
                %297 = vst [vmem:[%s281 + $0xe] sm:$0x3] %v296
                %v298 = vld [vmem:[%s280 + $0x20] sm:$0x3]
                %299 = vst [vmem:[%s281 + $0x10] sm:$0x3] %v298
                %v300 = vld [vmem:[%s280 + $0x24] sm:$0x3]
                %301 = vst [vmem:[%s281 + $0x12] sm:$0x3] %v300
                %v302 = vld [vmem:[%s280 + $0x28] sm:$0x3]
                %303 = vst [vmem:[%s281 + $0x14] sm:$0x3] %v302
                %v304 = vld [vmem:[%s280 + $0x2c] sm:$0x3]
                %305 = vst [vmem:[%s281 + $0x16] sm:$0x3] %v304
                %v306 = vld [vmem:[%s280 + $0x30] sm:$0x3]
                %307 = vst [vmem:[%s281 + $0x18] sm:$0x3] %v306
                %v308 = vld [vmem:[%s280 + $0x34] sm:$0x3]
                %309 = vst [vmem:[%s281 + $0x1a] sm:$0x3] %v308
                %v310 = vld [vmem:[%s280 + $0x38] sm:$0x3]
                %311 = vst [vmem:[%s281 + $0x1c] sm:$0x3] %v310
                %v312 = vld [vmem:[%s280 + $0x3c] sm:$0x3]
                %313 = vst [vmem:[%s281 + $0x1e] sm:$0x3] %v312
              $region37: #{swevoice_forward.6} parent=31 // loop_footer
                %s279 = sadd.s32 1, %s275
              $region38: #{swevoice_forward.6} parent=31 // loop_footer_branch
                %274 = sbr.rel target = $region34
              $region39: #{swevoice_forward.6} parent=31 // loop_exit
                _
            $region32: #{swevoice_forward.6} parent=23 // pred_fallthru
              _
          $region24: #{swevoice_forward.6} parent=19 // pred_fallthru
            _
          %365 = vnop
        $region20: #{swevoice_forward.6} parent=15 // pred_fallthru
          _
        // Predicated region
        $region58: #{swevoice_forward.6} parent=15 // pred_check
          %p366 = pneg %p83
        $region59: #{swevoice_forward.6} parent=15 // pred_check_branch
          %368 = sbr.rel (%p366) target = $region61
        $region60: #{swevoice_forward.6} parent=15 // pred_region
          %p369 = scmp.lt.s32.totalorder %s20, 1
          %s370 = scalar_select %p369, %s20, 1
          %s371 = smul.addr %s370, 4
          %s372 = smul.addr %s371, 8
          %s373 = scalar_lea.vmem %s1, %s372
        $region61: #{swevoice_forward.6} parent=15 // pred_fallthru
          _
        // Predicated region
        $region62: #{swevoice_forward.6} parent=15 // pred_check
          %p374 = pneg %p109
        $region63: #{swevoice_forward.6} parent=15 // pred_check_branch
          %376 = sbr.rel (%p374) target = $region65
        $region64: #{swevoice_forward.6} parent=15 // pred_region
          %p377 = scmp.lt.s32.totalorder %s20, 1
          %s378 = scalar_select %p377, %s20, 1
          %s379 = smul.addr %s378, 2
          %s380 = scalar_lea.vmem %s2, %s379
        $region65: #{swevoice_forward.6} parent=15 // pred_fallthru
          _
        // Predicated region
        $region66: #{swevoice_forward.6} parent=15 // pred_check
          %p381 = pneg %p135
        $region67: #{swevoice_forward.6} parent=15 // pred_check_branch
          %383 = sbr.rel (%p381) target = $region69
        $region68: #{swevoice_forward.6} parent=15 // pred_region
          %p384 = scmp.lt.s32.totalorder %s20, 1
          %s385 = scalar_select %p384, %s20, 1
          %s386 = smul.addr %s385, 2
          %s387 = scalar_lea.vmem %s3, %s386
        $region69: #{swevoice_forward.6} parent=15 // pred_fallthru
          _
      $region16: #{swevoice_forward.6} parent=5 // pred_fallthru
        _
      %p388 = scmp.le.s32.totalorder 1, %s13
      %p389 = scmp.lt.s32.totalorder %s13, 3
      %p390 = pnand %p388, %p389
      %p391 = pneg %p390
      // Predicated region
      $region70: #{swevoice_forward.6} parent=5 // pred_check
        _
      $region71: #{swevoice_forward.6} parent=5 // pred_check_branch
        %393 = sbr.rel (%p390) target = $region73
      $region72: #{swevoice_forward.6} parent=5 // pred_region
        %s394 = ssub.s32 %s13, 1
        %s395 = sand.u32 %s50, 1
        %s396 = sand.u32 %s50, 1
        %s397 = smul.addr %s396, 32
        %s398 = scalar_lea.vmem [#allocation4], %s397
        // Predicated region
        $region74: #{swevoice_forward.6} parent=72 // pred_check
          %p399 = pneg %p63
        $region75: #{swevoice_forward.6} parent=72 // pred_check_branch
          %401 = sbr.rel (%p399) target = $region77
        $region76: #{swevoice_forward.6} parent=72 // pred_region
          _
        $region77: #{swevoice_forward.6} parent=72 // pred_fallthru
          _
        %s402 = sand.u32 %s50, 1
        %s403 = sand.u32 %s50, 1
        %s404 = smul.addr %s403, 32
        %s405 = scalar_lea.vmem [#allocation4], %s404
        %p406 = pneg %p63
        %p407 = pneg %p60
        %p408 = scmp.lt.s32.totalorder %s22, 1
        %s409 = scalar_select %p408, %s22, 1
        %s410 = smul.addr %s409, 4
        %s411 = smul.addr %s410, 8
        %s412 = scalar_lea.vmem %s1, %s411
        %p413 = pneg %p89
        %p414 = pneg %p86
        %p415 = scmp.lt.s32.totalorder %s22, 1
        %s416 = scalar_select %p415, %s22, 1
        %s417 = smul.addr %s416, 2
        %s418 = scalar_lea.vmem %s2, %s417
        %p419 = pneg %p115
        %p420 = pneg %p112
        %p421 = scmp.lt.s32.totalorder %s22, 1
        %s422 = scalar_select %p421, %s22, 1
        %s423 = smul.addr %s422, 2
        %s424 = scalar_lea.vmem %s3, %s423
        %p425 = pneg %p141
        %p426 = pneg %p138
        %p427 = pneg %p179
        %p428 = pneg %p176
        %s429 = ssub.s32 1, %s22
        %s430 = smul.u32 %s429, %s23
        %s431 = ssub.s32 0, %s23
        %s432 = smul.u32 %s22, %s431
        %s433 = sadd.s32 %s430, %s432
        %s434 = smul.u32 16, %s433
        %p435 = scmp.lt.s32.totalorder %s22, 1
        %s436 = scalar_select %p435, %s22, 1
        %p437 = scmp.lt.s32.totalorder %s434, 15
        %s438 = scalar_select %p437, %s434, 15
        %s439 = smul.addr %s436, 16
        %s440 = sadd.s32 %s438, %s439
        %s441 = smul.addr %s440, 2
        %s442 = scalar_lea.vmem %s4, %s441
        %p443 = pneg %p205
        %p444 = pneg %p202
        %p445 = scmp.lt.s32.totalorder %s22, 1
        %s446 = scalar_select %p445, %s22, 1
        %s447 = smul.addr %s446, 2
        %s448 = scalar_lea.vmem %s5, %s447
        %p449 = pneg %p231
        %p450 = pneg %p228
        %p451 = scmp.lt.s32.totalorder %s22, 1
        %s452 = scalar_select %p451, %s22, 1
        %s453 = smul.addr %s452, 2
        %s454 = scalar_lea.vmem %s6, %s453
        %s455 = ssub.s32 1, %s22
        %s456 = smul.u32 %s455, %s23
        %s457 = ssub.s32 0, %s23
        %s458 = smul.u32 %s22, %s457
        %s459 = sadd.s32 %s456, %s458
        %s460 = smul.u32 16, %s459
        %p461 = scmp.lt.s32.totalorder %s22, 1
        %s462 = scalar_select %p461, %s22, 1
        %s463 = smul.addr %s462, 4
        %s464 = smul.addr %s463, 8
        %s465 = scalar_lea.vmem %s1, %s464
        %p466 = scmp.lt.s32.totalorder %s22, 1
        %s467 = scalar_select %p466, %s22, 1
        %s468 = smul.addr %s467, 2
        %s469 = scalar_lea.vmem %s2, %s468
        %p470 = scmp.lt.s32.totalorder %s22, 1
        %s471 = scalar_select %p470, %s22, 1
        %s472 = smul.addr %s471, 2
        %s473 = scalar_lea.vmem %s3, %s472
        %s474 = ssub.s32 1, %s22
        %s475 = smul.u32 %s474, %s23
        %s476 = ssub.s32 0, %s23
        %s477 = smul.u32 %s22, %s476
        %s478 = sadd.s32 %s475, %s477
        %s479 = smul.u32 16, %s478
        %p480 = scmp.lt.s32.totalorder %s22, 1
        %s481 = scalar_select %p480, %s22, 1
        %p482 = scmp.lt.s32.totalorder %s479, 15
        %s483 = scalar_select %p482, %s479, 15
        %s484 = smul.addr %s481, 16
        %s485 = sadd.s32 %s483, %s484
        %s486 = smul.addr %s485, 2
        %s487 = scalar_lea.vmem %s4, %s486
        %s488 = ssub.s32 1, %s22
        %s489 = smul.u32 %s488, %s23
        %s490 = ssub.s32 0, %s23
        %s491 = smul.u32 %s22, %s490
        %s492 = sadd.s32 %s489, %s491
        %s493 = smul.u32 16, %s492
        %p494 = scmp.lt.s32.totalorder %s22, 1
        %s495 = scalar_select %p494, %s22, 1
        %s496 = smul.addr %s495, 2
        %s497 = scalar_lea.vmem %s5, %s496
        %p498 = scmp.lt.s32.totalorder %s22, 1
        %s499 = scalar_select %p498, %s22, 1
        %s500 = smul.addr %s499, 2
        %s501 = scalar_lea.vmem %s6, %s500
        %p502 = scmp.eq.s32.totalorder %s23, 0
        // Predicated region
        $region78: #{swevoice_forward.6} parent=72 // pred_check
          %p503 = pneg %p502
        $region79: #{swevoice_forward.6} parent=72 // pred_check_branch
          %505 = sbr.rel (%p503) target = $region81
        $region80: #{swevoice_forward.6} parent=72 // pred_region
          %v506 = vld [vmem:[%s469] sm:$0x3]
          %vm507 = vcmask 254976
          %508 = vst.msk [vmem:[#allocation2] sm:$0x3] %vm507, %v506
          %v509 = vld [vmem:[%s473] sm:$0x3]
          %510 = vst.msk [vmem:[#allocation3] sm:$0x3] %vm507, %v509
        $region81: #{swevoice_forward.6} parent=72 // pred_fallthru
          _
        %v511 = vld [vmem:[%s465] sm:$0xff]
        %v512 = vld [vmem:[%s465 + $0x8] sm:$0xff]
        %v513 = vld [vmem:[%s465 + $0x10] sm:$0xff]
        %v514 = vld [vmem:[%s465 + $0x18] sm:$0xff]
        %v515 = vlaneseq
        %v516 = vand.u32 %v515, 127
        %vm517 = vcmp.ge.s32.totalorder %v516, 64
        %vm518 = vcmp.lt.s32.totalorder %v516, 96
        %vm519 = vmand %vm517, %vm518
        %v520 = vld [vmem:[#allocation2] sm:$0x3]
        %v521 = vld [vmem:[#allocation3] sm:$0x3]
        %s522 = smul.u32 %s22, 15
        %s523 = smul.u32 %s522, 2
        %s524 = scalar_lea.vmem %s398, %s523 [#allocation4]
        %v525 = vld [vmem:[%s524] sm:$0x3]
        %vm526 = vcmask 261120
        %v528 = vsel %vm526, %v520, 0
        %530 = vmatprep.subr.mxu0 0.0
        %531 = vmatpush1.msra.mxu0 %v511
        %532 = vmatprep.subr.mxu0 0.0
        %533 = vmatpush1.msra.mxu0 %v512
        %534 = vmatprep.subr.mxu0 0.0
        %535 = vmatpush1.msra.mxu0 %v513
        %536 = vmatprep.subr.mxu0 0.0
        %537 = vmatpush1.msra.mxu0 %v514
        %538 = vmatprep.subr.mxu0 0.0
        %539 = vmatpush1.msra.mxu0 0.0
        %540 = vmatprep.subr.mxu0 0.0
        %541 = vmatpush1.msra.mxu0 0.0
        %542 = vmatprep.subr.mxu0 0.0
        %543 = vmatpush1.msra.mxu0 0.0
        %544 = vmatprep.subr.mxu0 0.0
        %545 = vmatpush1.msra.mxu0 0.0
        %546 = vmatprep.subr.mxu0 0.0
        %547 = vmatpush1.msra.mxu0 0.0
        %548 = vmatprep.subr.mxu0 0.0
        %549 = vmatpush1.msra.mxu0 0.0
        %550 = vmatprep.subr.mxu0 0.0
        %551 = vmatpush1.msra.mxu0 0.0
        %552 = vmatprep.subr.mxu0 0.0
        %553 = vmatpush1.msra.mxu0 0.0
        %554 = vmatprep.subr.mxu0 0.0
        %555 = vmatpush1.msra.mxu0 0.0
        %556 = vmatprep.subr.mxu0 0.0
        %557 = vmatpush1.msra.mxu0 0.0
        %558 = vmatprep.subr.mxu0 0.0
        %559 = vmatpush1.msra.mxu0 0.0
        %560 = vmatprep.subr.mxu0 0.0
        %561 = vmatpush1.msra.mxu0 0.0
        %562 = vmatprep.subr.mxu0 0.0
        %563 = vmatpush1.msra.mxu0 0.0
        %564 = vmatprep.subr.mxu0 0.0
        %565 = vmatpush1.msra.mxu0 0.0
        %566 = vmatprep.subr.mxu0 0.0
        %567 = vmatpush1.msra.mxu0 0.0
        %568 = vmatprep.subr.mxu0 0.0
        %569 = vmatpush1.msra.mxu0 0.0
        %570 = vmatprep.subr.mxu0 0.0
        %571 = vmatpush1.msra.mxu0 0.0
        %572 = vmatprep.subr.mxu0 0.0
        %573 = vmatpush1.msra.mxu0 0.0
        %574 = vmatprep.subr.mxu0 0.0
        %575 = vmatpush1.msra.mxu0 0.0
        %576 = vmatprep.subr.mxu0 0.0
        %577 = vmatpush1.msra.mxu0 0.0
        %578 = vmatprep.subr.mxu0 0.0
        %579 = vmatpush1.msra.mxu0 0.0
        %580 = vmatprep.subr.mxu0 0.0
        %581 = vmatpush1.msra.mxu0 0.0
        %582 = vmatprep.subr.mxu0 0.0
        %583 = vmatpush1.msra.mxu0 0.0
        %584 = vmatprep.subr.mxu0 0.0
        %585 = vmatpush1.msra.mxu0 0.0
        %586 = vmatprep.subr.mxu0 0.0
        %587 = vmatpush1.msra.mxu0 0.0
        %588 = vmatprep.subr.mxu0 0.0
        %589 = vmatpush1.msra.mxu0 0.0
        %590 = vmatprep.subr.mxu0 0.0
        %591 = vmatpush1.msra.mxu0 0.0
        %592 = vmatprep.subr.mxu0 0.0
        %593 = vmatpush1.msra.mxu0 0.0
        %594 = vmatprep.mubr.f32.mxu0 0.0
        %595 = vmatmul.mubr.f32.gmra.mrb[0].mxu0 %v528
        %v596 = vpop.f32.mrb[0].mxu0
        %v597 = vadd.f32 0.0, %v596
        %v598 = vpop.f32.mrb[0].mxu0
        %599 = vdwg.mxu0
        %v600 = vadd.f32 %v525, %v597
        %v601 = vtanh.pop %v600
        %v602 = vxor.u32 %v600, 2147483648
        %v603 = vmul.f32 %v602, 1.442695
        %v604 = vpow.pop %v603
        %v605 = vadd.f32 %v604, 1.0
        %v606 = vrcp.pop %v605
        %v607 = vmul.f32 1.0, %v606
        %v608 = vsel %vm519, %v601, %v607
        %610 = vrot.lane.b32.xlu0 %v521, 32
        %v611 = vpop.permute.xlu0 %610
        %v613 = vmul.f32 %v608, %v611
        %615 = vrot.lane.b32.xlu0 %v608, 64
        %v616 = vpop.permute.xlu0 %615
        %v618 = vmul.f32 %v608, %v616
        %620 = vrot.lane.b32.xlu0 %v618, 32
        %v621 = vpop.permute.xlu0 %620
        %v623 = vadd.f32 %v613, %v621
        %v624 = vtanh.pop %v623
        %626 = vrot.lane.b32.xlu0 %v624, 64
        %v627 = vpop.permute.xlu0 %626
        %v629 = vmul.f32 %v608, %v627
        %631 = vrot.lane.b32.xlu0 %v629, 32
        %v632 = vpop.permute.xlu0 %631
        %s634 = scalar_lea.vmem %s487, %s523
        %vm635 = vcmask 254976
        %636 = vst.msk [vmem:[%s634] sm:$0x3] %vm635, %v632
        %s637 = smul.u32 %s22, 13
        %s638 = sadd.s32 %s637, 1
        %s639 = smul.u32 %s638, 2
        %s640 = scalar_lea.vmem %s398, %s639 [#allocation4]
        %v641 = vld [vmem:[%s640] sm:$0x3]
        %v642 = vsel %vm526, %v632, 0
        %644 = vmatprep.subr.mxu0 0.0
        %645 = vmatpush1.msra.mxu0 %v511
        %646 = vmatprep.subr.mxu0 0.0
        %647 = vmatpush1.msra.mxu0 %v512
        %648 = vmatprep.subr.mxu0 0.0
        %649 = vmatpush1.msra.mxu0 %v513
        %650 = vmatprep.subr.mxu0 0.0
        %651 = vmatpush1.msra.mxu0 %v514
        %652 = vmatprep.subr.mxu0 0.0
        %653 = vmatpush1.msra.mxu0 0.0
        %654 = vmatprep.subr.mxu0 0.0
        %655 = vmatpush1.msra.mxu0 0.0
        %656 = vmatprep.subr.mxu0 0.0
        %657 = vmatpush1.msra.mxu0 0.0
        %658 = vmatprep.subr.mxu0 0.0
        %659 = vmatpush1.msra.mxu0 0.0
        %660 = vmatprep.subr.mxu0 0.0
        %661 = vmatpush1.msra.mxu0 0.0
        %662 = vmatprep.subr.mxu0 0.0
        %663 = vmatpush1.msra.mxu0 0.0
        %664 = vmatprep.subr.mxu0 0.0
        %665 = vmatpush1.msra.mxu0 0.0
        %666 = vmatprep.subr.mxu0 0.0
        %667 = vmatpush1.msra.mxu0 0.0
        %668 = vmatprep.subr.mxu0 0.0
        %669 = vmatpush1.msra.mxu0 0.0
        %670 = vmatprep.subr.mxu0 0.0
        %671 = vmatpush1.msra.mxu0 0.0
        %672 = vmatprep.subr.mxu0 0.0
        %673 = vmatpush1.msra.mxu0 0.0
        %674 = vmatprep.subr.mxu0 0.0
        %675 = vmatpush1.msra.mxu0 0.0
        %676 = vmatprep.subr.mxu0 0.0
        %677 = vmatpush1.msra.mxu0 0.0
        %678 = vmatprep.subr.mxu0 0.0
        %679 = vmatpush1.msra.mxu0 0.0
        %680 = vmatprep.subr.mxu0 0.0
        %681 = vmatpush1.msra.mxu0 0.0
        %682 = vmatprep.subr.mxu0 0.0
        %683 = vmatpush1.msra.mxu0 0.0
        %684 = vmatprep.subr.mxu0 0.0
        %685 = vmatpush1.msra.mxu0 0.0
        %686 = vmatprep.subr.mxu0 0.0
        %687 = vmatpush1.msra.mxu0 0.0
        %688 = vmatprep.subr.mxu0 0.0
        %689 = vmatpush1.msra.mxu0 0.0
        %690 = vmatprep.subr.mxu0 0.0
        %691 = vmatpush1.msra.mxu0 0.0
        %692 = vmatprep.subr.mxu0 0.0
        %693 = vmatpush1.msra.mxu0 0.0
        %694 = vmatprep.subr.mxu0 0.0
        %695 = vmatpush1.msra.mxu0 0.0
        %696 = vmatprep.subr.mxu0 0.0
        %697 = vmatpush1.msra.mxu0 0.0
        %698 = vmatprep.subr.mxu0 0.0
        %699 = vmatpush1.msra.mxu0 0.0
        %700 = vmatprep.subr.mxu0 0.0
        %701 = vmatpush1.msra.mxu0 0.0
        %702 = vmatprep.subr.mxu0 0.0
        %703 = vmatpush1.msra.mxu0 0.0
        %704 = vmatprep.subr.mxu0 0.0
        %705 = vmatpush1.msra.mxu0 0.0
        %706 = vmatprep.subr.mxu0 0.0
        %707 = vmatpush1.msra.mxu0 0.0
        %708 = vmatprep.mubr.f32.mxu0 0.0
        %709 = vmatmul.mubr.f32.gmra.mrb[0].mxu0 %v642
        %v710 = vpop.f32.mrb[0].mxu0
        %v711 = vadd.f32 0.0, %v710
        %v712 = vpop.f32.mrb[0].mxu0
        %713 = vdwg.mxu0
        %v714 = vadd.f32 %v641, %v711
        %v715 = vtanh.pop %v714
        %v716 = vxor.u32 %v714, 2147483648
        %v717 = vmul.f32 %v716, 1.442695
        %v718 = vpow.pop %v717
        %v719 = vadd.f32 %v718, 1.0
        %v720 = vrcp.pop %v719
        %v721 = vmul.f32 1.0, %v720
        %v722 = vsel %vm519, %v715, %v721
        %v723 = vmul.f32 %v722, %v623
        %725 = vrot.lane.b32.xlu0 %v722, 64
        %v726 = vpop.permute.xlu0 %725
        %v728 = vmul.f32 %v722, %v726
        %730 = vrot.lane.b32.xlu0 %v728, 32
        %v731 = vpop.permute.xlu0 %730
        %v733 = vadd.f32 %v723, %v731
        %v734 = vtanh.pop %v733
        %736 = vrot.lane.b32.xlu0 %v734, 64
        %v737 = vpop.permute.xlu0 %736
        %v739 = vmul.f32 %v722, %v737
        %741 = vrot.lane.b32.xlu0 %v739, 32
        %v742 = vpop.permute.xlu0 %741
        %s744 = scalar_lea.vmem %s487, %s639
        %745 = vst.msk [vmem:[%s744] sm:$0x3] %vm635, %v742
        %s746 = smul.u32 %s22, 11
        %s747 = sadd.s32 %s746, 2
        %s748 = smul.u32 %s747, 2
        %s749 = scalar_lea.vmem %s398, %s748 [#allocation4]
        %v750 = vld [vmem:[%s749] sm:$0x3]
        %v751 = vsel %vm526, %v742, 0
        %753 = vmatprep.subr.mxu0 0.0
        %754 = vmatpush1.msra.mxu0 %v511
        %755 = vmatprep.subr.mxu0 0.0
        %756 = vmatpush1.msra.mxu0 %v512
        %757 = vmatprep.subr.mxu0 0.0
        %758 = vmatpush1.msra.mxu0 %v513
        %759 = vmatprep.subr.mxu0 0.0
        %760 = vmatpush1.msra.mxu0 %v514
        %761 = vmatprep.subr.mxu0 0.0
        %762 = vmatpush1.msra.mxu0 0.0
        %763 = vmatprep.subr.mxu0 0.0
        %764 = vmatpush1.msra.mxu0 0.0
        %765 = vmatprep.subr.mxu0 0.0
        %766 = vmatpush1.msra.mxu0 0.0
        %767 = vmatprep.subr.mxu0 0.0
        %768 = vmatpush1.msra.mxu0 0.0
        %769 = vmatprep.subr.mxu0 0.0
        %770 = vmatpush1.msra.mxu0 0.0
        %771 = vmatprep.subr.mxu0 0.0
        %772 = vmatpush1.msra.mxu0 0.0
        %773 = vmatprep.subr.mxu0 0.0
        %774 = vmatpush1.msra.mxu0 0.0
        %775 = vmatprep.subr.mxu0 0.0
        %776 = vmatpush1.msra.mxu0 0.0
        %777 = vmatprep.subr.mxu0 0.0
        %778 = vmatpush1.msra.mxu0 0.0
        %779 = vmatprep.subr.mxu0 0.0
        %780 = vmatpush1.msra.mxu0 0.0
        %781 = vmatprep.subr.mxu0 0.0
        %782 = vmatpush1.msra.mxu0 0.0
        %783 = vmatprep.subr.mxu0 0.0
        %784 = vmatpush1.msra.mxu0 0.0
        %785 = vmatprep.subr.mxu0 0.0
        %786 = vmatpush1.msra.mxu0 0.0
        %787 = vmatprep.subr.mxu0 0.0
        %788 = vmatpush1.msra.mxu0 0.0
        %789 = vmatprep.subr.mxu0 0.0
        %790 = vmatpush1.msra.mxu0 0.0
        %791 = vmatprep.subr.mxu0 0.0
        %792 = vmatpush1.msra.mxu0 0.0
        %793 = vmatprep.subr.mxu0 0.0
        %794 = vmatpush1.msra.mxu0 0.0
        %795 = vmatprep.subr.mxu0 0.0
        %796 = vmatpush1.msra.mxu0 0.0
        %797 = vmatprep.subr.mxu0 0.0
        %798 = vmatpush1.msra.mxu0 0.0
        %799 = vmatprep.subr.mxu0 0.0
        %800 = vmatpush1.msra.mxu0 0.0
        %801 = vmatprep.subr.mxu0 0.0
        %802 = vmatpush1.msra.mxu0 0.0
        %803 = vmatprep.subr.mxu0 0.0
        %804 = vmatpush1.msra.mxu0 0.0
        %805 = vmatprep.subr.mxu0 0.0
        %806 = vmatpush1.msra.mxu0 0.0
        %807 = vmatprep.subr.mxu0 0.0
        %808 = vmatpush1.msra.mxu0 0.0
        %809 = vmatprep.subr.mxu0 0.0
        %810 = vmatpush1.msra.mxu0 0.0
        %811 = vmatprep.subr.mxu0 0.0
        %812 = vmatpush1.msra.mxu0 0.0
        %813 = vmatprep.subr.mxu0 0.0
        %814 = vmatpush1.msra.mxu0 0.0
        %815 = vmatprep.subr.mxu0 0.0
        %816 = vmatpush1.msra.mxu0 0.0
        %817 = vmatprep.mubr.f32.mxu0 0.0
        %818 = vmatmul.mubr.f32.gmra.mrb[0].mxu0 %v751
        %v819 = vpop.f32.mrb[0].mxu0
        %v820 = vadd.f32 0.0, %v819
        %v821 = vpop.f32.mrb[0].mxu0
        %822 = vdwg.mxu0
        %v823 = vadd.f32 %v750, %v820
        %v824 = vtanh.pop %v823
        %v825 = vxor.u32 %v823, 2147483648
        %v826 = vmul.f32 %v825, 1.442695
        %v827 = vpow.pop %v826
        %v828 = vadd.f32 %v827, 1.0
        %v829 = vrcp.pop %v828
        %v830 = vmul.f32 1.0, %v829
        %v831 = vsel %vm519, %v824, %v830
        %v832 = vmul.f32 %v831, %v733
        %834 = vrot.lane.b32.xlu0 %v831, 64
        %v835 = vpop.permute.xlu0 %834
        %v837 = vmul.f32 %v831, %v835
        %839 = vrot.lane.b32.xlu0 %v837, 32
        %v840 = vpop.permute.xlu0 %839
        %v842 = vadd.f32 %v832, %v840
        %v843 = vtanh.pop %v842
        %845 = vrot.lane.b32.xlu0 %v843, 64
        %v846 = vpop.permute.xlu0 %845
        %v848 = vmul.f32 %v831, %v846
        %850 = vrot.lane.b32.xlu0 %v848, 32
        %v851 = vpop.permute.xlu0 %850
        %s853 = scalar_lea.vmem %s487, %s748
        %854 = vst.msk [vmem:[%s853] sm:$0x3] %vm635, %v851
        %s855 = smul.u32 %s22, 9
        %s856 = sadd.s32 %s855, 3
        %s857 = smul.u32 %s856, 2
        %s858 = scalar_lea.vmem %s398, %s857 [#allocation4]
        %v859 = vld [vmem:[%s858] sm:$0x3]
        %v860 = vsel %vm526, %v851, 0
        %862 = vmatprep.subr.mxu0 0.0
        %863 = vmatpush1.msra.mxu0 %v511
        %864 = vmatprep.subr.mxu0 0.0
        %865 = vmatpush1.msra.mxu0 %v512
        %866 = vmatprep.subr.mxu0 0.0
        %867 = vmatpush1.msra.mxu0 %v513
        %868 = vmatprep.subr.mxu0 0.0
        %869 = vmatpush1.msra.mxu0 %v514
        %870 = vmatprep.subr.mxu0 0.0
        %871 = vmatpush1.msra.mxu0 0.0
        %872 = vmatprep.subr.mxu0 0.0
        %873 = vmatpush1.msra.mxu0 0.0
        %874 = vmatprep.subr.mxu0 0.0
        %875 = vmatpush1.msra.mxu0 0.0
        %876 = vmatprep.subr.mxu0 0.0
        %877 = vmatpush1.msra.mxu0 0.0
        %878 = vmatprep.subr.mxu0 0.0
        %879 = vmatpush1.msra.mxu0 0.0
        %880 = vmatprep.subr.mxu0 0.0
        %881 = vmatpush1.msra.mxu0 0.0
        %882 = vmatprep.subr.mxu0 0.0
        %883 = vmatpush1.msra.mxu0 0.0
        %884 = vmatprep.subr.mxu0 0.0
        %885 = vmatpush1.msra.mxu0 0.0
        %886 = vmatprep.subr.mxu0 0.0
        %887 = vmatpush1.msra.mxu0 0.0
        %888 = vmatprep.subr.mxu0 0.0
        %889 = vmatpush1.msra.mxu0 0.0
        %890 = vmatprep.subr.mxu0 0.0
        %891 = vmatpush1.msra.mxu0 0.0
        %892 = vmatprep.subr.mxu0 0.0
        %893 = vmatpush1.msra.mxu0 0.0
        %894 = vmatprep.subr.mxu0 0.0
        %895 = vmatpush1.msra.mxu0 0.0
        %896 = vmatprep.subr.mxu0 0.0
        %897 = vmatpush1.msra.mxu0 0.0
        %898 = vmatprep.subr.mxu0 0.0
        %899 = vmatpush1.msra.mxu0 0.0
        %900 = vmatprep.subr.mxu0 0.0
        %901 = vmatpush1.msra.mxu0 0.0
        %902 = vmatprep.subr.mxu0 0.0
        %903 = vmatpush1.msra.mxu0 0.0
        %904 = vmatprep.subr.mxu0 0.0
        %905 = vmatpush1.msra.mxu0 0.0
        %906 = vmatprep.subr.mxu0 0.0
        %907 = vmatpush1.msra.mxu0 0.0
        %908 = vmatprep.subr.mxu0 0.0
        %909 = vmatpush1.msra.mxu0 0.0
        %910 = vmatprep.subr.mxu0 0.0
        %911 = vmatpush1.msra.mxu0 0.0
        %912 = vmatprep.subr.mxu0 0.0
        %913 = vmatpush1.msra.mxu0 0.0
        %914 = vmatprep.subr.mxu0 0.0
        %915 = vmatpush1.msra.mxu0 0.0
        %916 = vmatprep.subr.mxu0 0.0
        %917 = vmatpush1.msra.mxu0 0.0
        %918 = vmatprep.subr.mxu0 0.0
        %919 = vmatpush1.msra.mxu0 0.0
        %920 = vmatprep.subr.mxu0 0.0
        %921 = vmatpush1.msra.mxu0 0.0
        %922 = vmatprep.subr.mxu0 0.0
        %923 = vmatpush1.msra.mxu0 0.0
        %924 = vmatprep.subr.mxu0 0.0
        %925 = vmatpush1.msra.mxu0 0.0
        %926 = vmatprep.mubr.f32.mxu0 0.0
        %927 = vmatmul.mubr.f32.gmra.mrb[0].mxu0 %v860
        %v928 = vpop.f32.mrb[0].mxu0
        %v929 = vadd.f32 0.0, %v928
        %v930 = vpop.f32.mrb[0].mxu0
        %931 = vdwg.mxu0
        %v932 = vadd.f32 %v859, %v929
        %v933 = vtanh.pop %v932
        %v934 = vxor.u32 %v932, 2147483648
        %v935 = vmul.f32 %v934, 1.442695
        %v936 = vpow.pop %v935
        %v937 = vadd.f32 %v936, 1.0
        %v938 = vrcp.pop %v937
        %v939 = vmul.f32 1.0, %v938
        %v940 = vsel %vm519, %v933, %v939
        %v941 = vmul.f32 %v940, %v842
        %943 = vrot.lane.b32.xlu0 %v940, 64
        %v944 = vpop.permute.xlu0 %943
        %v946 = vmul.f32 %v940, %v944
        %948 = vrot.lane.b32.xlu0 %v946, 32
        %v949 = vpop.permute.xlu0 %948
        %v951 = vadd.f32 %v941, %v949
        %v952 = vtanh.pop %v951
        %954 = vrot.lane.b32.xlu0 %v952, 64
        %v955 = vpop.permute.xlu0 %954
        %v957 = vmul.f32 %v940, %v955
        %959 = vrot.lane.b32.xlu0 %v957, 32
        %v960 = vpop.permute.xlu0 %959
        %s962 = scalar_lea.vmem %s487, %s857
        %963 = vst.msk [vmem:[%s962] sm:$0x3] %vm635, %v960
        %s964 = smul.u32 %s22, 7
        %s965 = sadd.s32 %s964, 4
        %s966 = smul.u32 %s965, 2
        %s967 = scalar_lea.vmem %s398, %s966 [#allocation4]
        %v968 = vld [vmem:[%s967] sm:$0x3]
        %v969 = vsel %vm526, %v960, 0
        %971 = vmatprep.subr.mxu0 0.0
        %972 = vmatpush1.msra.mxu0 %v511
        %973 = vmatprep.subr.mxu0 0.0
        %974 = vmatpush1.msra.mxu0 %v512
        %975 = vmatprep.subr.mxu0 0.0
        %976 = vmatpush1.msra.mxu0 %v513
        %977 = vmatprep.subr.mxu0 0.0
        %978 = vmatpush1.msra.mxu0 %v514
        %979 = vmatprep.subr.mxu0 0.0
        %980 = vmatpush1.msra.mxu0 0.0
        %981 = vmatprep.subr.mxu0 0.0
        %982 = vmatpush1.msra.mxu0 0.0
        %983 = vmatprep.subr.mxu0 0.0
        %984 = vmatpush1.msra.mxu0 0.0
        %985 = vmatprep.subr.mxu0 0.0
        %986 = vmatpush1.msra.mxu0 0.0
        %987 = vmatprep.subr.mxu0 0.0
        %988 = vmatpush1.msra.mxu0 0.0
        %989 = vmatprep.subr.mxu0 0.0
        %990 = vmatpush1.msra.mxu0 0.0
        %991 = vmatprep.subr.mxu0 0.0
        %992 = vmatpush1.msra.mxu0 0.0
        %993 = vmatprep.subr.mxu0 0.0
        %994 = vmatpush1.msra.mxu0 0.0
        %995 = vmatprep.subr.mxu0 0.0
        %996 = vmatpush1.msra.mxu0 0.0
        %997 = vmatprep.subr.mxu0 0.0
        %998 = vmatpush1.msra.mxu0 0.0
        %999 = vmatprep.subr.mxu0 0.0
        %1000 = vmatpush1.msra.mxu0 0.0
        %1001 = vmatprep.subr.mxu0 0.0
        %1002 = vmatpush1.msra.mxu0 0.0
        %1003 = vmatprep.subr.mxu0 0.0
        %1004 = vmatpush1.msra.mxu0 0.0
        %1005 = vmatprep.subr.mxu0 0.0
        %1006 = vmatpush1.msra.mxu0 0.0
        %1007 = vmatprep.subr.mxu0 0.0
        %1008 = vmatpush1.msra.mxu0 0.0
        %1009 = vmatprep.subr.mxu0 0.0
        %1010 = vmatpush1.msra.mxu0 0.0
        %1011 = vmatprep.subr.mxu0 0.0
        %1012 = vmatpush1.msra.mxu0 0.0
        %1013 = vmatprep.subr.mxu0 0.0
        %1014 = vmatpush1.msra.mxu0 0.0
        %1015 = vmatprep.subr.mxu0 0.0
        %1016 = vmatpush1.msra.mxu0 0.0
        %1017 = vmatprep.subr.mxu0 0.0
        %1018 = vmatpush1.msra.mxu0 0.0
        %1019 = vmatprep.subr.mxu0 0.0
        %1020 = vmatpush1.msra.mxu0 0.0
        %1021 = vmatprep.subr.mxu0 0.0
        %1022 = vmatpush1.msra.mxu0 0.0
        %1023 = vmatprep.subr.mxu0 0.0
        %1024 = vmatpush1.msra.mxu0 0.0
        %1025 = vmatprep.subr.mxu0 0.0
        %1026 = vmatpush1.msra.mxu0 0.0
        %1027 = vmatprep.subr.mxu0 0.0
        %1028 = vmatpush1.msra.mxu0 0.0
        %1029 = vmatprep.subr.mxu0 0.0
        %1030 = vmatpush1.msra.mxu0 0.0
        %1031 = vmatprep.subr.mxu0 0.0
        %1032 = vmatpush1.msra.mxu0 0.0
        %1033 = vmatprep.subr.mxu0 0.0
        %1034 = vmatpush1.msra.mxu0 0.0
        %1035 = vmatprep.mubr.f32.mxu0 0.0
        %1036 = vmatmul.mubr.f32.gmra.mrb[0].mxu0 %v969
        %v1037 = vpop.f32.mrb[0].mxu0
        %v1038 = vadd.f32 0.0, %v1037
        %v1039 = vpop.f32.mrb[0].mxu0
        %1040 = vdwg.mxu0
        %v1041 = vadd.f32 %v968, %v1038
        %v1042 = vtanh.pop %v1041
        %v1043 = vxor.u32 %v1041, 2147483648
        %v1044 = vmul.f32 %v1043, 1.442695
        %v1045 = vpow.pop %v1044
        %v1046 = vadd.f32 %v1045, 1.0
        %v1047 = vrcp.pop %v1046
        %v1048 = vmul.f32 1.0, %v1047
        %v1049 = vsel %vm519, %v1042, %v1048
        %v1050 = vmul.f32 %v1049, %v951
        %1052 = vrot.lane.b32.xlu0 %v1049, 64
        %v1053 = vpop.permute.xlu0 %1052
        %v1055 = vmul.f32 %v1049, %v1053
        %1057 = vrot.lane.b32.xlu0 %v1055, 32
        %v1058 = vpop.permute.xlu0 %1057
        %v1060 = vadd.f32 %v1050, %v1058
        %v1061 = vtanh.pop %v1060
        %1063 = vrot.lane.b32.xlu0 %v1061, 64
        %v1064 = vpop.permute.xlu0 %1063
        %v1066 = vmul.f32 %v1049, %v1064
        %1068 = vrot.lane.b32.xlu0 %v1066, 32
        %v1069 = vpop.permute.xlu0 %1068
        %s1071 = scalar_lea.vmem %s487, %s966
        %1072 = vst.msk [vmem:[%s1071] sm:$0x3] %vm635, %v1069
        %s1073 = smul.u32 %s22, 5
        %s1074 = sadd.s32 %s1073, 5
        %s1075 = smul.u32 %s1074, 2
        %s1076 = scalar_lea.vmem %s398, %s1075 [#allocation4]
        %v1077 = vld [vmem:[%s1076] sm:$0x3]
        %v1078 = vsel %vm526, %v1069, 0
        %1080 = vmatprep.subr.mxu0 0.0
        %1081 = vmatpush1.msra.mxu0 %v511
        %1082 = vmatprep.subr.mxu0 0.0
        %1083 = vmatpush1.msra.mxu0 %v512
        %1084 = vmatprep.subr.mxu0 0.0
        %1085 = vmatpush1.msra.mxu0 %v513
        %1086 = vmatprep.subr.mxu0 0.0
        %1087 = vmatpush1.msra.mxu0 %v514
        %1088 = vmatprep.subr.mxu0 0.0
        %1089 = vmatpush1.msra.mxu0 0.0
        %1090 = vmatprep.subr.mxu0 0.0
        %1091 = vmatpush1.msra.mxu0 0.0
        %1092 = vmatprep.subr.mxu0 0.0
        %1093 = vmatpush1.msra.mxu0 0.0
        %1094 = vmatprep.subr.mxu0 0.0
        %1095 = vmatpush1.msra.mxu0 0.0
        %1096 = vmatprep.subr.mxu0 0.0
        %1097 = vmatpush1.msra.mxu0 0.0
        %1098 = vmatprep.subr.mxu0 0.0
        %1099 = vmatpush1.msra.mxu0 0.0
        %1100 = vmatprep.subr.mxu0 0.0
        %1101 = vmatpush1.msra.mxu0 0.0
        %1102 = vmatprep.subr.mxu0 0.0
        %1103 = vmatpush1.msra.mxu0 0.0
        %1104 = vmatprep.subr.mxu0 0.0
        %1105 = vmatpush1.msra.mxu0 0.0
        %1106 = vmatprep.subr.mxu0 0.0
        %1107 = vmatpush1.msra.mxu0 0.0
        %1108 = vmatprep.subr.mxu0 0.0
        %1109 = vmatpush1.msra.mxu0 0.0
        %1110 = vmatprep.subr.mxu0 0.0
        %1111 = vmatpush1.msra.mxu0 0.0
        %1112 = vmatprep.subr.mxu0 0.0
        %1113 = vmatpush1.msra.mxu0 0.0
        %1114 = vmatprep.subr.mxu0 0.0
        %1115 = vmatpush1.msra.mxu0 0.0
        %1116 = vmatprep.subr.mxu0 0.0
        %1117 = vmatpush1.msra.mxu0 0.0
        %1118 = vmatprep.subr.mxu0 0.0
        %1119 = vmatpush1.msra.mxu0 0.0
        %1120 = vmatprep.subr.mxu0 0.0
        %1121 = vmatpush1.msra.mxu0 0.0
        %1122 = vmatprep.subr.mxu0 0.0
        %1123 = vmatpush1.msra.mxu0 0.0
        %1124 = vmatprep.subr.mxu0 0.0
        %1125 = vmatpush1.msra.mxu0 0.0
        %1126 = vmatprep.subr.mxu0 0.0
        %1127 = vmatpush1.msra.mxu0 0.0
        %1128 = vmatprep.subr.mxu0 0.0
        %1129 = vmatpush1.msra.mxu0 0.0
        %1130 = vmatprep.subr.mxu0 0.0
        %1131 = vmatpush1.msra.mxu0 0.0
        %1132 = vmatprep.subr.mxu0 0.0
        %1133 = vmatpush1.msra.mxu0 0.0
        %1134 = vmatprep.subr.mxu0 0.0
        %1135 = vmatpush1.msra.mxu0 0.0
        %1136 = vmatprep.subr.mxu0 0.0
        %1137 = vmatpush1.msra.mxu0 0.0
        %1138 = vmatprep.subr.mxu0 0.0
        %1139 = vmatpush1.msra.mxu0 0.0
        %1140 = vmatprep.subr.mxu0 0.0
        %1141 = vmatpush1.msra.mxu0 0.0
        %1142 = vmatprep.subr.mxu0 0.0
        %1143 = vmatpush1.msra.mxu0 0.0
        %1144 = vmatprep.mubr.f32.mxu0 0.0
        %1145 = vmatmul.mubr.f32.gmra.mrb[0].mxu0 %v1078
        %v1146 = vpop.f32.mrb[0].mxu0
        %v1147 = vadd.f32 0.0, %v1146
        %v1148 = vpop.f32.mrb[0].mxu0
        %1149 = vdwg.mxu0
        %v1150 = vadd.f32 %v1077, %v1147
        %v1151 = vtanh.pop %v1150
        %v1152 = vxor.u32 %v1150, 2147483648
        %v1153 = vmul.f32 %v1152, 1.442695
        %v1154 = vpow.pop %v1153
        %v1155 = vadd.f32 %v1154, 1.0
        %v1156 = vrcp.pop %v1155
        %v1157 = vmul.f32 1.0, %v1156
        %v1158 = vsel %vm519, %v1151, %v1157
        %v1159 = vmul.f32 %v1158, %v1060
        %1161 = vrot.lane.b32.xlu0 %v1158, 64
        %v1162 = vpop.permute.xlu0 %1161
        %v1164 = vmul.f32 %v1158, %v1162
        %1166 = vrot.lane.b32.xlu0 %v1164, 32
        %v1167 = vpop.permute.xlu0 %1166
        %v1169 = vadd.f32 %v1159, %v1167
        %v1170 = vtanh.pop %v1169
        %1172 = vrot.lane.b32.xlu0 %v1170, 64
        %v1173 = vpop.permute.xlu0 %1172
        %v1175 = vmul.f32 %v1158, %v1173
        %1177 = vrot.lane.b32.xlu0 %v1175, 32
        %v1178 = vpop.permute.xlu0 %1177
        %s1180 = scalar_lea.vmem %s487, %s1075
        %1181 = vst.msk [vmem:[%s1180] sm:$0x3] %vm635, %v1178
        %s1182 = smul.u32 %s22, 3
        %s1183 = sadd.s32 %s1182, 6
        %s1184 = smul.u32 %s1183, 2
        %s1185 = scalar_lea.vmem %s398, %s1184 [#allocation4]
        %v1186 = vld [vmem:[%s1185] sm:$0x3]
        %v1187 = vsel %vm526, %v1178, 0
        %1189 = vmatprep.subr.mxu0 0.0
        %1190 = vmatpush1.msra.mxu0 %v511
        %1191 = vmatprep.subr.mxu0 0.0
        %1192 = vmatpush1.msra.mxu0 %v512
        %1193 = vmatprep.subr.mxu0 0.0
        %1194 = vmatpush1.msra.mxu0 %v513
        %1195 = vmatprep.subr.mxu0 0.0
        %1196 = vmatpush1.msra.mxu0 %v514
        %1197 = vmatprep.subr.mxu0 0.0
        %1198 = vmatpush1.msra.mxu0 0.0
        %1199 = vmatprep.subr.mxu0 0.0
        %1200 = vmatpush1.msra.mxu0 0.0
        %1201 = vmatprep.subr.mxu0 0.0
        %1202 = vmatpush1.msra.mxu0 0.0
        %1203 = vmatprep.subr.mxu0 0.0
        %1204 = vmatpush1.msra.mxu0 0.0
        %1205 = vmatprep.subr.mxu0 0.0
        %1206 = vmatpush1.msra.mxu0 0.0
        %1207 = vmatprep.subr.mxu0 0.0
        %1208 = vmatpush1.msra.mxu0 0.0
        %1209 = vmatprep.subr.mxu0 0.0
        %1210 = vmatpush1.msra.mxu0 0.0
        %1211 = vmatprep.subr.mxu0 0.0
        %1212 = vmatpush1.msra.mxu0 0.0
        %1213 = vmatprep.subr.mxu0 0.0
        %1214 = vmatpush1.msra.mxu0 0.0
        %1215 = vmatprep.subr.mxu0 0.0
        %1216 = vmatpush1.msra.mxu0 0.0
        %1217 = vmatprep.subr.mxu0 0.0
        %1218 = vmatpush1.msra.mxu0 0.0
        %1219 = vmatprep.subr.mxu0 0.0
        %1220 = vmatpush1.msra.mxu0 0.0
        %1221 = vmatprep.subr.mxu0 0.0
        %1222 = vmatpush1.msra.mxu0 0.0
        %1223 = vmatprep.subr.mxu0 0.0
        %1224 = vmatpush1.msra.mxu0 0.0
        %1225 = vmatprep.subr.mxu0 0.0
        %1226 = vmatpush1.msra.mxu0 0.0
        %1227 = vmatprep.subr.mxu0 0.0
        %1228 = vmatpush1.msra.mxu0 0.0
        %1229 = vmatprep.subr.mxu0 0.0
        %1230 = vmatpush1.msra.mxu0 0.0
        %1231 = vmatprep.subr.mxu0 0.0
        %1232 = vmatpush1.msra.mxu0 0.0
        %1233 = vmatprep.subr.mxu0 0.0
        %1234 = vmatpush1.msra.mxu0 0.0
        %1235 = vmatprep.subr.mxu0 0.0
        %1236 = vmatpush1.msra.mxu0 0.0
        %1237 = vmatprep.subr.mxu0 0.0
        %1238 = vmatpush1.msra.mxu0 0.0
        %1239 = vmatprep.subr.mxu0 0.0
        %1240 = vmatpush1.msra.mxu0 0.0
        %1241 = vmatprep.subr.mxu0 0.0
        %1242 = vmatpush1.msra.mxu0 0.0
        %1243 = vmatprep.subr.mxu0 0.0
        %1244 = vmatpush1.msra.mxu0 0.0
        %1245 = vmatprep.subr.mxu0 0.0
        %1246 = vmatpush1.msra.mxu0 0.0
        %1247 = vmatprep.subr.mxu0 0.0
        %1248 = vmatpush1.msra.mxu0 0.0
        %1249 = vmatprep.subr.mxu0 0.0
        %1250 = vmatpush1.msra.mxu0 0.0
        %1251 = vmatprep.subr.mxu0 0.0
        %1252 = vmatpush1.msra.mxu0 0.0
        %1253 = vmatprep.mubr.f32.mxu0 0.0
        %1254 = vmatmul.mubr.f32.gmra.mrb[0].mxu0 %v1187
        %v1255 = vpop.f32.mrb[0].mxu0
        %v1256 = vadd.f32 0.0, %v1255
        %v1257 = vpop.f32.mrb[0].mxu0
        %1258 = vdwg.mxu0
        %v1259 = vadd.f32 %v1186, %v1256
        %v1260 = vtanh.pop %v1259
        %v1261 = vxor.u32 %v1259, 2147483648
        %v1262 = vmul.f32 %v1261, 1.442695
        %v1263 = vpow.pop %v1262
        %v1264 = vadd.f32 %v1263, 1.0
        %v1265 = vrcp.pop %v1264
        %v1266 = vmul.f32 1.0, %v1265
        %v1267 = vsel %vm519, %v1260, %v1266
        %v1268 = vmul.f32 %v1267, %v1169
        %1270 = vrot.lane.b32.xlu0 %v1267, 64
        %v1271 = vpop.permute.xlu0 %1270
        %v1273 = vmul.f32 %v1267, %v1271
        %1275 = vrot.lane.b32.xlu0 %v1273, 32
        %v1276 = vpop.permute.xlu0 %1275
        %v1278 = vadd.f32 %v1268, %v1276
        %v1279 = vtanh.pop %v1278
        %1281 = vrot.lane.b32.xlu0 %v1279, 64
        %v1282 = vpop.permute.xlu0 %1281
        %v1284 = vmul.f32 %v1267, %v1282
        %1286 = vrot.lane.b32.xlu0 %v1284, 32
        %v1287 = vpop.permute.xlu0 %1286
        %s1289 = scalar_lea.vmem %s487, %s1184
        %1290 = vst.msk [vmem:[%s1289] sm:$0x3] %vm635, %v1287
        %s1291 = sadd.s32 %s22, 7
        %s1292 = smul.u32 %s1291, 2
        %s1293 = scalar_lea.vmem %s398, %s1292 [#allocation4]
        %v1294 = vld [vmem:[%s1293] sm:$0x3]
        %v1295 = vsel %vm526, %v1287, 0
        %1297 = vmatprep.subr.mxu0 0.0
        %1298 = vmatpush1.msra.mxu0 %v511
        %1299 = vmatprep.subr.mxu0 0.0
        %1300 = vmatpush1.msra.mxu0 %v512
        %1301 = vmatprep.subr.mxu0 0.0
        %1302 = vmatpush1.msra.mxu0 %v513
        %1303 = vmatprep.subr.mxu0 0.0
        %1304 = vmatpush1.msra.mxu0 %v514
        %1305 = vmatprep.subr.mxu0 0.0
        %1306 = vmatpush1.msra.mxu0 0.0
        %1307 = vmatprep.subr.mxu0 0.0
        %1308 = vmatpush1.msra.mxu0 0.0
        %1309 = vmatprep.subr.mxu0 0.0
        %1310 = vmatpush1.msra.mxu0 0.0
        %1311 = vmatprep.subr.mxu0 0.0
        %1312 = vmatpush1.msra.mxu0 0.0
        %1313 = vmatprep.subr.mxu0 0.0
        %1314 = vmatpush1.msra.mxu0 0.0
        %1315 = vmatprep.subr.mxu0 0.0
        %1316 = vmatpush1.msra.mxu0 0.0
        %1317 = vmatprep.subr.mxu0 0.0
        %1318 = vmatpush1.msra.mxu0 0.0
        %1319 = vmatprep.subr.mxu0 0.0
        %1320 = vmatpush1.msra.mxu0 0.0
        %1321 = vmatprep.subr.mxu0 0.0
        %1322 = vmatpush1.msra.mxu0 0.0
        %1323 = vmatprep.subr.mxu0 0.0
        %1324 = vmatpush1.msra.mxu0 0.0
        %1325 = vmatprep.subr.mxu0 0.0
        %1326 = vmatpush1.msra.mxu0 0.0
        %1327 = vmatprep.subr.mxu0 0.0
        %1328 = vmatpush1.msra.mxu0 0.0
        %1329 = vmatprep.subr.mxu0 0.0
        %1330 = vmatpush1.msra.mxu0 0.0
        %1331 = vmatprep.subr.mxu0 0.0
        %1332 = vmatpush1.msra.mxu0 0.0
        %1333 = vmatprep.subr.mxu0 0.0
        %1334 = vmatpush1.msra.mxu0 0.0
        %1335 = vmatprep.subr.mxu0 0.0
        %1336 = vmatpush1.msra.mxu0 0.0
        %1337 = vmatprep.subr.mxu0 0.0
        %1338 = vmatpush1.msra.mxu0 0.0
        %1339 = vmatprep.subr.mxu0 0.0
        %1340 = vmatpush1.msra.mxu0 0.0
        %1341 = vmatprep.subr.mxu0 0.0
        %1342 = vmatpush1.msra.mxu0 0.0
        %1343 = vmatprep.subr.mxu0 0.0
        %1344 = vmatpush1.msra.mxu0 0.0
        %1345 = vmatprep.subr.mxu0 0.0
        %1346 = vmatpush1.msra.mxu0 0.0
        %1347 = vmatprep.subr.mxu0 0.0
        %1348 = vmatpush1.msra.mxu0 0.0
        %1349 = vmatprep.subr.mxu0 0.0
        %1350 = vmatpush1.msra.mxu0 0.0
        %1351 = vmatprep.subr.mxu0 0.0
        %1352 = vmatpush1.msra.mxu0 0.0
        %1353 = vmatprep.subr.mxu0 0.0
        %1354 = vmatpush1.msra.mxu0 0.0
        %1355 = vmatprep.subr.mxu0 0.0
        %1356 = vmatpush1.msra.mxu0 0.0
        %1357 = vmatprep.subr.mxu0 0.0
        %1358 = vmatpush1.msra.mxu0 0.0
        %1359 = vmatprep.subr.mxu0 0.0
        %1360 = vmatpush1.msra.mxu0 0.0
        %1361 = vmatprep.mubr.f32.mxu0 0.0
        %1362 = vmatmul.mubr.f32.gmra.mrb[0].mxu0 %v1295
        %v1363 = vpop.f32.mrb[0].mxu0
        %v1364 = vadd.f32 0.0, %v1363
        %v1365 = vpop.f32.mrb[0].mxu0
        %1366 = vdwg.mxu0
        %v1367 = vadd.f32 %v1294, %v1364
        %v1368 = vtanh.pop %v1367
        %v1369 = vxor.u32 %v1367, 2147483648
        %v1370 = vmul.f32 %v1369, 1.442695
        %v1371 = vpow.pop %v1370
        %v1372 = vadd.f32 %v1371, 1.0
        %v1373 = vrcp.pop %v1372
        %v1374 = vmul.f32 1.0, %v1373
        %v1375 = vsel %vm519, %v1368, %v1374
        %v1376 = vmul.f32 %v1375, %v1278
        %1378 = vrot.lane.b32.xlu0 %v1375, 64
        %v1379 = vpop.permute.xlu0 %1378
        %v1381 = vmul.f32 %v1375, %v1379
        %1383 = vrot.lane.b32.xlu0 %v1381, 32
        %v1384 = vpop.permute.xlu0 %1383
        %v1386 = vadd.f32 %v1376, %v1384
        %v1387 = vtanh.pop %v1386
        %1389 = vrot.lane.b32.xlu0 %v1387, 64
        %v1390 = vpop.permute.xlu0 %1389
        %v1392 = vmul.f32 %v1375, %v1390
        %1394 = vrot.lane.b32.xlu0 %v1392, 32
        %v1395 = vpop.permute.xlu0 %1394
        %s1397 = scalar_lea.vmem %s487, %s1292
        %1398 = vst.msk [vmem:[%s1397] sm:$0x3] %vm635, %v1395
        %s1399 = ssub.s32 8, %s22
        %s1400 = smul.u32 %s1399, 2
        %s1401 = scalar_lea.vmem %s398, %s1400 [#allocation4]
        %v1402 = vld [vmem:[%s1401] sm:$0x3]
        %v1403 = vsel %vm526, %v1395, 0
        %1405 = vmatprep.subr.mxu0 0.0
        %1406 = vmatpush1.msra.mxu0 %v511
        %1407 = vmatprep.subr.mxu0 0.0
        %1408 = vmatpush1.msra.mxu0 %v512
        %1409 = vmatprep.subr.mxu0 0.0
        %1410 = vmatpush1.msra.mxu0 %v513
        %1411 = vmatprep.subr.mxu0 0.0
        %1412 = vmatpush1.msra.mxu0 %v514
        %1413 = vmatprep.subr.mxu0 0.0
        %1414 = vmatpush1.msra.mxu0 0.0
        %1415 = vmatprep.subr.mxu0 0.0
        %1416 = vmatpush1.msra.mxu0 0.0
        %1417 = vmatprep.subr.mxu0 0.0
        %1418 = vmatpush1.msra.mxu0 0.0
        %1419 = vmatprep.subr.mxu0 0.0
        %1420 = vmatpush1.msra.mxu0 0.0
        %1421 = vmatprep.subr.mxu0 0.0
        %1422 = vmatpush1.msra.mxu0 0.0
        %1423 = vmatprep.subr.mxu0 0.0
        %1424 = vmatpush1.msra.mxu0 0.0
        %1425 = vmatprep.subr.mxu0 0.0
        %1426 = vmatpush1.msra.mxu0 0.0
        %1427 = vmatprep.subr.mxu0 0.0
        %1428 = vmatpush1.msra.mxu0 0.0
        %1429 = vmatprep.subr.mxu0 0.0
        %1430 = vmatpush1.msra.mxu0 0.0
        %1431 = vmatprep.subr.mxu0 0.0
        %1432 = vmatpush1.msra.mxu0 0.0
        %1433 = vmatprep.subr.mxu0 0.0
        %1434 = vmatpush1.msra.mxu0 0.0
        %1435 = vmatprep.subr.mxu0 0.0
        %1436 = vmatpush1.msra.mxu0 0.0
        %1437 = vmatprep.subr.mxu0 0.0
        %1438 = vmatpush1.msra.mxu0 0.0
        %1439 = vmatprep.subr.mxu0 0.0
        %1440 = vmatpush1.msra.mxu0 0.0
        %1441 = vmatprep.subr.mxu0 0.0
        %1442 = vmatpush1.msra.mxu0 0.0
        %1443 = vmatprep.subr.mxu0 0.0
        %1444 = vmatpush1.msra.mxu0 0.0
        %1445 = vmatprep.subr.mxu0 0.0
        %1446 = vmatpush1.msra.mxu0 0.0
        %1447 = vmatprep.subr.mxu0 0.0
        %1448 = vmatpush1.msra.mxu0 0.0
        %1449 = vmatprep.subr.mxu0 0.0
        %1450 = vmatpush1.msra.mxu0 0.0
        %1451 = vmatprep.subr.mxu0 0.0
        %1452 = vmatpush1.msra.mxu0 0.0
        %1453 = vmatprep.subr.mxu0 0.0
        %1454 = vmatpush1.msra.mxu0 0.0
        %1455 = vmatprep.subr.mxu0 0.0
        %1456 = vmatpush1.msra.mxu0 0.0
        %1457 = vmatprep.subr.mxu0 0.0
        %1458 = vmatpush1.msra.mxu0 0.0
        %1459 = vmatprep.subr.mxu0 0.0
        %1460 = vmatpush1.msra.mxu0 0.0
        %1461 = vmatprep.subr.mxu0 0.0
        %1462 = vmatpush1.msra.mxu0 0.0
        %1463 = vmatprep.subr.mxu0 0.0
        %1464 = vmatpush1.msra.mxu0 0.0
        %1465 = vmatprep.subr.mxu0 0.0
        %1466 = vmatpush1.msra.mxu0 0.0
        %1467 = vmatprep.subr.mxu0 0.0
        %1468 = vmatpush1.msra.mxu0 0.0
        %1469 = vmatprep.mubr.f32.mxu0 0.0
        %1470 = vmatmul.mubr.f32.gmra.mrb[0].mxu0 %v1403
        %v1471 = vpop.f32.mrb[0].mxu0
        %v1472 = vadd.f32 0.0, %v1471
        %v1473 = vpop.f32.mrb[0].mxu0
        %1474 = vdwg.mxu0
        %v1475 = vadd.f32 %v1402, %v1472
        %v1476 = vtanh.pop %v1475
        %v1477 = vxor.u32 %v1475, 2147483648
        %v1478 = vmul.f32 %v1477, 1.442695
        %v1479 = vpow.pop %v1478
        %v1480 = vadd.f32 %v1479, 1.0
        %v1481 = vrcp.pop %v1480
        %v1482 = vmul.f32 1.0, %v1481
        %v1483 = vsel %vm519, %v1476, %v1482
        %v1484 = vmul.f32 %v1483, %v1386
        %1486 = vrot.lane.b32.xlu0 %v1483, 64
        %v1487 = vpop.permute.xlu0 %1486
        %v1489 = vmul.f32 %v1483, %v1487
        %1491 = vrot.lane.b32.xlu0 %v1489, 32
        %v1492 = vpop.permute.xlu0 %1491
        %v1494 = vadd.f32 %v1484, %v1492
        %v1495 = vtanh.pop %v1494
        %1497 = vrot.lane.b32.xlu0 %v1495, 64
        %v1498 = vpop.permute.xlu0 %1497
        %v1500 = vmul.f32 %v1483, %v1498
        %1502 = vrot.lane.b32.xlu0 %v1500, 32
        %v1503 = vpop.permute.xlu0 %1502
        %s1505 = scalar_lea.vmem %s487, %s1400
        %1506 = vst.msk [vmem:[%s1505] sm:$0x3] %vm635, %v1503
        %s1507 = smul.u32 %s22, 4294967293
        %s1508 = sadd.s32 %s1507, 9
        %s1509 = smul.u32 %s1508, 2
        %s1510 = scalar_lea.vmem %s398, %s1509 [#allocation4]
        %v1511 = vld [vmem:[%s1510] sm:$0x3]
        %v1512 = vsel %vm526, %v1503, 0
        %1514 = vmatprep.subr.mxu0 0.0
        %1515 = vmatpush1.msra.mxu0 %v511
        %1516 = vmatprep.subr.mxu0 0.0
        %1517 = vmatpush1.msra.mxu0 %v512
        %1518 = vmatprep.subr.mxu0 0.0
        %1519 = vmatpush1.msra.mxu0 %v513
        %1520 = vmatprep.subr.mxu0 0.0
        %1521 = vmatpush1.msra.mxu0 %v514
        %1522 = vmatprep.subr.mxu0 0.0
        %1523 = vmatpush1.msra.mxu0 0.0
        %1524 = vmatprep.subr.mxu0 0.0
        %1525 = vmatpush1.msra.mxu0 0.0
        %1526 = vmatprep.subr.mxu0 0.0
        %1527 = vmatpush1.msra.mxu0 0.0
        %1528 = vmatprep.subr.mxu0 0.0
        %1529 = vmatpush1.msra.mxu0 0.0
        %1530 = vmatprep.subr.mxu0 0.0
        %1531 = vmatpush1.msra.mxu0 0.0
        %1532 = vmatprep.subr.mxu0 0.0
        %1533 = vmatpush1.msra.mxu0 0.0
        %1534 = vmatprep.subr.mxu0 0.0
        %1535 = vmatpush1.msra.mxu0 0.0
        %1536 = vmatprep.subr.mxu0 0.0
        %1537 = vmatpush1.msra.mxu0 0.0
        %1538 = vmatprep.subr.mxu0 0.0
        %1539 = vmatpush1.msra.mxu0 0.0
        %1540 = vmatprep.subr.mxu0 0.0
        %1541 = vmatpush1.msra.mxu0 0.0
        %1542 = vmatprep.subr.mxu0 0.0
        %1543 = vmatpush1.msra.mxu0 0.0
        %1544 = vmatprep.subr.mxu0 0.0
        %1545 = vmatpush1.msra.mxu0 0.0
        %1546 = vmatprep.subr.mxu0 0.0
        %1547 = vmatpush1.msra.mxu0 0.0
        %1548 = vmatprep.subr.mxu0 0.0
        %1549 = vmatpush1.msra.mxu0 0.0
        %1550 = vmatprep.subr.mxu0 0.0
        %1551 = vmatpush1.msra.mxu0 0.0
        %1552 = vmatprep.subr.mxu0 0.0
        %1553 = vmatpush1.msra.mxu0 0.0
        %1554 = vmatprep.subr.mxu0 0.0
        %1555 = vmatpush1.msra.mxu0 0.0
        %1556 = vmatprep.subr.mxu0 0.0
        %1557 = vmatpush1.msra.mxu0 0.0
        %1558 = vmatprep.subr.mxu0 0.0
        %1559 = vmatpush1.msra.mxu0 0.0
        %1560 = vmatprep.subr.mxu0 0.0
        %1561 = vmatpush1.msra.mxu0 0.0
        %1562 = vmatprep.subr.mxu0 0.0
        %1563 = vmatpush1.msra.mxu0 0.0
        %1564 = vmatprep.subr.mxu0 0.0
        %1565 = vmatpush1.msra.mxu0 0.0
        %1566 = vmatprep.subr.mxu0 0.0
        %1567 = vmatpush1.msra.mxu0 0.0
        %1568 = vmatprep.subr.mxu0 0.0
        %1569 = vmatpush1.msra.mxu0 0.0
        %1570 = vmatprep.subr.mxu0 0.0
        %1571 = vmatpush1.msra.mxu0 0.0
        %1572 = vmatprep.subr.mxu0 0.0
        %1573 = vmatpush1.msra.mxu0 0.0
        %1574 = vmatprep.subr.mxu0 0.0
        %1575 = vmatpush1.msra.mxu0 0.0
        %1576 = vmatprep.subr.mxu0 0.0
        %1577 = vmatpush1.msra.mxu0 0.0
        %1578 = vmatprep.mubr.f32.mxu0 0.0
        %1579 = vmatmul.mubr.f32.gmra.mrb[0].mxu0 %v1512
        %v1580 = vpop.f32.mrb[0].mxu0
        %v1581 = vadd.f32 0.0, %v1580
        %v1582 = vpop.f32.mrb[0].mxu0
        %1583 = vdwg.mxu0
        %v1584 = vadd.f32 %v1511, %v1581
        %v1585 = vtanh.pop %v1584
        %v1586 = vxor.u32 %v1584, 2147483648
        %v1587 = vmul.f32 %v1586, 1.442695
        %v1588 = vpow.pop %v1587
        %v1589 = vadd.f32 %v1588, 1.0
        %v1590 = vrcp.pop %v1589
        %v1591 = vmul.f32 1.0, %v1590
        %v1592 = vsel %vm519, %v1585, %v1591
        %v1593 = vmul.f32 %v1592, %v1494
        %1595 = vrot.lane.b32.xlu0 %v1592, 64
        %v1596 = vpop.permute.xlu0 %1595
        %v1598 = vmul.f32 %v1592, %v1596
        %1600 = vrot.lane.b32.xlu0 %v1598, 32
        %v1601 = vpop.permute.xlu0 %1600
        %v1603 = vadd.f32 %v1593, %v1601
        %v1604 = vtanh.pop %v1603
        %1606 = vrot.lane.b32.xlu0 %v1604, 64
        %v1607 = vpop.permute.xlu0 %1606
        %v1609 = vmul.f32 %v1592, %v1607
        %1611 = vrot.lane.b32.xlu0 %v1609, 32
        %v1612 = vpop.permute.xlu0 %1611
        %s1614 = scalar_lea.vmem %s487, %s1509
        %1615 = vst.msk [vmem:[%s1614] sm:$0x3] %vm635, %v1612
        %s1616 = smul.u32 %s22, 4294967291
        %s1617 = sadd.s32 %s1616, 10
        %s1618 = smul.u32 %s1617, 2
        %s1619 = scalar_lea.vmem %s398, %s1618 [#allocation4]
        %v1620 = vld [vmem:[%s1619] sm:$0x3]
        %v1621 = vsel %vm526, %v1612, 0
        %1623 = vmatprep.subr.mxu0 0.0
        %1624 = vmatpush1.msra.mxu0 %v511
        %1625 = vmatprep.subr.mxu0 0.0
        %1626 = vmatpush1.msra.mxu0 %v512
        %1627 = vmatprep.subr.mxu0 0.0
        %1628 = vmatpush1.msra.mxu0 %v513
        %1629 = vmatprep.subr.mxu0 0.0
        %1630 = vmatpush1.msra.mxu0 %v514
        %1631 = vmatprep.subr.mxu0 0.0
        %1632 = vmatpush1.msra.mxu0 0.0
        %1633 = vmatprep.subr.mxu0 0.0
        %1634 = vmatpush1.msra.mxu0 0.0
        %1635 = vmatprep.subr.mxu0 0.0
        %1636 = vmatpush1.msra.mxu0 0.0
        %1637 = vmatprep.subr.mxu0 0.0
        %1638 = vmatpush1.msra.mxu0 0.0
        %1639 = vmatprep.subr.mxu0 0.0
        %1640 = vmatpush1.msra.mxu0 0.0
        %1641 = vmatprep.subr.mxu0 0.0
        %1642 = vmatpush1.msra.mxu0 0.0
        %1643 = vmatprep.subr.mxu0 0.0
        %1644 = vmatpush1.msra.mxu0 0.0
        %1645 = vmatprep.subr.mxu0 0.0
        %1646 = vmatpush1.msra.mxu0 0.0
        %1647 = vmatprep.subr.mxu0 0.0
        %1648 = vmatpush1.msra.mxu0 0.0
        %1649 = vmatprep.subr.mxu0 0.0
        %1650 = vmatpush1.msra.mxu0 0.0
        %1651 = vmatprep.subr.mxu0 0.0
        %1652 = vmatpush1.msra.mxu0 0.0
        %1653 = vmatprep.subr.mxu0 0.0
        %1654 = vmatpush1.msra.mxu0 0.0
        %1655 = vmatprep.subr.mxu0 0.0
        %1656 = vmatpush1.msra.mxu0 0.0
        %1657 = vmatprep.subr.mxu0 0.0
        %1658 = vmatpush1.msra.mxu0 0.0
        %1659 = vmatprep.subr.mxu0 0.0
        %1660 = vmatpush1.msra.mxu0 0.0
        %1661 = vmatprep.subr.mxu0 0.0
        %1662 = vmatpush1.msra.mxu0 0.0
        %1663 = vmatprep.subr.mxu0 0.0
        %1664 = vmatpush1.msra.mxu0 0.0
        %1665 = vmatprep.subr.mxu0 0.0
        %1666 = vmatpush1.msra.mxu0 0.0
        %1667 = vmatprep.subr.mxu0 0.0
        %1668 = vmatpush1.msra.mxu0 0.0
        %1669 = vmatprep.subr.mxu0 0.0
        %1670 = vmatpush1.msra.mxu0 0.0
        %1671 = vmatprep.subr.mxu0 0.0
        %1672 = vmatpush1.msra.mxu0 0.0
        %1673 = vmatprep.subr.mxu0 0.0
        %1674 = vmatpush1.msra.mxu0 0.0
        %1675 = vmatprep.subr.mxu0 0.0
        %1676 = vmatpush1.msra.mxu0 0.0
        %1677 = vmatprep.subr.mxu0 0.0
        %1678 = vmatpush1.msra.mxu0 0.0
        %1679 = vmatprep.subr.mxu0 0.0
        %1680 = vmatpush1.msra.mxu0 0.0
        %1681 = vmatprep.subr.mxu0 0.0
        %1682 = vmatpush1.msra.mxu0 0.0
        %1683 = vmatprep.subr.mxu0 0.0
        %1684 = vmatpush1.msra.mxu0 0.0
        %1685 = vmatprep.subr.mxu0 0.0
        %1686 = vmatpush1.msra.mxu0 0.0
        %1687 = vmatprep.mubr.f32.mxu0 0.0
        %1688 = vmatmul.mubr.f32.gmra.mrb[0].mxu0 %v1621
        %v1689 = vpop.f32.mrb[0].mxu0
        %v1690 = vadd.f32 0.0, %v1689
        %v1691 = vpop.f32.mrb[0].mxu0
        %1692 = vdwg.mxu0
        %v1693 = vadd.f32 %v1620, %v1690
        %v1694 = vtanh.pop %v1693
        %v1695 = vxor.u32 %v1693, 2147483648
        %v1696 = vmul.f32 %v1695, 1.442695
        %v1697 = vpow.pop %v1696
        %v1698 = vadd.f32 %v1697, 1.0
        %v1699 = vrcp.pop %v1698
        %v1700 = vmul.f32 1.0, %v1699
        %v1701 = vsel %vm519, %v1694, %v1700
        %v1702 = vmul.f32 %v1701, %v1603
        %1704 = vrot.lane.b32.xlu0 %v1701, 64
        %v1705 = vpop.permute.xlu0 %1704
        %v1707 = vmul.f32 %v1701, %v1705
        %1709 = vrot.lane.b32.xlu0 %v1707, 32
        %v1710 = vpop.permute.xlu0 %1709
        %v1712 = vadd.f32 %v1702, %v1710
        %v1713 = vtanh.pop %v1712
        %1715 = vrot.lane.b32.xlu0 %v1713, 64
        %v1716 = vpop.permute.xlu0 %1715
        %v1718 = vmul.f32 %v1701, %v1716
        %1720 = vrot.lane.b32.xlu0 %v1718, 32
        %v1721 = vpop.permute.xlu0 %1720
        %s1723 = scalar_lea.vmem %s487, %s1618
        %1724 = vst.msk [vmem:[%s1723] sm:$0x3] %vm635, %v1721
        %s1725 = smul.u32 %s22, 4294967289
        %s1726 = sadd.s32 %s1725, 11
        %s1727 = smul.u32 %s1726, 2
        %s1728 = scalar_lea.vmem %s398, %s1727 [#allocation4]
        %v1729 = vld [vmem:[%s1728] sm:$0x3]
        %v1730 = vsel %vm526, %v1721, 0
        %1732 = vmatprep.subr.mxu0 0.0
        %1733 = vmatpush1.msra.mxu0 %v511
        %1734 = vmatprep.subr.mxu0 0.0
        %1735 = vmatpush1.msra.mxu0 %v512
        %1736 = vmatprep.subr.mxu0 0.0
        %1737 = vmatpush1.msra.mxu0 %v513
        %1738 = vmatprep.subr.mxu0 0.0
        %1739 = vmatpush1.msra.mxu0 %v514
        %1740 = vmatprep.subr.mxu0 0.0
        %1741 = vmatpush1.msra.mxu0 0.0
        %1742 = vmatprep.subr.mxu0 0.0
        %1743 = vmatpush1.msra.mxu0 0.0
        %1744 = vmatprep.subr.mxu0 0.0
        %1745 = vmatpush1.msra.mxu0 0.0
        %1746 = vmatprep.subr.mxu0 0.0
        %1747 = vmatpush1.msra.mxu0 0.0
        %1748 = vmatprep.subr.mxu0 0.0
        %1749 = vmatpush1.msra.mxu0 0.0
        %1750 = vmatprep.subr.mxu0 0.0
        %1751 = vmatpush1.msra.mxu0 0.0
        %1752 = vmatprep.subr.mxu0 0.0
        %1753 = vmatpush1.msra.mxu0 0.0
        %1754 = vmatprep.subr.mxu0 0.0
        %1755 = vmatpush1.msra.mxu0 0.0
        %1756 = vmatprep.subr.mxu0 0.0
        %1757 = vmatpush1.msra.mxu0 0.0
        %1758 = vmatprep.subr.mxu0 0.0
        %1759 = vmatpush1.msra.mxu0 0.0
        %1760 = vmatprep.subr.mxu0 0.0
        %1761 = vmatpush1.msra.mxu0 0.0
        %1762 = vmatprep.subr.mxu0 0.0
        %1763 = vmatpush1.msra.mxu0 0.0
        %1764 = vmatprep.subr.mxu0 0.0
        %1765 = vmatpush1.msra.mxu0 0.0
        %1766 = vmatprep.subr.mxu0 0.0
        %1767 = vmatpush1.msra.mxu0 0.0
        %1768 = vmatprep.subr.mxu0 0.0
        %1769 = vmatpush1.msra.mxu0 0.0
        %1770 = vmatprep.subr.mxu0 0.0
        %1771 = vmatpush1.msra.mxu0 0.0
        %1772 = vmatprep.subr.mxu0 0.0
        %1773 = vmatpush1.msra.mxu0 0.0
        %1774 = vmatprep.subr.mxu0 0.0
        %1775 = vmatpush1.msra.mxu0 0.0
        %1776 = vmatprep.subr.mxu0 0.0
        %1777 = vmatpush1.msra.mxu0 0.0
        %1778 = vmatprep.subr.mxu0 0.0
        %1779 = vmatpush1.msra.mxu0 0.0
        %1780 = vmatprep.subr.mxu0 0.0
        %1781 = vmatpush1.msra.mxu0 0.0
        %1782 = vmatprep.subr.mxu0 0.0
        %1783 = vmatpush1.msra.mxu0 0.0
        %1784 = vmatprep.subr.mxu0 0.0
        %1785 = vmatpush1.msra.mxu0 0.0
        %1786 = vmatprep.subr.mxu0 0.0
        %1787 = vmatpush1.msra.mxu0 0.0
        %1788 = vmatprep.subr.mxu0 0.0
        %1789 = vmatpush1.msra.mxu0 0.0
        %1790 = vmatprep.subr.mxu0 0.0
        %1791 = vmatpush1.msra.mxu0 0.0
        %1792 = vmatprep.subr.mxu0 0.0
        %1793 = vmatpush1.msra.mxu0 0.0
        %1794 = vmatprep.subr.mxu0 0.0
        %1795 = vmatpush1.msra.mxu0 0.0
        %1796 = vmatprep.mubr.f32.mxu0 0.0
        %1797 = vmatmul.mubr.f32.gmra.mrb[0].mxu0 %v1730
        %v1798 = vpop.f32.mrb[0].mxu0
        %v1799 = vadd.f32 0.0, %v1798
        %v1800 = vpop.f32.mrb[0].mxu0
        %1801 = vdwg.mxu0
        %v1802 = vadd.f32 %v1729, %v1799
        %v1803 = vtanh.pop %v1802
        %v1804 = vxor.u32 %v1802, 2147483648
        %v1805 = vmul.f32 %v1804, 1.442695
        %v1806 = vpow.pop %v1805
        %v1807 = vadd.f32 %v1806, 1.0
        %v1808 = vrcp.pop %v1807
        %v1809 = vmul.f32 1.0, %v1808
        %v1810 = vsel %vm519, %v1803, %v1809
        %v1811 = vmul.f32 %v1810, %v1712
        %1813 = vrot.lane.b32.xlu0 %v1810, 64
        %v1814 = vpop.permute.xlu0 %1813
        %v1816 = vmul.f32 %v1810, %v1814
        %1818 = vrot.lane.b32.xlu0 %v1816, 32
        %v1819 = vpop.permute.xlu0 %1818
        %v1821 = vadd.f32 %v1811, %v1819
        %v1822 = vtanh.pop %v1821
        %1824 = vrot.lane.b32.xlu0 %v1822, 64
        %v1825 = vpop.permute.xlu0 %1824
        %v1827 = vmul.f32 %v1810, %v1825
        %1829 = vrot.lane.b32.xlu0 %v1827, 32
        %v1830 = vpop.permute.xlu0 %1829
        %s1832 = scalar_lea.vmem %s487, %s1727
        %1833 = vst.msk [vmem:[%s1832] sm:$0x3] %vm635, %v1830
        %s1834 = smul.u32 %s22, 4294967287
        %s1835 = sadd.s32 %s1834, 12
        %s1836 = smul.u32 %s1835, 2
        %s1837 = scalar_lea.vmem %s398, %s1836 [#allocation4]
        %v1838 = vld [vmem:[%s1837] sm:$0x3]
        %v1839 = vsel %vm526, %v1830, 0
        %1841 = vmatprep.subr.mxu0 0.0
        %1842 = vmatpush1.msra.mxu0 %v511
        %1843 = vmatprep.subr.mxu0 0.0
        %1844 = vmatpush1.msra.mxu0 %v512
        %1845 = vmatprep.subr.mxu0 0.0
        %1846 = vmatpush1.msra.mxu0 %v513
        %1847 = vmatprep.subr.mxu0 0.0
        %1848 = vmatpush1.msra.mxu0 %v514
        %1849 = vmatprep.subr.mxu0 0.0
        %1850 = vmatpush1.msra.mxu0 0.0
        %1851 = vmatprep.subr.mxu0 0.0
        %1852 = vmatpush1.msra.mxu0 0.0
        %1853 = vmatprep.subr.mxu0 0.0
        %1854 = vmatpush1.msra.mxu0 0.0
        %1855 = vmatprep.subr.mxu0 0.0
        %1856 = vmatpush1.msra.mxu0 0.0
        %1857 = vmatprep.subr.mxu0 0.0
        %1858 = vmatpush1.msra.mxu0 0.0
        %1859 = vmatprep.subr.mxu0 0.0
        %1860 = vmatpush1.msra.mxu0 0.0
        %1861 = vmatprep.subr.mxu0 0.0
        %1862 = vmatpush1.msra.mxu0 0.0
        %1863 = vmatprep.subr.mxu0 0.0
        %1864 = vmatpush1.msra.mxu0 0.0
        %1865 = vmatprep.subr.mxu0 0.0
        %1866 = vmatpush1.msra.mxu0 0.0
        %1867 = vmatprep.subr.mxu0 0.0
        %1868 = vmatpush1.msra.mxu0 0.0
        %1869 = vmatprep.subr.mxu0 0.0
        %1870 = vmatpush1.msra.mxu0 0.0
        %1871 = vmatprep.subr.mxu0 0.0
        %1872 = vmatpush1.msra.mxu0 0.0
        %1873 = vmatprep.subr.mxu0 0.0
        %1874 = vmatpush1.msra.mxu0 0.0
        %1875 = vmatprep.subr.mxu0 0.0
        %1876 = vmatpush1.msra.mxu0 0.0
        %1877 = vmatprep.subr.mxu0 0.0
        %1878 = vmatpush1.msra.mxu0 0.0
        %1879 = vmatprep.subr.mxu0 0.0
        %1880 = vmatpush1.msra.mxu0 0.0
        %1881 = vmatprep.subr.mxu0 0.0
        %1882 = vmatpush1.msra.mxu0 0.0
        %1883 = vmatprep.subr.mxu0 0.0
        %1884 = vmatpush1.msra.mxu0 0.0
        %1885 = vmatprep.subr.mxu0 0.0
        %1886 = vmatpush1.msra.mxu0 0.0
        %1887 = vmatprep.subr.mxu0 0.0
        %1888 = vmatpush1.msra.mxu0 0.0
        %1889 = vmatprep.subr.mxu0 0.0
        %1890 = vmatpush1.msra.mxu0 0.0
        %1891 = vmatprep.subr.mxu0 0.0
        %1892 = vmatpush1.msra.mxu0 0.0
        %1893 = vmatprep.subr.mxu0 0.0
        %1894 = vmatpush1.msra.mxu0 0.0
        %1895 = vmatprep.subr.mxu0 0.0
        %1896 = vmatpush1.msra.mxu0 0.0
        %1897 = vmatprep.subr.mxu0 0.0
        %1898 = vmatpush1.msra.mxu0 0.0
        %1899 = vmatprep.subr.mxu0 0.0
        %1900 = vmatpush1.msra.mxu0 0.0
        %1901 = vmatprep.subr.mxu0 0.0
        %1902 = vmatpush1.msra.mxu0 0.0
        %1903 = vmatprep.subr.mxu0 0.0
        %1904 = vmatpush1.msra.mxu0 0.0
        %1905 = vmatprep.mubr.f32.mxu0 0.0
        %1906 = vmatmul.mubr.f32.gmra.mrb[0].mxu0 %v1839
        %v1907 = vpop.f32.mrb[0].mxu0
        %v1908 = vadd.f32 0.0, %v1907
        %v1909 = vpop.f32.mrb[0].mxu0
        %1910 = vdwg.mxu0
        %v1911 = vadd.f32 %v1838, %v1908
        %v1912 = vtanh.pop %v1911
        %v1913 = vxor.u32 %v1911, 2147483648
        %v1914 = vmul.f32 %v1913, 1.442695
        %v1915 = vpow.pop %v1914
        %v1916 = vadd.f32 %v1915, 1.0
        %v1917 = vrcp.pop %v1916
        %v1918 = vmul.f32 1.0, %v1917
        %v1919 = vsel %vm519, %v1912, %v1918
        %v1920 = vmul.f32 %v1919, %v1821
        %1922 = vrot.lane.b32.xlu0 %v1919, 64
        %v1923 = vpop.permute.xlu0 %1922
        %v1925 = vmul.f32 %v1919, %v1923
        %1927 = vrot.lane.b32.xlu0 %v1925, 32
        %v1928 = vpop.permute.xlu0 %1927
        %v1930 = vadd.f32 %v1920, %v1928
        %v1931 = vtanh.pop %v1930
        %1933 = vrot.lane.b32.xlu0 %v1931, 64
        %v1934 = vpop.permute.xlu0 %1933
        %v1936 = vmul.f32 %v1919, %v1934
        %1938 = vrot.lane.b32.xlu0 %v1936, 32
        %v1939 = vpop.permute.xlu0 %1938
        %s1941 = scalar_lea.vmem %s487, %s1836
        %1942 = vst.msk [vmem:[%s1941] sm:$0x3] %vm635, %v1939
        %s1943 = smul.u32 %s22, 4294967285
        %s1944 = sadd.s32 %s1943, 13
        %s1945 = smul.u32 %s1944, 2
        %s1946 = scalar_lea.vmem %s398, %s1945 [#allocation4]
        %v1947 = vld [vmem:[%s1946] sm:$0x3]
        %v1948 = vsel %vm526, %v1939, 0
        %1950 = vmatprep.subr.mxu0 0.0
        %1951 = vmatpush1.msra.mxu0 %v511
        %1952 = vmatprep.subr.mxu0 0.0
        %1953 = vmatpush1.msra.mxu0 %v512
        %1954 = vmatprep.subr.mxu0 0.0
        %1955 = vmatpush1.msra.mxu0 %v513
        %1956 = vmatprep.subr.mxu0 0.0
        %1957 = vmatpush1.msra.mxu0 %v514
        %1958 = vmatprep.subr.mxu0 0.0
        %1959 = vmatpush1.msra.mxu0 0.0
        %1960 = vmatprep.subr.mxu0 0.0
        %1961 = vmatpush1.msra.mxu0 0.0
        %1962 = vmatprep.subr.mxu0 0.0
        %1963 = vmatpush1.msra.mxu0 0.0
        %1964 = vmatprep.subr.mxu0 0.0
        %1965 = vmatpush1.msra.mxu0 0.0
        %1966 = vmatprep.subr.mxu0 0.0
        %1967 = vmatpush1.msra.mxu0 0.0
        %1968 = vmatprep.subr.mxu0 0.0
        %1969 = vmatpush1.msra.mxu0 0.0
        %1970 = vmatprep.subr.mxu0 0.0
        %1971 = vmatpush1.msra.mxu0 0.0
        %1972 = vmatprep.subr.mxu0 0.0
        %1973 = vmatpush1.msra.mxu0 0.0
        %1974 = vmatprep.subr.mxu0 0.0
        %1975 = vmatpush1.msra.mxu0 0.0
        %1976 = vmatprep.subr.mxu0 0.0
        %1977 = vmatpush1.msra.mxu0 0.0
        %1978 = vmatprep.subr.mxu0 0.0
        %1979 = vmatpush1.msra.mxu0 0.0
        %1980 = vmatprep.subr.mxu0 0.0
        %1981 = vmatpush1.msra.mxu0 0.0
        %1982 = vmatprep.subr.mxu0 0.0
        %1983 = vmatpush1.msra.mxu0 0.0
        %1984 = vmatprep.subr.mxu0 0.0
        %1985 = vmatpush1.msra.mxu0 0.0
        %1986 = vmatprep.subr.mxu0 0.0
        %1987 = vmatpush1.msra.mxu0 0.0
        %1988 = vmatprep.subr.mxu0 0.0
        %1989 = vmatpush1.msra.mxu0 0.0
        %1990 = vmatprep.subr.mxu0 0.0
        %1991 = vmatpush1.msra.mxu0 0.0
        %1992 = vmatprep.subr.mxu0 0.0
        %1993 = vmatpush1.msra.mxu0 0.0
        %1994 = vmatprep.subr.mxu0 0.0
        %1995 = vmatpush1.msra.mxu0 0.0
        %1996 = vmatprep.subr.mxu0 0.0
        %1997 = vmatpush1.msra.mxu0 0.0
        %1998 = vmatprep.subr.mxu0 0.0
        %1999 = vmatpush1.msra.mxu0 0.0
        %2000 = vmatprep.subr.mxu0 0.0
        %2001 = vmatpush1.msra.mxu0 0.0
        %2002 = vmatprep.subr.mxu0 0.0
        %2003 = vmatpush1.msra.mxu0 0.0
        %2004 = vmatprep.subr.mxu0 0.0
        %2005 = vmatpush1.msra.mxu0 0.0
        %2006 = vmatprep.subr.mxu0 0.0
        %2007 = vmatpush1.msra.mxu0 0.0
        %2008 = vmatprep.subr.mxu0 0.0
        %2009 = vmatpush1.msra.mxu0 0.0
        %2010 = vmatprep.subr.mxu0 0.0
        %2011 = vmatpush1.msra.mxu0 0.0
        %2012 = vmatprep.subr.mxu0 0.0
        %2013 = vmatpush1.msra.mxu0 0.0
        %2014 = vmatprep.mubr.f32.mxu0 0.0
        %2015 = vmatmul.mubr.f32.gmra.mrb[0].mxu0 %v1948
        %v2016 = vpop.f32.mrb[0].mxu0
        %v2017 = vadd.f32 0.0, %v2016
        %v2018 = vpop.f32.mrb[0].mxu0
        %2019 = vdwg.mxu0
        %v2020 = vadd.f32 %v1947, %v2017
        %v2021 = vtanh.pop %v2020
        %v2022 = vxor.u32 %v2020, 2147483648
        %v2023 = vmul.f32 %v2022, 1.442695
        %v2024 = vpow.pop %v2023
        %v2025 = vadd.f32 %v2024, 1.0
        %v2026 = vrcp.pop %v2025
        %v2027 = vmul.f32 1.0, %v2026
        %v2028 = vsel %vm519, %v2021, %v2027
        %v2029 = vmul.f32 %v2028, %v1930
        %2031 = vrot.lane.b32.xlu0 %v2028, 64
        %v2032 = vpop.permute.xlu0 %2031
        %v2034 = vmul.f32 %v2028, %v2032
        %2036 = vrot.lane.b32.xlu0 %v2034, 32
        %v2037 = vpop.permute.xlu0 %2036
        %v2039 = vadd.f32 %v2029, %v2037
        %v2040 = vtanh.pop %v2039
        %2042 = vrot.lane.b32.xlu0 %v2040, 64
        %v2043 = vpop.permute.xlu0 %2042
        %v2045 = vmul.f32 %v2028, %v2043
        %2047 = vrot.lane.b32.xlu0 %v2045, 32
        %v2048 = vpop.permute.xlu0 %2047
        %s2050 = scalar_lea.vmem %s487, %s1945
        %2051 = vst.msk [vmem:[%s2050] sm:$0x3] %vm635, %v2048
        %s2052 = smul.u32 %s22, 4294967283
        %s2053 = sadd.s32 %s2052, 14
        %s2054 = smul.u32 %s2053, 2
        %s2055 = scalar_lea.vmem %s398, %s2054 [#allocation4]
        %v2056 = vld [vmem:[%s2055] sm:$0x3]
        %v2057 = vsel %vm526, %v2048, 0
        %2059 = vmatprep.subr.mxu0 0.0
        %2060 = vmatpush1.msra.mxu0 %v511
        %2061 = vmatprep.subr.mxu0 0.0
        %2062 = vmatpush1.msra.mxu0 %v512
        %2063 = vmatprep.subr.mxu0 0.0
        %2064 = vmatpush1.msra.mxu0 %v513
        %2065 = vmatprep.subr.mxu0 0.0
        %2066 = vmatpush1.msra.mxu0 %v514
        %2067 = vmatprep.subr.mxu0 0.0
        %2068 = vmatpush1.msra.mxu0 0.0
        %2069 = vmatprep.subr.mxu0 0.0
        %2070 = vmatpush1.msra.mxu0 0.0
        %2071 = vmatprep.subr.mxu0 0.0
        %2072 = vmatpush1.msra.mxu0 0.0
        %2073 = vmatprep.subr.mxu0 0.0
        %2074 = vmatpush1.msra.mxu0 0.0
        %2075 = vmatprep.subr.mxu0 0.0
        %2076 = vmatpush1.msra.mxu0 0.0
        %2077 = vmatprep.subr.mxu0 0.0
        %2078 = vmatpush1.msra.mxu0 0.0
        %2079 = vmatprep.subr.mxu0 0.0
        %2080 = vmatpush1.msra.mxu0 0.0
        %2081 = vmatprep.subr.mxu0 0.0
        %2082 = vmatpush1.msra.mxu0 0.0
        %2083 = vmatprep.subr.mxu0 0.0
        %2084 = vmatpush1.msra.mxu0 0.0
        %2085 = vmatprep.subr.mxu0 0.0
        %2086 = vmatpush1.msra.mxu0 0.0
        %2087 = vmatprep.subr.mxu0 0.0
        %2088 = vmatpush1.msra.mxu0 0.0
        %2089 = vmatprep.subr.mxu0 0.0
        %2090 = vmatpush1.msra.mxu0 0.0
        %2091 = vmatprep.subr.mxu0 0.0
        %2092 = vmatpush1.msra.mxu0 0.0
        %2093 = vmatprep.subr.mxu0 0.0
        %2094 = vmatpush1.msra.mxu0 0.0
        %2095 = vmatprep.subr.mxu0 0.0
        %2096 = vmatpush1.msra.mxu0 0.0
        %2097 = vmatprep.subr.mxu0 0.0
        %2098 = vmatpush1.msra.mxu0 0.0
        %2099 = vmatprep.subr.mxu0 0.0
        %2100 = vmatpush1.msra.mxu0 0.0
        %2101 = vmatprep.subr.mxu0 0.0
        %2102 = vmatpush1.msra.mxu0 0.0
        %2103 = vmatprep.subr.mxu0 0.0
        %2104 = vmatpush1.msra.mxu0 0.0
        %2105 = vmatprep.subr.mxu0 0.0
        %2106 = vmatpush1.msra.mxu0 0.0
        %2107 = vmatprep.subr.mxu0 0.0
        %2108 = vmatpush1.msra.mxu0 0.0
        %2109 = vmatprep.subr.mxu0 0.0
        %2110 = vmatpush1.msra.mxu0 0.0
        %2111 = vmatprep.subr.mxu0 0.0
        %2112 = vmatpush1.msra.mxu0 0.0
        %2113 = vmatprep.subr.mxu0 0.0
        %2114 = vmatpush1.msra.mxu0 0.0
        %2115 = vmatprep.subr.mxu0 0.0
        %2116 = vmatpush1.msra.mxu0 0.0
        %2117 = vmatprep.subr.mxu0 0.0
        %2118 = vmatpush1.msra.mxu0 0.0
        %2119 = vmatprep.subr.mxu0 0.0
        %2120 = vmatpush1.msra.mxu0 0.0
        %2121 = vmatprep.subr.mxu0 0.0
        %2122 = vmatpush1.msra.mxu0 0.0
        %2123 = vmatprep.mubr.f32.mxu0 0.0
        %2124 = vmatmul.mubr.f32.gmra.mrb[0].mxu0 %v2057
        %v2125 = vpop.f32.mrb[0].mxu0
        %v2126 = vadd.f32 0.0, %v2125
        %v2127 = vpop.f32.mrb[0].mxu0
        %2128 = vdwg.mxu0
        %v2129 = vadd.f32 %v2056, %v2126
        %v2130 = vtanh.pop %v2129
        %v2131 = vxor.u32 %v2129, 2147483648
        %v2132 = vmul.f32 %v2131, 1.442695
        %v2133 = vpow.pop %v2132
        %v2134 = vadd.f32 %v2133, 1.0
        %v2135 = vrcp.pop %v2134
        %v2136 = vmul.f32 1.0, %v2135
        %v2137 = vsel %vm519, %v2130, %v2136
        %v2138 = vmul.f32 %v2137, %v2039
        %2140 = vrot.lane.b32.xlu0 %v2137, 64
        %v2141 = vpop.permute.xlu0 %2140
        %v2143 = vmul.f32 %v2137, %v2141
        %2145 = vrot.lane.b32.xlu0 %v2143, 32
        %v2146 = vpop.permute.xlu0 %2145
        %v2148 = vadd.f32 %v2138, %v2146
        %v2149 = vtanh.pop %v2148
        %2151 = vrot.lane.b32.xlu0 %v2149, 64
        %v2152 = vpop.permute.xlu0 %2151
        %v2154 = vmul.f32 %v2137, %v2152
        %2156 = vrot.lane.b32.xlu0 %v2154, 32
        %v2157 = vpop.permute.xlu0 %2156
        %s2159 = scalar_lea.vmem %s487, %s2054
        %2160 = vst.msk [vmem:[%s2159] sm:$0x3] %vm635, %v2157
        %s2161 = smul.u32 %s22, 4294967281
        %s2162 = sadd.s32 %s2161, 15
        %s2163 = smul.u32 %s2162, 2
        %s2164 = scalar_lea.vmem %s398, %s2163 [#allocation4]
        %v2165 = vld [vmem:[%s2164] sm:$0x3]
        %v2166 = vsel %vm526, %v2157, 0
        %2168 = vmatprep.subr.mxu0 0.0
        %2169 = vmatpush1.msra.mxu0 %v511
        %2170 = vmatprep.subr.mxu0 0.0
        %2171 = vmatpush1.msra.mxu0 %v512
        %2172 = vmatprep.subr.mxu0 0.0
        %2173 = vmatpush1.msra.mxu0 %v513
        %2174 = vmatprep.subr.mxu0 0.0
        %2175 = vmatpush1.msra.mxu0 %v514
        %2176 = vmatprep.subr.mxu0 0.0
        %2177 = vmatpush1.msra.mxu0 0.0
        %2178 = vmatprep.subr.mxu0 0.0
        %2179 = vmatpush1.msra.mxu0 0.0
        %2180 = vmatprep.subr.mxu0 0.0
        %2181 = vmatpush1.msra.mxu0 0.0
        %2182 = vmatprep.subr.mxu0 0.0
        %2183 = vmatpush1.msra.mxu0 0.0
        %2184 = vmatprep.subr.mxu0 0.0
        %2185 = vmatpush1.msra.mxu0 0.0
        %2186 = vmatprep.subr.mxu0 0.0
        %2187 = vmatpush1.msra.mxu0 0.0
        %2188 = vmatprep.subr.mxu0 0.0
        %2189 = vmatpush1.msra.mxu0 0.0
        %2190 = vmatprep.subr.mxu0 0.0
        %2191 = vmatpush1.msra.mxu0 0.0
        %2192 = vmatprep.subr.mxu0 0.0
        %2193 = vmatpush1.msra.mxu0 0.0
        %2194 = vmatprep.subr.mxu0 0.0
        %2195 = vmatpush1.msra.mxu0 0.0
        %2196 = vmatprep.subr.mxu0 0.0
        %2197 = vmatpush1.msra.mxu0 0.0
        %2198 = vmatprep.subr.mxu0 0.0
        %2199 = vmatpush1.msra.mxu0 0.0
        %2200 = vmatprep.subr.mxu0 0.0
        %2201 = vmatpush1.msra.mxu0 0.0
        %2202 = vmatprep.subr.mxu0 0.0
        %2203 = vmatpush1.msra.mxu0 0.0
        %2204 = vmatprep.subr.mxu0 0.0
        %2205 = vmatpush1.msra.mxu0 0.0
        %2206 = vmatprep.subr.mxu0 0.0
        %2207 = vmatpush1.msra.mxu0 0.0
        %2208 = vmatprep.subr.mxu0 0.0
        %2209 = vmatpush1.msra.mxu0 0.0
        %2210 = vmatprep.subr.mxu0 0.0
        %2211 = vmatpush1.msra.mxu0 0.0
        %2212 = vmatprep.subr.mxu0 0.0
        %2213 = vmatpush1.msra.mxu0 0.0
        %2214 = vmatprep.subr.mxu0 0.0
        %2215 = vmatpush1.msra.mxu0 0.0
        %2216 = vmatprep.subr.mxu0 0.0
        %2217 = vmatpush1.msra.mxu0 0.0
        %2218 = vmatprep.subr.mxu0 0.0
        %2219 = vmatpush1.msra.mxu0 0.0
        %2220 = vmatprep.subr.mxu0 0.0
        %2221 = vmatpush1.msra.mxu0 0.0
        %2222 = vmatprep.subr.mxu0 0.0
        %2223 = vmatpush1.msra.mxu0 0.0
        %2224 = vmatprep.subr.mxu0 0.0
        %2225 = vmatpush1.msra.mxu0 0.0
        %2226 = vmatprep.subr.mxu0 0.0
        %2227 = vmatpush1.msra.mxu0 0.0
        %2228 = vmatprep.subr.mxu0 0.0
        %2229 = vmatpush1.msra.mxu0 0.0
        %2230 = vmatprep.subr.mxu0 0.0
        %2231 = vmatpush1.msra.mxu0 0.0
        %2232 = vmatprep.mubr.f32.mxu0 0.0
        %2233 = vmatmul.mubr.f32.gmra.mrb[0].mxu0 %v2166
        %v2234 = vpop.f32.mrb[0].mxu0
        %v2235 = vadd.f32 0.0, %v2234
        %v2236 = vpop.f32.mrb[0].mxu0
        %2237 = vdwg.mxu0
        %v2238 = vadd.f32 %v2165, %v2235
        %v2239 = vtanh.pop %v2238
        %v2240 = vxor.u32 %v2238, 2147483648
        %v2241 = vmul.f32 %v2240, 1.442695
        %v2242 = vpow.pop %v2241
        %v2243 = vadd.f32 %v2242, 1.0
        %v2244 = vrcp.pop %v2243
        %v2245 = vmul.f32 1.0, %v2244
        %v2246 = vsel %vm519, %v2239, %v2245
        %v2247 = vmul.f32 %v2246, %v2148
        %2249 = vrot.lane.b32.xlu0 %v2246, 64
        %v2250 = vpop.permute.xlu0 %2249
        %v2252 = vmul.f32 %v2246, %v2250
        %2254 = vrot.lane.b32.xlu0 %v2252, 32
        %v2255 = vpop.permute.xlu0 %2254
        %v2257 = vadd.f32 %v2247, %v2255
        %v2258 = vtanh.pop %v2257
        %2260 = vrot.lane.b32.xlu0 %v2258, 64
        %v2261 = vpop.permute.xlu0 %2260
        %v2263 = vmul.f32 %v2246, %v2261
        %2265 = vrot.lane.b32.xlu0 %v2263, 32
        %v2266 = vpop.permute.xlu0 %2265
        %s2268 = scalar_lea.vmem %s487, %s2163
        %2269 = vst.msk [vmem:[%s2268] sm:$0x3] %vm635, %v2266
        %2270 = vst.msk [vmem:[#allocation2] sm:$0x3] %vm635, %v2266
        %2272 = vrot.lane.b32.xlu0 %v2257, 96
        %v2273 = vpop.permute.xlu0 %2272
        %2275 = vst.msk [vmem:[#allocation3] sm:$0x3] %vm635, %v2273
        // Predicated region
        $region82: #{swevoice_forward.6} parent=72 // pred_check
          %p2276 = pneg %p502
        $region83: #{swevoice_forward.6} parent=72 // pred_check_branch
          %2278 = sbr.rel (%p2276) target = $region85
        $region84: #{swevoice_forward.6} parent=72 // pred_region
          %2279 = vst.msk [vmem:[%s497] sm:$0x3] %vm635, %v2266
          %2280 = vst.msk [vmem:[%s501] sm:$0x3] %vm635, %v2273
        $region85: #{swevoice_forward.6} parent=72 // pred_fallthru
          _
        %s2281 = ssub.s32 1, %s22
        %s2282 = smul.u32 %s2281, %s23
        %s2283 = ssub.s32 0, %s23
        %s2284 = smul.u32 %s22, %s2283
        %s2285 = sadd.s32 %s2282, %s2284
        %s2286 = smul.u32 16, %s2285
        %p2287 = scmp.lt.s32.totalorder %s22, 1
        %s2288 = scalar_select %p2287, %s22, 1
        %p2289 = scmp.lt.s32.totalorder %s2286, 15
        %s2290 = scalar_select %p2289, %s2286, 15
        %s2291 = smul.addr %s2288, 16
        %s2292 = sadd.s32 %s2290, %s2291
        %s2293 = smul.addr %s2292, 2
        %s2294 = scalar_lea.vmem %s4, %s2293
        %p2295 = scmp.lt.s32.totalorder %s22, 1
        %s2296 = scalar_select %p2295, %s22, 1
        %s2297 = smul.addr %s2296, 2
        %s2298 = scalar_lea.vmem %s5, %s2297
        %p2299 = scmp.lt.s32.totalorder %s22, 1
        %s2300 = scalar_select %p2299, %s22, 1
        %s2301 = smul.addr %s2300, 2
        %s2302 = scalar_lea.vmem %s6, %s2301
        // Predicated region
        $region86: #{swevoice_forward.6} parent=72 // pred_check
          %p2303 = pneg %p176
        $region87: #{swevoice_forward.6} parent=72 // pred_check_branch
          %2305 = sbr.rel (%p2303) target = $region89
        $region88: #{swevoice_forward.6} parent=72 // pred_region
          %s2306 = ssub.s32 1, %s22
          %s2307 = smul.u32 %s2306, %s23
          %s2308 = ssub.s32 0, %s23
          %s2309 = smul.u32 %s22, %s2308
          %s2310 = sadd.s32 %s2307, %s2309
          %s2311 = smul.u32 16, %s2310
        $region89: #{swevoice_forward.6} parent=72 // pred_fallthru
          _
        // Predicated region
        $region90: #{swevoice_forward.6} parent=72 // pred_check
          %p2312 = pneg %p202
        $region91: #{swevoice_forward.6} parent=72 // pred_check_branch
          %2314 = sbr.rel (%p2312) target = $region93
        $region92: #{swevoice_forward.6} parent=72 // pred_region
          _
        $region93: #{swevoice_forward.6} parent=72 // pred_fallthru
          _
        // Predicated region
        $region94: #{swevoice_forward.6} parent=72 // pred_check
          %p2315 = pneg %p228
        $region95: #{swevoice_forward.6} parent=72 // pred_check_branch
          %2317 = sbr.rel (%p2315) target = $region97
        $region96: #{swevoice_forward.6} parent=72 // pred_region
          _
        $region97: #{swevoice_forward.6} parent=72 // pred_fallthru
          _
      $region73: #{swevoice_forward.6} parent=5 // pred_fallthru
        _
      %p2318 = scmp.le.s32.totalorder 2, %s13
      // Predicated region
      $region98: #{swevoice_forward.6} parent=5 // pred_check
        %p2319 = pneg %p2318
      $region99: #{swevoice_forward.6} parent=5 // pred_check_branch
        %2321 = sbr.rel (%p2319) target = $region101
      $region100: #{swevoice_forward.6} parent=5 // pred_region
        %s2322 = ssub.s32 %s13, 2
        // Predicated region
        $region102: #{swevoice_forward.6} parent=100 // pred_check
          %p2323 = pneg %p182
        $region103: #{swevoice_forward.6} parent=100 // pred_check_branch
          %2325 = sbr.rel (%p2323) target = $region105
        $region104: #{swevoice_forward.6} parent=100 // pred_region
          %s2326 = ssub.s32 1, %s24
          %s2327 = smul.u32 %s2326, %s25
          %s2328 = ssub.s32 0, %s25
          %s2329 = smul.u32 %s24, %s2328
          %s2330 = sadd.s32 %s2327, %s2329
          %s2331 = smul.u32 16, %s2330
          %p2332 = scmp.lt.s32.totalorder %s24, 1
          %s2333 = scalar_select %p2332, %s24, 1
          %p2334 = scmp.lt.s32.totalorder %s2331, 15
          %s2335 = scalar_select %p2334, %s2331, 15
          %s2336 = smul.addr %s2333, 16
          %s2337 = sadd.s32 %s2335, %s2336
          %s2338 = smul.addr %s2337, 2
          %s2339 = scalar_lea.vmem %s4, %s2338
        $region105: #{swevoice_forward.6} parent=100 // pred_fallthru
          _
        // Predicated region
        $region106: #{swevoice_forward.6} parent=100 // pred_check
          %p2340 = pneg %p208
        $region107: #{swevoice_forward.6} parent=100 // pred_check_branch
          %2342 = sbr.rel (%p2340) target = $region109
        $region108: #{swevoice_forward.6} parent=100 // pred_region
          %p2343 = scmp.lt.s32.totalorder %s24, 1
          %s2344 = scalar_select %p2343, %s24, 1
          %s2345 = smul.addr %s2344, 2
          %s2346 = scalar_lea.vmem %s5, %s2345
        $region109: #{swevoice_forward.6} parent=100 // pred_fallthru
          _
        // Predicated region
        $region110: #{swevoice_forward.6} parent=100 // pred_check
          %p2347 = pneg %p234
        $region111: #{swevoice_forward.6} parent=100 // pred_check_branch
          %2349 = sbr.rel (%p2347) target = $region113
        $region112: #{swevoice_forward.6} parent=100 // pred_region
          %p2350 = scmp.lt.s32.totalorder %s24, 1
          %s2351 = scalar_select %p2350, %s24, 1
          %s2352 = smul.addr %s2351, 2
          %s2353 = scalar_lea.vmem %s6, %s2352
        $region113: #{swevoice_forward.6} parent=100 // pred_fallthru
          _
      $region101: #{swevoice_forward.6} parent=5 // pred_fallthru
        _
    $region6: #{swevoice_forward.6} parent=1 // loop_footer
      %s17 = sadd.s32 1, %s13
    $region7: #{swevoice_forward.6} parent=1 // loop_footer_branch
      %12 = sbr.rel target = $region3
    $region8: #{swevoice_forward.6} parent=1 // loop_exit
      _

// kernel: swevoice_forward.9
$region0: #{swevoice_forward.9}
  #allocation0 [shape = 'u32[]', space=smem, size = 0x4, offset = 0x4, fixed_abs, tag = 'smem constant byte address 0x4 - core index']
  #allocation1 [shape = 'u32[144,128]{1,0:T(1,128)}', space=vmem, size = 0x12000, scoped, tag = 'internal scratch']
  %s0 = inlined_call_operand.vmem [shape: f32[32,32], index: 0, kind: input, shape index: {}]
  %s1 = inlined_call_operand.vmem [shape: f32[32,32], index: 1, kind: input, shape index: {}]
  %s2 = inlined_call_operand.vmem [shape: f32[1,32], index: 2, kind: input, shape index: {}]
  %s3 = inlined_call_operand.vmem [shape: f32[1,32], index: 3, kind: input, shape index: {}]
  %s4 = inlined_call_operand.vmem [shape: f32[1,32], index: 4, kind: input, shape index: {}]
  %s5 = inlined_call_operand.vmem [shape: f32[1,32], index: 5, kind: input, shape index: {}]
  %s6 = inlined_call_operand.vmem [shape: f32[32,128], index: 6, kind: input, shape index: {}]
  %s7 = inlined_call_operand.vmem [shape: f32[32,128], index: 7, kind: input, shape index: {}]
  %s8 = inlined_call_operand.vmem [shape: f32[1,128], index: 8, kind: input, shape index: {}]
  %s9 = inlined_call_operand.vmem [shape: f32[32,128], index: 9, kind: output, shape index: {}]
  %s10 = sld [smem:[#allocation0]]
  $region46: #{swevoice_forward.9} parent=0
    _
  %s12 = ssub.s32 1, %s10
  %s13 = scalar_select 0, %s12, %s10
  // Predicated region
  $region2: #{swevoice_forward.9} parent=0 // pred_check
    _
  $region3: #{swevoice_forward.9} parent=0 // pred_check_branch
    %15 = sbr.rel (0) target = $region5
  $region4: #{swevoice_forward.9} parent=0 // pred_region
    _
  $region5: #{swevoice_forward.9} parent=0 // pred_fallthru
    _
  // Predicated region
  $region6: #{swevoice_forward.9} parent=0 // pred_check
    _
  $region7: #{swevoice_forward.9} parent=0 // pred_check_branch
    %17 = sbr.rel (0) target = $region9
  $region8: #{swevoice_forward.9} parent=0 // pred_region
    _
  $region9: #{swevoice_forward.9} parent=0 // pred_fallthru
    _
  // Predicated region
  $region10: #{swevoice_forward.9} parent=0 // pred_check
    _
  $region11: #{swevoice_forward.9} parent=0 // pred_check_branch
    %19 = sbr.rel (0) target = $region13
  $region12: #{swevoice_forward.9} parent=0 // pred_region
    _
  $region13: #{swevoice_forward.9} parent=0 // pred_fallthru
    _
  // Predicated region
  $region14: #{swevoice_forward.9} parent=0 // pred_check
    _
  $region15: #{swevoice_forward.9} parent=0 // pred_check_branch
    %21 = sbr.rel (0) target = $region17
  $region16: #{swevoice_forward.9} parent=0 // pred_region
    _
  $region17: #{swevoice_forward.9} parent=0 // pred_fallthru
    _
  // Predicated region
  $region18: #{swevoice_forward.9} parent=0 // pred_check
    _
  $region19: #{swevoice_forward.9} parent=0 // pred_check_branch
    %23 = sbr.rel (0) target = $region21
  $region20: #{swevoice_forward.9} parent=0 // pred_region
    _
  $region21: #{swevoice_forward.9} parent=0 // pred_fallthru
    _
  // Predicated region
  $region22: #{swevoice_forward.9} parent=0 // pred_check
    _
  $region23: #{swevoice_forward.9} parent=0 // pred_check_branch
    %25 = sbr.rel (0) target = $region25
  $region24: #{swevoice_forward.9} parent=0 // pred_region
    _
  $region25: #{swevoice_forward.9} parent=0 // pred_fallthru
    _
  // Predicated region
  $region26: #{swevoice_forward.9} parent=0 // pred_check
    _
  $region27: #{swevoice_forward.9} parent=0 // pred_check_branch
    %27 = sbr.rel (0) target = $region29
  $region28: #{swevoice_forward.9} parent=0 // pred_region
    _
  $region29: #{swevoice_forward.9} parent=0 // pred_fallthru
    _
  // Predicated region
  $region30: #{swevoice_forward.9} parent=0 // pred_check
    _
  $region31: #{swevoice_forward.9} parent=0 // pred_check_branch
    %29 = sbr.rel (0) target = $region33
  $region32: #{swevoice_forward.9} parent=0 // pred_region
    _
  $region33: #{swevoice_forward.9} parent=0 // pred_fallthru
    _
  // Predicated region
  $region34: #{swevoice_forward.9} parent=0 // pred_check
    _
  $region35: #{swevoice_forward.9} parent=0 // pred_check_branch
    %31 = sbr.rel (0) target = $region37
  $region36: #{swevoice_forward.9} parent=0 // pred_region
    _
  $region37: #{swevoice_forward.9} parent=0 // pred_fallthru
    _
  %v32 = vld [vmem:[%s0] sm:$0xff]
  %v33 = vld [vmem:[%s0 + $0x8] sm:$0xff]
  %v34 = vld [vmem:[%s0 + $0x10] sm:$0xff]
  %v35 = vld [vmem:[%s0 + $0x18] sm:$0xff]
  %v36 = vld [vmem:[%s1] sm:$0xff]
  %v37 = vld [vmem:[%s1 + $0x8] sm:$0xff]
  %v38 = vld [vmem:[%s1 + $0x10] sm:$0xff]
  %v39 = vld [vmem:[%s1 + $0x18] sm:$0xff]
  %v40 = vmul.f32 %v32, 0.5
  %v41 = vmul.f32 %v33, 0.5
  %v42 = vmul.f32 %v34, 0.5
  %v43 = vmul.f32 %v35, 0.5
  %v44 = vmul.f32 %v32, 0.70710677
  %v45 = vmul.f32 %v33, 0.70710677
  %v46 = vmul.f32 %v34, 0.70710677
  %v47 = vmul.f32 %v35, 0.70710677
  %v48 = verf.f32.pop %v44
  %v49 = verf.f32.pop %v45
  %v50 = verf.f32.pop %v46
  %v51 = verf.f32.pop %v47
  %v52 = vadd.f32 %v48, 1.0
  %v53 = vadd.f32 %v49, 1.0
  %v54 = vadd.f32 %v50, 1.0
  %v55 = vadd.f32 %v51, 1.0
  %v56 = vmul.f32 %v40, %v52
  %v57 = vmul.f32 %v41, %v53
  %v58 = vmul.f32 %v42, %v54
  %v59 = vmul.f32 %v43, %v55
  %v60 = vmul.f32 %v36, 0.5
  %v61 = vmul.f32 %v37, 0.5
  %v62 = vmul.f32 %v38, 0.5
  %v63 = vmul.f32 %v39, 0.5
  %v64 = vmul.f32 %v36, 0.70710677
  %v65 = vmul.f32 %v37, 0.70710677
  %v66 = vmul.f32 %v38, 0.70710677
  %v67 = vmul.f32 %v39, 0.70710677
  %v68 = verf.f32.pop %v64
  %v69 = verf.f32.pop %v65
  %v70 = verf.f32.pop %v66
  %v71 = verf.f32.pop %v67
  %v72 = vadd.f32 %v68, 1.0
  %v73 = vadd.f32 %v69, 1.0
  %v74 = vadd.f32 %v70, 1.0
  %v75 = vadd.f32 %v71, 1.0
  %v76 = vmul.f32 %v60, %v72
  %v77 = vmul.f32 %v61, %v73
  %v78 = vmul.f32 %v62, %v74
  %v79 = vmul.f32 %v63, %v75
  %vm80 = vcmask 261120
  %v81 = vsel %vm80, %v56, 0.0
  %82 = vadd.xlane.f32.xlu0 %v81
  %v83 = vpop.xlane.xlu0 %82
  %v84 = vsel %vm80, %v57, 0.0
  %85 = vadd.xlane.f32.xlu0 %v84
  %v86 = vpop.xlane.xlu0 %85
  %v87 = vsel %vm80, %v58, 0.0
  %88 = vadd.xlane.f32.xlu0 %v87
  %v89 = vpop.xlane.xlu0 %88
  %v90 = vsel %vm80, %v59, 0.0
  %91 = vadd.xlane.f32.xlu0 %v90
  %v92 = vpop.xlane.xlu0 %91
  %v93 = vsel %vm80, %v76, 0.0
  %94 = vadd.xlane.f32.xlu0 %v93
  %v95 = vpop.xlane.xlu0 %94
  %v96 = vsel %vm80, %v77, 0.0
  %97 = vadd.xlane.f32.xlu0 %v96
  %v98 = vpop.xlane.xlu0 %97
  %v99 = vsel %vm80, %v78, 0.0
  %100 = vadd.xlane.f32.xlu0 %v99
  %v101 = vpop.xlane.xlu0 %100
  %v102 = vsel %vm80, %v79, 0.0
  %103 = vadd.xlane.f32.xlu0 %v102
  %v104 = vpop.xlane.xlu0 %103
  %v105 = vadd.f32 %v83, %v95
  %v106 = vadd.f32 %v86, %v98
  %v107 = vadd.f32 %v89, %v101
  %v108 = vadd.f32 %v92, %v104
  %v109 = vrcp.pop 64.0
  %v110 = vmul.f32 %v105, %v109
  %v111 = vmul.f32 %v106, %v109
  %v112 = vmul.f32 %v107, %v109
  %v113 = vmul.f32 %v108, %v109
  %v114 = vsub.f32 %v56, %v110
  %v115 = vsub.f32 %v57, %v111
  %v116 = vsub.f32 %v58, %v112
  %v117 = vsub.f32 %v59, %v113
  %v118 = vmul.f32 %v114, %v114
  %v119 = vmul.f32 %v115, %v115
  %v120 = vmul.f32 %v116, %v116
  %v121 = vmul.f32 %v117, %v117
  %v122 = vsel %vm80, %v118, 0.0
  %123 = vadd.xlane.f32.xlu0 %v122
  %v124 = vpop.xlane.xlu0 %123
  %v125 = vsel %vm80, %v119, 0.0
  %126 = vadd.xlane.f32.xlu0 %v125
  %v127 = vpop.xlane.xlu0 %126
  %v128 = vsel %vm80, %v120, 0.0
  %129 = vadd.xlane.f32.xlu0 %v128
  %v130 = vpop.xlane.xlu0 %129
  %v131 = vsel %vm80, %v121, 0.0
  %132 = vadd.xlane.f32.xlu0 %v131
  %v133 = vpop.xlane.xlu0 %132
  %v134 = vsub.f32 %v76, %v110
  %v135 = vsub.f32 %v77, %v111
  %v136 = vsub.f32 %v78, %v112
  %v137 = vsub.f32 %v79, %v113
  %v138 = vmul.f32 %v134, %v134
  %v139 = vmul.f32 %v135, %v135
  %v140 = vmul.f32 %v136, %v136
  %v141 = vmul.f32 %v137, %v137
  %v142 = vsel %vm80, %v138, 0.0
  %143 = vadd.xlane.f32.xlu0 %v142
  %v144 = vpop.xlane.xlu0 %143
  %v145 = vsel %vm80, %v139, 0.0
  %146 = vadd.xlane.f32.xlu0 %v145
  %v147 = vpop.xlane.xlu0 %146
  %v148 = vsel %vm80, %v140, 0.0
  %149 = vadd.xlane.f32.xlu0 %v148
  %v150 = vpop.xlane.xlu0 %149
  %v151 = vsel %vm80, %v141, 0.0
  %152 = vadd.xlane.f32.xlu0 %v151
  %v153 = vpop.xlane.xlu0 %152
  %v154 = vadd.f32 %v124, %v144
  %v155 = vadd.f32 %v127, %v147
  %v156 = vadd.f32 %v130, %v150
  %v157 = vadd.f32 %v133, %v153
  %v158 = vmul.f32 %v154, %v109
  %v159 = vmul.f32 %v155, %v109
  %v160 = vmul.f32 %v156, %v109
  %v161 = vmul.f32 %v157, %v109
  %v162 = vadd.f32 %v158, 1e-05
  %v163 = vadd.f32 %v159, 1e-05
  %v164 = vadd.f32 %v160, 1e-05
  %v165 = vadd.f32 %v161, 1e-05
  %v166 = vrsqrt.pop %v162
  %v167 = vrsqrt.pop %v163
  %v168 = vrsqrt.pop %v164
  %v169 = vrsqrt.pop %v165
  %v170 = vmul.f32 %v114, %v166
  %v171 = vmul.f32 %v115, %v167
  %v172 = vmul.f32 %v116, %v168
  %v173 = vmul.f32 %v117, %v169
  %v174 = vld [vmem:[%s2] sm:$0x1]
  %v176 = vlaneseq
  %v177 = vshrl.u32 %v176, 7
  %v178 = vsub.s32 0, %v177
  %v179 = vrot.slane %v174, %v178
  %v181 = vmul.f32 %v170, %v179
  %v182 = vmul.f32 %v171, %v179
  %v183 = vmul.f32 %v172, %v179
  %v184 = vmul.f32 %v173, %v179
  %v185 = vld [vmem:[%s4] sm:$0x1]
  %v187 = vlaneseq
  %v188 = vshrl.u32 %v187, 7
  %v189 = vsub.s32 0, %v188
  %v190 = vrot.slane %v185, %v189
  %v192 = vadd.f32 %v181, %v190
  %v193 = vadd.f32 %v182, %v190
  %v194 = vadd.f32 %v183, %v190
  %v195 = vadd.f32 %v184, %v190
  %v196 = vmul.f32 %v134, %v166
  %v197 = vmul.f32 %v135, %v167
  %v198 = vmul.f32 %v136, %v168
  %v199 = vmul.f32 %v137, %v169
  %v200 = vld [vmem:[%s3] sm:$0x1]
  %v202 = vlaneseq
  %v203 = vshrl.u32 %v202, 7
  %v204 = vsub.s32 0, %v203
  %v205 = vrot.slane %v200, %v204
  %v207 = vmul.f32 %v196, %v205
  %v208 = vmul.f32 %v197, %v205
  %v209 = vmul.f32 %v198, %v205
  %v210 = vmul.f32 %v199, %v205
  %v211 = vld [vmem:[%s5] sm:$0x1]
  %v213 = vlaneseq
  %v214 = vshrl.u32 %v213, 7
  %v215 = vsub.s32 0, %v214
  %v216 = vrot.slane %v211, %v215
  %v218 = vadd.f32 %v207, %v216
  %v219 = vadd.f32 %v208, %v216
  %v220 = vadd.f32 %v209, %v216
  %v221 = vadd.f32 %v210, %v216
  %v222 = vld [vmem:[%s6] sm:$0xff]
  %v223 = vld [vmem:[%s6 + $0x8] sm:$0xff]
  %v224 = vld [vmem:[%s6 + $0x10] sm:$0xff]
  %v225 = vld [vmem:[%s6 + $0x18] sm:$0xff]
  %v226 = vld [vmem:[%s7] sm:$0xff]
  %v227 = vld [vmem:[%s7 + $0x8] sm:$0xff]
  %v228 = vld [vmem:[%s7 + $0x10] sm:$0xff]
  %v229 = vld [vmem:[%s7 + $0x18] sm:$0xff]
  %v231 = vsel %vm80, %v218, 0
  %v234 = vsel %vm80, %v219, 0
  %v237 = vsel %vm80, %v220, 0
  %v240 = vsel %vm80, %v221, 0
  %242 = vmatprep.subr.mxu0 0.0
  %243 = vmatpush1.msra.mxu0 %v226
  %244 = vmatprep.subr.mxu0 0.0
  %245 = vmatpush1.msra.mxu0 %v227
  %246 = vmatprep.subr.mxu0 0.0
  %247 = vmatpush1.msra.mxu0 %v228
  %248 = vmatprep.subr.mxu0 0.0
  %249 = vmatpush1.msra.mxu0 %v229
  %250 = vmatprep.subr.mxu0 0.0
  %251 = vmatpush1.msra.mxu0 0.0
  %252 = vmatprep.subr.mxu0 0.0
  %253 = vmatpush1.msra.mxu0 0.0
  %254 = vmatprep.subr.mxu0 0.0
  %255 = vmatpush1.msra.mxu0 0.0
  %256 = vmatprep.subr.mxu0 0.0
  %257 = vmatpush1.msra.mxu0 0.0
  %258 = vmatprep.subr.mxu0 0.0
  %259 = vmatpush1.msra.mxu0 0.0
  %260 = vmatprep.subr.mxu0 0.0
  %261 = vmatpush1.msra.mxu0 0.0
  %262 = vmatprep.subr.mxu0 0.0
  %263 = vmatpush1.msra.mxu0 0.0
  %264 = vmatprep.subr.mxu0 0.0
  %265 = vmatpush1.msra.mxu0 0.0
  %266 = vmatprep.subr.mxu0 0.0
  %267 = vmatpush1.msra.mxu0 0.0
  %268 = vmatprep.subr.mxu0 0.0
  %269 = vmatpush1.msra.mxu0 0.0
  %270 = vmatprep.subr.mxu0 0.0
  %271 = vmatpush1.msra.mxu0 0.0
  %272 = vmatprep.subr.mxu0 0.0
  %273 = vmatpush1.msra.mxu0 0.0
  %274 = vmatprep.subr.mxu0 0.0
  %275 = vmatpush1.msra.mxu0 0.0
  %276 = vmatprep.subr.mxu0 0.0
  %277 = vmatpush1.msra.mxu0 0.0
  %278 = vmatprep.subr.mxu0 0.0
  %279 = vmatpush1.msra.mxu0 0.0
  %280 = vmatprep.subr.mxu0 0.0
  %281 = vmatpush1.msra.mxu0 0.0
  %282 = vmatprep.subr.mxu0 0.0
  %283 = vmatpush1.msra.mxu0 0.0
  %284 = vmatprep.subr.mxu0 0.0
  %285 = vmatpush1.msra.mxu0 0.0
  %286 = vmatprep.subr.mxu0 0.0
  %287 = vmatpush1.msra.mxu0 0.0
  %288 = vmatprep.subr.mxu0 0.0
  %289 = vmatpush1.msra.mxu0 0.0
  %290 = vmatprep.subr.mxu0 0.0
  %291 = vmatpush1.msra.mxu0 0.0
  %292 = vmatprep.subr.mxu0 0.0
  %293 = vmatpush1.msra.mxu0 0.0
  %294 = vmatprep.subr.mxu0 0.0
  %295 = vmatpush1.msra.mxu0 0.0
  %296 = vmatprep.subr.mxu0 0.0
  %297 = vmatpush1.msra.mxu0 0.0
  %298 = vmatprep.subr.mxu0 0.0
  %299 = vmatpush1.msra.mxu0 0.0
  %300 = vmatprep.subr.mxu0 0.0
  %301 = vmatpush1.msra.mxu0 0.0
  %302 = vmatprep.subr.mxu0 0.0
  %303 = vmatpush1.msra.mxu0 0.0
  %304 = vmatprep.subr.mxu0 0.0
  %305 = vmatpush1.msra.mxu0 0.0
  %306 = vmatprep.mubr.f32.mxu0 0.0
  %307 = vmatmul.mubr.f32.gmra.mrb[0].mxu0 %v231
  %v308 = vpop.f32.mrb[0].mxu0
  %v309 = vadd.f32 0.0, %v308
  %v310 = vpop.f32.mrb[0].mxu0
  %311 = vmatprep.mubr.f32.mxu0 0.0
  %312 = vmatmul.mubr.f32.gmra.mrb[0].mxu0 %v234
  %v313 = vpop.f32.mrb[0].mxu0
  %v314 = vadd.f32 0.0, %v313
  %v315 = vpop.f32.mrb[0].mxu0
  %316 = vmatprep.mubr.f32.mxu0 0.0
  %317 = vmatmul.mubr.f32.gmra.mrb[0].mxu0 %v237
  %v318 = vpop.f32.mrb[0].mxu0
  %v319 = vadd.f32 0.0, %v318
  %v320 = vpop.f32.mrb[0].mxu0
  %321 = vmatprep.mubr.f32.mxu0 0.0
  %322 = vmatmul.mubr.f32.gmra.mrb[0].mxu0 %v240
  %v323 = vpop.f32.mrb[0].mxu0
  %v324 = vadd.f32 0.0, %v323
  %v325 = vpop.f32.mrb[0].mxu0
  %326 = vdwg.mxu0
  %v328 = vsel %vm80, %v192, 0
  %v331 = vsel %vm80, %v193, 0
  %v334 = vsel %vm80, %v194, 0
  %v337 = vsel %vm80, %v195, 0
  %339 = vmatprep.subr.mxu0 0.0
  %340 = vmatpush1.msra.mxu0 %v222
  %341 = vmatprep.subr.mxu0 0.0
  %342 = vmatpush1.msra.mxu0 %v223
  %343 = vmatprep.subr.mxu0 0.0
  %344 = vmatpush1.msra.mxu0 %v224
  %345 = vmatprep.subr.mxu0 0.0
  %346 = vmatpush1.msra.mxu0 %v225
  %347 = vmatprep.subr.mxu0 0.0
  %348 = vmatpush1.msra.mxu0 0.0
  %349 = vmatprep.subr.mxu0 0.0
  %350 = vmatpush1.msra.mxu0 0.0
  %351 = vmatprep.subr.mxu0 0.0
  %352 = vmatpush1.msra.mxu0 0.0
  %353 = vmatprep.subr.mxu0 0.0
  %354 = vmatpush1.msra.mxu0 0.0
  %355 = vmatprep.subr.mxu0 0.0
  %356 = vmatpush1.msra.mxu0 0.0
  %357 = vmatprep.subr.mxu0 0.0
  %358 = vmatpush1.msra.mxu0 0.0
  %359 = vmatprep.subr.mxu0 0.0
  %360 = vmatpush1.msra.mxu0 0.0
  %361 = vmatprep.subr.mxu0 0.0
  %362 = vmatpush1.msra.mxu0 0.0
  %363 = vmatprep.subr.mxu0 0.0
  %364 = vmatpush1.msra.mxu0 0.0
  %365 = vmatprep.subr.mxu0 0.0
  %366 = vmatpush1.msra.mxu0 0.0
  %367 = vmatprep.subr.mxu0 0.0
  %368 = vmatpush1.msra.mxu0 0.0
  %369 = vmatprep.subr.mxu0 0.0
  %370 = vmatpush1.msra.mxu0 0.0
  %371 = vmatprep.subr.mxu0 0.0
  %372 = vmatpush1.msra.mxu0 0.0
  %373 = vmatprep.subr.mxu0 0.0
  %374 = vmatpush1.msra.mxu0 0.0
  %375 = vmatprep.subr.mxu0 0.0
  %376 = vmatpush1.msra.mxu0 0.0
  %377 = vmatprep.subr.mxu0 0.0
  %378 = vmatpush1.msra.mxu0 0.0
  %379 = vmatprep.subr.mxu0 0.0
  %380 = vmatpush1.msra.mxu0 0.0
  %381 = vmatprep.subr.mxu0 0.0
  %382 = vmatpush1.msra.mxu0 0.0
  %383 = vmatprep.subr.mxu0 0.0
  %384 = vmatpush1.msra.mxu0 0.0
  %385 = vmatprep.subr.mxu0 0.0
  %386 = vmatpush1.msra.mxu0 0.0
  %387 = vmatprep.subr.mxu0 0.0
  %388 = vmatpush1.msra.mxu0 0.0
  %389 = vmatprep.subr.mxu0 0.0
  %390 = vmatpush1.msra.mxu0 0.0
  %391 = vmatprep.subr.mxu0 0.0
  %392 = vmatpush1.msra.mxu0 0.0
  %393 = vmatprep.subr.mxu0 0.0
  %394 = vmatpush1.msra.mxu0 0.0
  %395 = vmatprep.subr.mxu0 0.0
  %396 = vmatpush1.msra.mxu0 0.0
  %397 = vmatprep.subr.mxu0 0.0
  %398 = vmatpush1.msra.mxu0 0.0
  %399 = vmatprep.subr.mxu0 0.0
  %400 = vmatpush1.msra.mxu0 0.0
  %401 = vmatprep.subr.mxu0 0.0
  %402 = vmatpush1.msra.mxu0 0.0
  %403 = vmatprep.mubr.f32.mxu0 0.0
  %404 = vmatmul.mubr.f32.gmra.mrb[0].mxu0 %v328
  %v405 = vpop.f32.mrb[0].mxu0
  %v406 = vadd.f32 %v309, %v405
  %v407 = vpop.f32.mrb[0].mxu0
  %408 = vmatprep.mubr.f32.mxu0 0.0
  %409 = vmatmul.mubr.f32.gmra.mrb[0].mxu0 %v331
  %v410 = vpop.f32.mrb[0].mxu0
  %v411 = vadd.f32 %v314, %v410
  %v412 = vpop.f32.mrb[0].mxu0
  %413 = vmatprep.mubr.f32.mxu0 0.0
  %414 = vmatmul.mubr.f32.gmra.mrb[0].mxu0 %v334
  %v415 = vpop.f32.mrb[0].mxu0
  %v416 = vadd.f32 %v319, %v415
  %v417 = vpop.f32.mrb[0].mxu0
  %418 = vmatprep.mubr.f32.mxu0 0.0
  %419 = vmatmul.mubr.f32.gmra.mrb[0].mxu0 %v337
  %v420 = vpop.f32.mrb[0].mxu0
  %v421 = vadd.f32 %v324, %v420
  %v422 = vpop.f32.mrb[0].mxu0
  %423 = vdwg.mxu0
  %v424 = vld [vmem:[%s8] sm:$0x1]
  %v426 = vlaneseq
  %v427 = vshrl.u32 %v426, 7
  %v428 = vsub.s32 0, %v427
  %v429 = vrot.slane %v424, %v428
  %v431 = vadd.f32 %v406, %v429
  %v432 = vadd.f32 %v411, %v429
  %v433 = vadd.f32 %v416, %v429
  %v434 = vadd.f32 %v421, %v429
  %435 = vst [vmem:[%s9] sm:$0xff] %v431
  %436 = vst [vmem:[%s9 + $0x8] sm:$0xff] %v432
  %437 = vst [vmem:[%s9 + $0x10] sm:$0xff] %v433
  %438 = vst [vmem:[%s9 + $0x18] sm:$0xff] %v434
  // Predicated region
  $region38: #{swevoice_forward.9} parent=0 // pred_check
    _
  $region39: #{swevoice_forward.9} parent=0 // pred_check_branch
    %440 = sbr.rel (0) target = $region41
  $region40: #{swevoice_forward.9} parent=0 // pred_region
    _
  $region41: #{swevoice_forward.9} parent=0 // pred_fallthru
    _
  // Predicated region
  $region42: #{swevoice_forward.9} parent=0 // pred_check
    _
  $region43: #{swevoice_forward.9} parent=0 // pred_check_branch
    %442 = sbr.rel (0) target = $region45
  $region44: #{swevoice_forward.9} parent=0 // pred_region
    _
  $region45: #{swevoice_forward.9} parent=0 // pred_fallthru
    _

</llo_original>
